<compile_context>
chip_gen: v7x
topology: tpu7x:2x2x1
jax: 0.10.0
libtpu: 0.0.40
codegen_flags: <defaults>
</compile_context>

<pallas_src>
import functools
import math

import jax
import jax.numpy as jnp
from jax.experimental import pallas as pl
from jax.experimental.pallas import tpu as pltpu

# ---------------- model hyperparameters (module defaults) ----------------
ATTN_LEN = 5
NTOKEN = 2
DMODEL = 128
NHEAD = 2
D_HID = 512
NLAYERS = 9
HEAD_DIM = DMODEL // NHEAD
EPS = 1e-5


# ---------------- small Pallas linear kernel (conv3 im2col GEMM) ----------------
def _linear_kernel(x_ref, w_ref, b_ref, o_ref):
    y = jnp.dot(x_ref[...].astype(jnp.bfloat16), w_ref[...],
                preferred_element_type=jnp.float32)
    o_ref[...] = y + b_ref[...]


def pallas_linear(x, w, b, tile_m=512):
    """y = x @ w + b with bf16 MXU operands, f32 accumulation. x: (M, K)."""
    M, K = x.shape
    N = w.shape[1]
    tm = min(tile_m, M)
    return pl.pallas_call(
        _linear_kernel,
        out_shape=jax.ShapeDtypeStruct((M, N), jnp.float32),
        grid=(pl.cdiv(M, tm),),
        in_specs=[
            pl.BlockSpec((tm, K), lambda i: (i, 0)),
            pl.BlockSpec((K, N), lambda i: (0, 0)),
            pl.BlockSpec((1, N), lambda i: (0, 0)),
        ],
        out_specs=pl.BlockSpec((tm, N), lambda i: (i, 0)),
        compiler_params=pltpu.CompilerParams(
            dimension_semantics=("parallel",),
            vmem_limit_bytes=32 * 1024 * 1024),
    )(x, w.astype(jnp.bfloat16), b.reshape(1, N))


# ---------------- fused whole-stack transformer kernel ----------------
def _stack_kernel(x_ref, mask_ref, ln1g_ref, ln1b_ref, wqkv_ref, bqkv_ref,
                  er_ref, wo_ref, bo_ref, ln2g_ref, ln2b_ref,
                  w1_ref, b1_ref, w2_ref, b2_ref,
                  h_ref, skip_ref,
                  kp_ref, vp_ref, *,
                  T, D, attn_len, nhead, head_dim, write_off):
    """One (batch element, layer) per grid step.

    h_ref / skip_ref have constant block index along the layer axis, so they are
    VMEM-resident accumulators: h_ref carries the activations across the 9 layers,
    skip_ref accumulates the per-layer attention-sublayer outputs.
    """
    layer = pl.program_id(1)
    L = attn_len
    scale = 1.0 / math.sqrt(head_dim)

    @pl.when(layer == 0)
    def _():
        h_ref[...] = x_ref[...]
        # zero the padded K/V scratch once; pad regions are never written later,
        # so masked window reads always see finite zeros.
        kp_ref[...] = jnp.zeros_like(kp_ref)
        vp_ref[...] = jnp.zeros_like(vp_ref)

    h = h_ref[0]                                        # (T, D) f32

    # ---- LN1 + fused QKV projection (one (D, 3D) bf16 GEMM) ----
    mu = jnp.mean(h, axis=-1, keepdims=True)
    xc = h - mu
    var = jnp.mean(xc * xc, axis=-1, keepdims=True)
    xn = xc * jax.lax.rsqrt(var + EPS) * ln1g_ref[0] + ln1b_ref[0]
    qkv = jnp.dot(xn.astype(jnp.bfloat16), wqkv_ref[0],
                  preferred_element_type=jnp.float32) + bqkv_ref[0]
    q = qkv[:, :D]
    k = qkv[:, D:2 * D]
    v = qkv[:, 2 * D:]

    # relative-position term, head-major columns: col h*L + j = <q_h, er[j]>
    rel = jnp.dot(q.astype(jnp.bfloat16), er_ref[0],
                  preferred_element_type=jnp.float32)   # (T, nhead*L)

    # ---- write K/V into the zero-padded VMEM scratch (no HBM pad round trip) ----
    kp_ref[write_off:write_off + T, :] = k
    vp_ref[write_off:write_off + T, :] = v

    # effective (clamped) dilation for this layer: min(2**layer, T)
    d_eff = jnp.int32(min(1, T))
    for l in range(1, pl.num_programs(1)):
        d_eff = jnp.where(layer == l, jnp.int32(min(2 ** l, T)), d_eff)

    mask = mask_ref[0]                                  # (T, nhead*L) additive

    # ---- hoisted dilated-window K/V slabs, full-128-lane score products ----
    v_slabs = []
    s_parts = []                                        # s_parts[j][h] -> (T, 1)
    for j in range(L):
        off = write_off + (j - L // 2) * d_eff
        k_j = kp_ref[pl.ds(off, T), :]                  # (T, D), shared by both heads
        v_j = vp_ref[pl.ds(off, T), :]
        v_slabs.append(v_j)
        prod = q * k_j                                  # (T, D) full-lane VPU mul
        s_parts.append([
            jnp.sum(prod[:, hd * head_dim:(hd + 1) * head_dim],
                    axis=-1, keepdims=True)
            for hd in range(nhead)])

    # ---- packed per-head softmax over the L window slots ----
    w_heads = []
    for hd in range(nhead):
        s_h = jnp.concatenate([s_parts[j][hd] for j in range(L)], axis=-1)  # (T, L)
        sc = (s_h + rel[:, hd * L:(hd + 1) * L]) * scale + mask[:, hd * L:(hd + 1) * L]
        mx = jnp.max(sc, axis=-1, keepdims=True)
        ex = jnp.exp(sc - mx)
        w_heads.append(ex / jnp.sum(ex, axis=-1, keepdims=True))            # (T, L)

    # ---- AV accumulation with full-128-lane weight vregs ----
    out = jnp.zeros((T, D), jnp.float32)
    for j in range(L):
        w_full = jnp.concatenate(
            [jnp.broadcast_to(w_heads[hd][:, j:j + 1], (T, head_dim))
             for hd in range(nhead)], axis=-1)          # (T, D)
        out = out + w_full * v_slabs[j]

    # ---- merged out-projection: single (T,D)@(D,D) MXU matmul + bias ----
    proj = jnp.dot(out.astype(jnp.bfloat16), wo_ref[0],
                   preferred_element_type=jnp.float32) + bo_ref[0]

    # skip accumulation (resident in skip_ref across the layer axis)
    @pl.when(layer == 0)
    def _():
        skip_ref[0] = proj

    @pl.when(layer > 0)
    def _():
        skip_ref[0] = skip_ref[0] + proj

    x_attn = h + proj                                   # attention residual

    # ---- LN2 + FFN + residual (hidden never leaves VMEM) ----
    mu2 = jnp.mean(x_attn, axis=-1, keepdims=True)
    xc2 = x_attn - mu2
    var2 = jnp.mean(xc2 * xc2, axis=-1, keepdims=True)
    xn2 = xc2 * jax.lax.rsqrt(var2 + EPS) * ln2g_ref[0] + ln2b_ref[0]
    hh = jnp.dot(xn2.astype(jnp.bfloat16), w1_ref[0],
                 preferred_element_type=jnp.float32) + b1_ref[0]
    hh = jnp.maximum(hh, 0.0)
    y = jnp.dot(hh.astype(jnp.bfloat16), w2_ref[0],
                preferred_element_type=jnp.float32) + b2_ref[0]

    h_ref[0] = x_attn + y                               # carried to the next layer


def transformer_stack(x, sp):
    """Run all NLAYERS dilated-transformer layers in one pallas_call.

    x: (B, T, D) f32.  Returns (h_out, skip_sum), both (B, T, D) f32.
    """
    B, T, D = x.shape
    L = ATTN_LEN
    d_max = min(2 ** (NLAYERS - 1), T)      # clamped max dilation (exact: |off|>=T is fully masked)
    write_off = 2 * d_max
    P = T + 4 * d_max                       # padded K/V scratch length

    # per-layer additive masks, head-major lanes (constant-folded at compile time)
    masks = []
    for l in range(NLAYERS):
        d_eff = min(2 ** l, T)
        offs = (jnp.arange(L) - L // 2) * d_eff
        idx = jnp.arange(T)[:, None] + offs[None, :]
        m = jnp.where((idx >= 0) & (idx < T), 0.0, -1e30).astype(jnp.float32)
        masks.append(jnp.tile(m, (1, NHEAD)))            # (T, NHEAD*L), col h*L+j
    mask = jnp.stack(masks, axis=0)                      # (NLAYERS, T, NHEAD*L)

    kernel = functools.partial(_stack_kernel, T=T, D=D, attn_len=L, nhead=NHEAD,
                               head_dim=HEAD_DIM, write_off=write_off)

    wmap = lambda b, l: (l, 0, 0)   # per-layer stacked weights
    bmap = lambda b, l: (b, 0, 0)   # per-batch activations (constant over layers)

    h_out, skip_sum = pl.pallas_call(
        kernel,
        out_shape=(jax.ShapeDtypeStruct((B, T, D), jnp.float32),
                   jax.ShapeDtypeStruct((B, T, D), jnp.float32)),
        grid=(B, NLAYERS),
        in_specs=[
            pl.BlockSpec((1, T, D), bmap),                 # x (initial activations)
            pl.BlockSpec((1, T, NHEAD * L), wmap),         # additive mask
            pl.BlockSpec((1, 1, D), wmap),                 # ln1_g
            pl.BlockSpec((1, 1, D), wmap),                 # ln1_b
            pl.BlockSpec((1, D, 3 * D), wmap),             # wqkv (bf16)
            pl.BlockSpec((1, 1, 3 * D), wmap),             # bqkv
            pl.BlockSpec((1, D, NHEAD * L), wmap),         # er block-diag (bf16)
            pl.BlockSpec((1, D, D), wmap),                 # wo (bf16)
            pl.BlockSpec((1, 1, D), wmap),                 # bo
            pl.BlockSpec((1, 1, D), wmap),                 # ln2_g
            pl.BlockSpec((1, 1, D), wmap),                 # ln2_b
            pl.BlockSpec((1, D, D_HID), wmap),             # w1 (bf16)
            pl.BlockSpec((1, 1, D_HID), wmap),             # b1
            pl.BlockSpec((1, D_HID, D), wmap),             # w2 (bf16)
            pl.BlockSpec((1, 1, D), wmap),                 # b2
        ],
        out_specs=(pl.BlockSpec((1, T, D), bmap),          # final activations
                   pl.BlockSpec((1, T, D), bmap)),         # summed skips
        scratch_shapes=[pltpu.VMEM((P, D), jnp.float32),   # padded K
                        pltpu.VMEM((P, D), jnp.float32)],  # padded V
        compiler_params=pltpu.CompilerParams(
            dimension_semantics=("parallel", "arbitrary"),
            vmem_limit_bytes=64 * 1024 * 1024),
    )(x, mask, sp["ln1_g"], sp["ln1_b"], sp["wqkv"], sp["bqkv"], sp["er_blk"],
      sp["wo"], sp["bo"], sp["ln2_g"], sp["ln2_b"], sp["w1"], sp["b1"],
      sp["w2"], sp["b2"])
    return h_out, skip_sum


# ---------------- glue (conv frontend, pooling, output heads) ----------------
def conv2d_im2col(x, w, b, pad_h, use_pallas=False):
    """PyTorch-style Conv2d, stride 1, padding (pad_h, 0). x: (B,Cin,H,W)."""
    B, Cin, H, W = x.shape
    Cout, _, KH, KW = w.shape
    xp = jnp.pad(x, ((0, 0), (0, 0), (pad_h, pad_h), (0, 0)))
    Hout = H + 2 * pad_h - KH + 1
    Wout = W - KW + 1
    cols = []
    for kh in range(KH):
        for kw_ in range(KW):
            cols.append(xp[:, :, kh:kh + Hout, kw_:kw_ + Wout])
    cols = jnp.stack(cols, axis=2)                          # (B,Cin,KH*KW,Hout,Wout)
    cols = cols.transpose(0, 3, 4, 1, 2).reshape(B * Hout * Wout, Cin * KH * KW)
    wmat = w.reshape(Cout, Cin * KH * KW).T                 # (Cin*KH*KW, Cout)
    if use_pallas:
        y = pallas_linear(cols, wmat, b)                    # lane-dense Cout=128
    else:
        # Cout=32/64 is lane-sparse and tiny: leave these GEMMs to XLA.
        y = cols @ wmat + b[None, :]
    return y.reshape(B, Hout, Wout, Cout).transpose(0, 3, 1, 2)


def maxpool_w3_then_relu(x):
    """MaxPool2d(kernel=(1,3), stride=(1,3)) followed by relu."""
    B, C, H, W = x.shape
    Wn = W // 3
    x = jnp.max(x[..., :Wn * 3].reshape(B, C, H, Wn, 3), axis=-1)
    return jnp.maximum(x, 0.0)


def model_forward(x, params):
    # x: (B, time, freq) -> unsqueeze(1) -> NCHW
    h = x[:, None, :, :]
    h = conv2d_im2col(h, params["conv1_w"], params["conv1_b"], pad_h=2)
    h = maxpool_w3_then_relu(h)
    h = conv2d_im2col(h, params["conv2_w"], params["conv2_b"], pad_h=0)
    h = maxpool_w3_then_relu(h)
    h = conv2d_im2col(h, params["conv3_w"], params["conv3_b"], pad_h=1,
                      use_pallas=True)
    h = maxpool_w3_then_relu(h)
    # (B, dmodel, T, 1) -> transpose(1,3).squeeze(1) -> (B, T, dmodel)
    h = jnp.transpose(h, (0, 3, 2, 1))[:, 0]

    # fused 9-layer dilated transformer stack (single pallas_call)
    h, skip_sum = transformer_stack(h, params["stack"])

    B, T, D = h.shape
    # tiny output heads (N=2 / N=300) are lane-sparse -> leave to XLA
    x_out = jnp.maximum(h, 0.0).reshape(B * T, D)
    x_out = (x_out @ params["out_w"] + params["out_b"]).reshape(B, T, NTOKEN)

    t = jnp.maximum(skip_sum, 0.0)      # stack(...).sum(-1) then relu
    t = jnp.mean(t, axis=1)             # mean over time -> (B, D)
    t = t @ params["out_t_w"] + params["out_t_b"]   # (B, 300)
    return x_out, t


# ---------------- parameter construction / one-time prep ----------------
def init_params(key):
    keys = iter(jax.random.split(key, 128))

    def nrm(shape, scale=0.02):
        return scale * jax.random.normal(next(keys), shape, dtype=jnp.float32)

    params = {
        "conv1_w": nrm((32, 1, 5, 3)),
        "conv1_b": jnp.zeros((32,), jnp.float32),
        "conv2_w": nrm((64, 32, 1, 12)),
        "conv2_b": jnp.zeros((64,), jnp.float32),
        "conv3_w": nrm((DMODEL, 64, 3, 6)),
        "conv3_b": jnp.zeros((DMODEL,), jnp.float32),
        "out_w": nrm((DMODEL, NTOKEN)),
        "out_b": jnp.zeros((NTOKEN,), jnp.float32),
        "out_t_w": nrm((DMODEL, 300)),
        "out_t_b": jnp.zeros((300,), jnp.float32),
        "layers": [],
    }
    for _ in range(NLAYERS):
        layer = {
            "ln1_g": jnp.ones((DMODEL,), jnp.float32),
            "ln1_b": jnp.zeros((DMODEL,), jnp.float32),
            "ln2_g": jnp.ones((DMODEL,), jnp.float32),
            "ln2_b": jnp.zeros((DMODEL,), jnp.float32),
            "wq": nrm((DMODEL, DMODEL)), "bq": jnp.zeros((DMODEL,), jnp.float32),
            "wk": nrm((DMODEL, DMODEL)), "bk": jnp.zeros((DMODEL,), jnp.float32),
            "wv": nrm((DMODEL, DMODEL)), "bv": jnp.zeros((DMODEL,), jnp.float32),
            "wo": nrm((DMODEL, DMODEL)), "bo": jnp.zeros((DMODEL,), jnp.float32),
            "er": nrm((ATTN_LEN, HEAD_DIM)),
            "w1": nrm((DMODEL, D_HID)), "b1": jnp.zeros((D_HID,), jnp.float32),
            "w2": nrm((D_HID, DMODEL)), "b2": jnp.zeros((DMODEL,), jnp.float32),
        }
        params["layers"].append(layer)
    return params


def prepare_params(raw):
    """One-time prep: stack per-layer weights, fuse QKV, cast GEMM weights to bf16,
    and build the block-diagonal relative-embedding matrix (head-major columns)."""
    D, L = DMODEL, ATTN_LEN
    layers = raw["layers"]

    def stack(name):
        return jnp.stack([lp[name] for lp in layers], axis=0)

    wqkv = jnp.concatenate([stack("wq"), stack("wk"), stack("wv")], axis=-1)
    bqkv = jnp.concatenate([stack("bq"), stack("bk"), stack("bv")], axis=-1)

    er = stack("er")                                         # (NL, L, hd)
    er_t = jnp.transpose(er, (0, 2, 1))                      # (NL, hd, L)
    er_blk = jnp.zeros((NLAYERS, D, NHEAD * L), jnp.float32)
    for h in range(NHEAD):
        er_blk = er_blk.at[:, h * HEAD_DIM:(h + 1) * HEAD_DIM,
                           h * L:(h + 1) * L].set(er_t)

    prepped = {k: v for k, v in raw.items() if k != "layers"}
    prepped["stack"] = {
        "ln1_g": stack("ln1_g")[:, None, :],
        "ln1_b": stack("ln1_b")[:, None, :],
        "wqkv": wqkv.astype(jnp.bfloat16),
        "bqkv": bqkv[:, None, :],
        "er_blk": er_blk.astype(jnp.bfloat16),
        "wo": stack("wo").astype(jnp.bfloat16),
        "bo": stack("bo")[:, None, :],
        "ln2_g": stack("ln2_g")[:, None, :],
        "ln2_b": stack("ln2_b")[:, None, :],
        "w1": stack("w1").astype(jnp.bfloat16),
        "b1": stack("b1")[:, None, :],
        "w2": stack("w2").astype(jnp.bfloat16),
        "b2": stack("b2")[:, None, :],
    }
    return prepped


if __name__ == "__main__":
    key = jax.random.PRNGKey(0)
    pkey, xkey = jax.random.split(key)
    params = prepare_params(init_params(pkey))

    # (batch=2, time=16, freq=128): freq=128 reduces to 1 through the conv/pool
    # stack, exactly as the PyTorch squeeze(1) requires.
    x = jax.random.normal(xkey, (2, 16, 128), dtype=jnp.float32)

    fwd = jax.jit(model_forward)
    out_x, out_t = fwd(x, params)
    out_x = jax.block_until_ready(out_x)
    out_t = jax.block_until_ready(out_t)

    assert out_x.shape == (2, 16, NTOKEN), out_x.shape
    assert out_t.shape == (2, 300), out_t.shape
    assert jnp.all(jnp.isfinite(out_x)) and jnp.all(jnp.isfinite(out_t))
    print("KERNEL_OK")
</pallas_src>

<mosaic_0001>
module attributes {stable_mosaic.version = 11 : i64} {
  func.func @_linear_kernel(%arg0: i32, %arg1: memref<160x1152xf32, #tpu.memory_space<vmem>>, %arg2: memref<1152x128xbf16, #tpu.memory_space<vmem>>, %arg3: memref<1x128xf32, #tpu.memory_space<vmem>>, %arg4: memref<160x128xf32, #tpu.memory_space<vmem>>) attributes {dimension_semantics = [#tpu.dimension_semantics<parallel>], iteration_bounds = array<i64: 1>, scalar_prefetch = 0 : i64, scratch_operands = 0 : i64, tpu.core_type = #tpu.core_type<tc>, window_params = [{transform_indices = @transform_0, window_bounds = array<i64: 160, 1152>}, {pipeline_mode = #tpu.pipeline_mode<synchronous>, transform_indices = @transform_1, window_bounds = array<i64: 1152, 128>}, {pipeline_mode = #tpu.pipeline_mode<synchronous>, transform_indices = @transform_2, window_bounds = array<i64: 1, 128>}, {transform_indices = @transform_3, window_bounds = array<i64: 160, 128>}]} {
    %c0 = arith.constant 0 : index
    %c0_0 = arith.constant 0 : index
    %0 = vector.load %arg1[%c0, %c0_0] : memref<160x1152xf32, #tpu.memory_space<vmem>>, vector<160x1152xf32>
    %1 = arith.truncf %0 : vector<160x1152xf32> to vector<160x1152xbf16>
    %c0_1 = arith.constant 0 : index
    %c0_2 = arith.constant 0 : index
    %2 = vector.load %arg2[%c0_1, %c0_2] : memref<1152x128xbf16, #tpu.memory_space<vmem>>, vector<1152x128xbf16>
    %cst = arith.constant dense<0.000000e+00> : vector<160x128xf32>
    %3 = tpu.matmul %1, %2, %cst {dimension_numbers = #tpu.dot_dimension_numbers<[1], [0], [0], [1], [0, 0, 1, 1], [], []>} : vector<160x1152xbf16>, vector<1152x128xbf16>, vector<160x128xf32> -> vector<160x128xf32>
    %c0_3 = arith.constant 0 : index
    %c0_4 = arith.constant 0 : index
    %4 = vector.load %arg3[%c0_3, %c0_4] : memref<1x128xf32, #tpu.memory_space<vmem>>, vector<1x128xf32>
    %5 = vector.broadcast %4 : vector<1x128xf32> to vector<160x128xf32>
    %6 = arith.addf %3, %5 : vector<160x128xf32>
    %c0_5 = arith.constant 0 : index
    %c0_6 = arith.constant 0 : index
    %7 = vector.load %arg4[%c0_5, %c0_6] : memref<160x128xf32, #tpu.memory_space<vmem>>, vector<160x128xf32>
    tpu.vector_store %arg4[%c0_5, %c0_6], %6 {strides = array<i32>} : memref<160x128xf32, #tpu.memory_space<vmem>>, vector<160x128xf32>,
    return
  }
  func.func @transform_0(%arg0: i32) -> (i32, i32) {
    %c0_i32 = arith.constant 0 : i32
    %c0_i32_0 = arith.constant 0 : i32
    return %arg0, %c0_i32 : i32, i32
  }
  func.func @transform_1(%arg0: i32) -> (i32, i32) {
    %c0_i32 = arith.constant 0 : i32
    %c0_i32_0 = arith.constant 0 : i32
    %c0_i32_1 = arith.constant 0 : i32
    return %c0_i32, %c0_i32_0 : i32, i32
  }
  func.func @transform_2(%arg0: i32) -> (i32, i32) {
    %c0_i32 = arith.constant 0 : i32
    %c0_i32_0 = arith.constant 0 : i32
    %c0_i32_1 = arith.constant 0 : i32
    return %c0_i32, %c0_i32_0 : i32, i32
  }
  func.func @transform_3(%arg0: i32) -> (i32, i32) {
    %c0_i32 = arith.constant 0 : i32
    %c0_i32_0 = arith.constant 0 : i32
    return %arg0, %c0_i32 : i32, i32
  }
}

module attributes {stable_mosaic.version = 11 : i64} {
  func.func @_stack_kernel(%arg0: i32, %arg1: i32, %arg2: memref<1x16x128xf32, #tpu.memory_space<vmem>>, %arg3: memref<1x16x10xf32, #tpu.memory_space<vmem>>, %arg4: memref<1x1x128xf32, #tpu.memory_space<vmem>>, %arg5: memref<1x1x128xf32, #tpu.memory_space<vmem>>, %arg6: memref<1x128x384xbf16, #tpu.memory_space<vmem>>, %arg7: memref<1x1x384xf32, #tpu.memory_space<vmem>>, %arg8: memref<1x128x10xbf16, #tpu.memory_space<vmem>>, %arg9: memref<1x128x128xbf16, #tpu.memory_space<vmem>>, %arg10: memref<1x1x128xf32, #tpu.memory_space<vmem>>, %arg11: memref<1x1x128xf32, #tpu.memory_space<vmem>>, %arg12: memref<1x1x128xf32, #tpu.memory_space<vmem>>, %arg13: memref<1x128x512xbf16, #tpu.memory_space<vmem>>, %arg14: memref<1x1x512xf32, #tpu.memory_space<vmem>>, %arg15: memref<1x512x128xbf16, #tpu.memory_space<vmem>>, %arg16: memref<1x1x128xf32, #tpu.memory_space<vmem>>, %arg17: memref<1x16x128xf32, #tpu.memory_space<vmem>>, %arg18: memref<1x16x128xf32, #tpu.memory_space<vmem>>, %arg19: memref<80x128xf32, #tpu.memory_space<vmem>>, %arg20: memref<80x128xf32, #tpu.memory_space<vmem>>) attributes {dimension_semantics = [#tpu.dimension_semantics<parallel>, #tpu.dimension_semantics<arbitrary>], iteration_bounds = array<i64: 2, 9>, scalar_prefetch = 0 : i64, scratch_operands = 2 : i64, tpu.core_type = #tpu.core_type<tc>, window_params = [{transform_indices = @transform_0, window_bounds = array<i64: 1, 16, 128>}, {transform_indices = @transform_1, window_bounds = array<i64: 1, 16, 10>}, {transform_indices = @transform_2, window_bounds = array<i64: 1, 1, 128>}, {transform_indices = @transform_3, window_bounds = array<i64: 1, 1, 128>}, {transform_indices = @transform_4, window_bounds = array<i64: 1, 128, 384>}, {transform_indices = @transform_5, window_bounds = array<i64: 1, 1, 384>}, {transform_indices = @transform_6, window_bounds = array<i64: 1, 128, 10>}, {transform_indices = @transform_7, window_bounds = array<i64: 1, 128, 128>}, {transform_indices = @transform_8, window_bounds = array<i64: 1, 1, 128>}, {transform_indices = @transform_9, window_bounds = array<i64: 1, 1, 128>}, {transform_indices = @transform_10, window_bounds = array<i64: 1, 1, 128>}, {transform_indices = @transform_11, window_bounds = array<i64: 1, 128, 512>}, {transform_indices = @transform_12, window_bounds = array<i64: 1, 1, 512>}, {transform_indices = @transform_13, window_bounds = array<i64: 1, 512, 128>}, {transform_indices = @transform_14, window_bounds = array<i64: 1, 1, 128>}, {transform_indices = @transform_15, window_bounds = array<i64: 1, 16, 128>}, {transform_indices = @transform_16, window_bounds = array<i64: 1, 16, 128>}]} {
    %c0_i32 = arith.constant 0 : i32
    %0 = arith.cmpi eq, %arg1, %c0_i32 : i32
    %1 = arith.extui %0 : i1 to i32
    %c0_i32_0 = arith.constant 0 : i32
    %2 = arith.cmpi ne, %1, %c0_i32_0 : i32
    scf.if %2 {
      %c0_112 = arith.constant 0 : index
      %c0_113 = arith.constant 0 : index
      %c0_114 = arith.constant 0 : index
      %268 = vector.load %arg2[%c0_112, %c0_113, %c0_114] : memref<1x16x128xf32, #tpu.memory_space<vmem>>, vector<1x16x128xf32>
      %c0_115 = arith.constant 0 : index
      %c0_116 = arith.constant 0 : index
      %c0_117 = arith.constant 0 : index
      %269 = vector.load %arg17[%c0_115, %c0_116, %c0_117] : memref<1x16x128xf32, #tpu.memory_space<vmem>>, vector<1x16x128xf32>
      tpu.vector_store %arg17[%c0_115, %c0_116, %c0_117], %268 {strides = array<i32>} : memref<1x16x128xf32, #tpu.memory_space<vmem>>, vector<1x16x128xf32>,
      %cst_118 = arith.constant 0.000000e+00 : f32
      %270 = vector.broadcast %cst_118 : f32 to vector<80x128xf32>
      %c0_119 = arith.constant 0 : index
      %c0_120 = arith.constant 0 : index
      %271 = vector.load %arg19[%c0_119, %c0_120] : memref<80x128xf32, #tpu.memory_space<vmem>>, vector<80x128xf32>
      tpu.vector_store %arg19[%c0_119, %c0_120], %270 {strides = array<i32>} : memref<80x128xf32, #tpu.memory_space<vmem>>, vector<80x128xf32>,
      %cst_121 = arith.constant 0.000000e+00 : f32
      %272 = vector.broadcast %cst_121 : f32 to vector<80x128xf32>
      %c0_122 = arith.constant 0 : index
      %c0_123 = arith.constant 0 : index
      %273 = vector.load %arg20[%c0_122, %c0_123] : memref<80x128xf32, #tpu.memory_space<vmem>>, vector<80x128xf32>
      tpu.vector_store %arg20[%c0_122, %c0_123], %272 {strides = array<i32>} : memref<80x128xf32, #tpu.memory_space<vmem>>, vector<80x128xf32>,
    } else {
    }
    %c0 = arith.constant 0 : index
    %c0_1 = arith.constant 0 : index
    %c0_2 = arith.constant 0 : index
    %3 = vector.load %arg17[%c0, %c0_1, %c0_2] : memref<1x16x128xf32, #tpu.memory_space<vmem>>, vector<1x16x128xf32>
    %4 = vector.shape_cast %3 : vector<1x16x128xf32> to vector<16x128xf32>
    %cst = arith.constant dense<0.000000e+00> : vector<16xf32>
    %5 = vector.multi_reduction <add>, %4, %cst [1] : vector<16x128xf32> to vector<16xf32>
    %6 = vector.shape_cast %5 : vector<16xf32> to vector<16x1xf32>
    %cst_3 = arith.constant 1.280000e+02 : f32
    %7 = vector.broadcast %cst_3 : f32 to vector<16x1xf32>
    %8 = arith.divf %6, %7 : vector<16x1xf32>
    %9 = vector.broadcast %8 : vector<16x1xf32> to vector<16x128xf32>
    %10 = arith.subf %4, %9 : vector<16x128xf32>
    %11 = arith.mulf %10, %10 : vector<16x128xf32>
    %cst_4 = arith.constant dense<0.000000e+00> : vector<16xf32>
    %12 = vector.multi_reduction <add>, %11, %cst_4 [1] : vector<16x128xf32> to vector<16xf32>
    %13 = vector.shape_cast %12 : vector<16xf32> to vector<16x1xf32>
    %cst_5 = arith.constant 1.280000e+02 : f32
    %14 = vector.broadcast %cst_5 : f32 to vector<16x1xf32>
    %15 = arith.divf %13, %14 : vector<16x1xf32>
    %cst_6 = arith.constant 9.99999974E-6 : f32
    %16 = vector.broadcast %cst_6 : f32 to vector<16x1xf32>
    %17 = arith.addf %15, %16 : vector<16x1xf32>
    %18 = math.rsqrt %17 : vector<16x1xf32>
    %19 = vector.broadcast %18 : vector<16x1xf32> to vector<16x128xf32>
    %20 = arith.mulf %10, %19 : vector<16x128xf32>
    %c0_7 = arith.constant 0 : index
    %c0_8 = arith.constant 0 : index
    %c0_9 = arith.constant 0 : index
    %21 = vector.load %arg4[%c0_7, %c0_8, %c0_9] : memref<1x1x128xf32, #tpu.memory_space<vmem>>, vector<1x1x128xf32>
    %22 = vector.shape_cast %21 : vector<1x1x128xf32> to vector<1x128xf32>
    %23 = vector.broadcast %22 : vector<1x128xf32> to vector<16x128xf32>
    %24 = arith.mulf %20, %23 : vector<16x128xf32>
    %c0_10 = arith.constant 0 : index
    %c0_11 = arith.constant 0 : index
    %c0_12 = arith.constant 0 : index
    %25 = vector.load %arg5[%c0_10, %c0_11, %c0_12] : memref<1x1x128xf32, #tpu.memory_space<vmem>>, vector<1x1x128xf32>
    %26 = vector.shape_cast %25 : vector<1x1x128xf32> to vector<1x128xf32>
    %27 = vector.broadcast %26 : vector<1x128xf32> to vector<16x128xf32>
    %28 = arith.addf %24, %27 : vector<16x128xf32>
    %29 = arith.truncf %28 : vector<16x128xf32> to vector<16x128xbf16>
    %c0_13 = arith.constant 0 : index
    %c0_14 = arith.constant 0 : index
    %c0_15 = arith.constant 0 : index
    %30 = vector.load %arg6[%c0_13, %c0_14, %c0_15] : memref<1x128x384xbf16, #tpu.memory_space<vmem>>, vector<1x128x384xbf16>
    %31 = vector.shape_cast %30 : vector<1x128x384xbf16> to vector<128x384xbf16>
    %cst_16 = arith.constant dense<0.000000e+00> : vector<16x384xf32>
    %32 = tpu.matmul %29, %31, %cst_16 {dimension_numbers = #tpu.dot_dimension_numbers<[1], [0], [0], [1], [0, 0, 1, 1], [], []>} : vector<16x128xbf16>, vector<128x384xbf16>, vector<16x384xf32> -> vector<16x384xf32>
    %c0_17 = arith.constant 0 : index
    %c0_18 = arith.constant 0 : index
    %c0_19 = arith.constant 0 : index
    %33 = vector.load %arg7[%c0_17, %c0_18, %c0_19] : memref<1x1x384xf32, #tpu.memory_space<vmem>>, vector<1x1x384xf32>
    %34 = vector.shape_cast %33 : vector<1x1x384xf32> to vector<1x384xf32>
    %35 = vector.broadcast %34 : vector<1x384xf32> to vector<16x384xf32>
    %36 = arith.addf %32, %35 : vector<16x384xf32>
    %37 = vector.extract_strided_slice %36 {offsets = [0, 0], sizes = [16, 128], strides = [1, 1]} : vector<16x384xf32> to vector<16x128xf32>
    %38 = vector.extract_strided_slice %36 {offsets = [0, 128], sizes = [16, 128], strides = [1, 1]} : vector<16x384xf32> to vector<16x128xf32>
    %39 = vector.extract_strided_slice %36 {offsets = [0, 256], sizes = [16, 128], strides = [1, 1]} : vector<16x384xf32> to vector<16x128xf32>
    %40 = arith.truncf %37 : vector<16x128xf32> to vector<16x128xbf16>
    %c0_20 = arith.constant 0 : index
    %c0_21 = arith.constant 0 : index
    %c0_22 = arith.constant 0 : index
    %41 = vector.load %arg8[%c0_20, %c0_21, %c0_22] : memref<1x128x10xbf16, #tpu.memory_space<vmem>>, vector<1x128x10xbf16>
    %42 = vector.shape_cast %41 : vector<1x128x10xbf16> to vector<128x10xbf16>
    %cst_23 = arith.constant dense<0.000000e+00> : vector<16x10xf32>
    %43 = tpu.matmul %40, %42, %cst_23 {dimension_numbers = #tpu.dot_dimension_numbers<[1], [0], [0], [1], [0, 0, 1, 1], [], []>} : vector<16x128xbf16>, vector<128x10xbf16>, vector<16x10xf32> -> vector<16x10xf32>
    %c32 = arith.constant 32 : index
    %c0_24 = arith.constant 0 : index
    %44 = vector.load %arg19[%c32, %c0_24] : memref<80x128xf32, #tpu.memory_space<vmem>>, vector<16x128xf32>
    tpu.vector_store %arg19[%c32, %c0_24], %38 {strides = array<i32>} : memref<80x128xf32, #tpu.memory_space<vmem>>, vector<16x128xf32>,
    %c32_25 = arith.constant 32 : index
    %c0_26 = arith.constant 0 : index
    %45 = vector.load %arg20[%c32_25, %c0_26] : memref<80x128xf32, #tpu.memory_space<vmem>>, vector<16x128xf32>
    tpu.vector_store %arg20[%c32_25, %c0_26], %39 {strides = array<i32>} : memref<80x128xf32, #tpu.memory_space<vmem>>, vector<16x128xf32>,
    %c1_i32 = arith.constant 1 : i32
    %46 = arith.cmpi eq, %arg1, %c1_i32 : i32
    %c2_i32 = arith.constant 2 : i32
    %c1_i32_27 = arith.constant 1 : i32
    %47 = arith.select %46, %c2_i32, %c1_i32_27 : i32
    %c2_i32_28 = arith.constant 2 : i32
    %48 = arith.cmpi eq, %arg1, %c2_i32_28 : i32
    %c4_i32 = arith.constant 4 : i32
    %49 = arith.select %48, %c4_i32, %47 : i32
    %c3_i32 = arith.constant 3 : i32
    %50 = arith.cmpi eq, %arg1, %c3_i32 : i32
    %c8_i32 = arith.constant 8 : i32
    %51 = arith.select %50, %c8_i32, %49 : i32
    %c4_i32_29 = arith.constant 4 : i32
    %52 = arith.cmpi eq, %arg1, %c4_i32_29 : i32
    %c16_i32 = arith.constant 16 : i32
    %53 = arith.select %52, %c16_i32, %51 : i32
    %c5_i32 = arith.constant 5 : i32
    %54 = arith.cmpi eq, %arg1, %c5_i32 : i32
    %c16_i32_30 = arith.constant 16 : i32
    %55 = arith.select %54, %c16_i32_30, %53 : i32
    %c6_i32 = arith.constant 6 : i32
    %56 = arith.cmpi eq, %arg1, %c6_i32 : i32
    %c16_i32_31 = arith.constant 16 : i32
    %57 = arith.select %56, %c16_i32_31, %55 : i32
    %c7_i32 = arith.constant 7 : i32
    %58 = arith.cmpi eq, %arg1, %c7_i32 : i32
    %c16_i32_32 = arith.constant 16 : i32
    %59 = arith.select %58, %c16_i32_32, %57 : i32
    %c8_i32_33 = arith.constant 8 : i32
    %60 = arith.cmpi eq, %arg1, %c8_i32_33 : i32
    %c16_i32_34 = arith.constant 16 : i32
    %61 = arith.select %60, %c16_i32_34, %59 : i32
    %c0_35 = arith.constant 0 : index
    %c0_36 = arith.constant 0 : index
    %c0_37 = arith.constant 0 : index
    %62 = vector.load %arg3[%c0_35, %c0_36, %c0_37] : memref<1x16x10xf32, #tpu.memory_space<vmem>>, vector<1x16x10xf32>
    %63 = vector.shape_cast %62 : vector<1x16x10xf32> to vector<16x10xf32>
    %c-2_i32 = arith.constant -2 : i32
    %64 = arith.muli %c-2_i32, %61 : i32
    %c32_i32 = arith.constant 32 : i32
    %65 = arith.addi %c32_i32, %64 : i32
    %66 = arith.index_cast %65 : i32 to index
    %c0_38 = arith.constant 0 : index
    %67 = vector.load %arg19[%66, %c0_38] : memref<80x128xf32, #tpu.memory_space<vmem>>, vector<16x128xf32>
    %68 = arith.index_cast %65 : i32 to index
    %c0_39 = arith.constant 0 : index
    %69 = vector.load %arg20[%68, %c0_39] : memref<80x128xf32, #tpu.memory_space<vmem>>, vector<16x128xf32>
    %70 = arith.mulf %37, %67 : vector<16x128xf32>
    %71 = vector.extract_strided_slice %70 {offsets = [0, 0], sizes = [16, 64], strides = [1, 1]} : vector<16x128xf32> to vector<16x64xf32>
    %cst_40 = arith.constant dense<0.000000e+00> : vector<16xf32>
    %72 = vector.multi_reduction <add>, %71, %cst_40 [1] : vector<16x64xf32> to vector<16xf32>
    %73 = vector.shape_cast %72 : vector<16xf32> to vector<16x1xf32>
    %74 = vector.extract_strided_slice %70 {offsets = [0, 64], sizes = [16, 64], strides = [1, 1]} : vector<16x128xf32> to vector<16x64xf32>
    %cst_41 = arith.constant dense<0.000000e+00> : vector<16xf32>
    %75 = vector.multi_reduction <add>, %74, %cst_41 [1] : vector<16x64xf32> to vector<16xf32>
    %76 = vector.shape_cast %75 : vector<16xf32> to vector<16x1xf32>
    %c-1_i32 = arith.constant -1 : i32
    %77 = arith.muli %c-1_i32, %61 : i32
    %c32_i32_42 = arith.constant 32 : i32
    %78 = arith.addi %c32_i32_42, %77 : i32
    %79 = arith.index_cast %78 : i32 to index
    %c0_43 = arith.constant 0 : index
    %80 = vector.load %arg19[%79, %c0_43] : memref<80x128xf32, #tpu.memory_space<vmem>>, vector<16x128xf32>
    %81 = arith.index_cast %78 : i32 to index
    %c0_44 = arith.constant 0 : index
    %82 = vector.load %arg20[%81, %c0_44] : memref<80x128xf32, #tpu.memory_space<vmem>>, vector<16x128xf32>
    %83 = arith.mulf %37, %80 : vector<16x128xf32>
    %84 = vector.extract_strided_slice %83 {offsets = [0, 0], sizes = [16, 64], strides = [1, 1]} : vector<16x128xf32> to vector<16x64xf32>
    %cst_45 = arith.constant dense<0.000000e+00> : vector<16xf32>
    %85 = vector.multi_reduction <add>, %84, %cst_45 [1] : vector<16x64xf32> to vector<16xf32>
    %86 = vector.shape_cast %85 : vector<16xf32> to vector<16x1xf32>
    %87 = vector.extract_strided_slice %83 {offsets = [0, 64], sizes = [16, 64], strides = [1, 1]} : vector<16x128xf32> to vector<16x64xf32>
    %cst_46 = arith.constant dense<0.000000e+00> : vector<16xf32>
    %88 = vector.multi_reduction <add>, %87, %cst_46 [1] : vector<16x64xf32> to vector<16xf32>
    %89 = vector.shape_cast %88 : vector<16xf32> to vector<16x1xf32>
    %c0_i32_47 = arith.constant 0 : i32
    %90 = arith.muli %c0_i32_47, %61 : i32
    %c32_i32_48 = arith.constant 32 : i32
    %91 = arith.addi %c32_i32_48, %90 : i32
    %92 = arith.index_cast %91 : i32 to index
    %c0_49 = arith.constant 0 : index
    %93 = vector.load %arg19[%92, %c0_49] : memref<80x128xf32, #tpu.memory_space<vmem>>, vector<16x128xf32>
    %94 = arith.index_cast %91 : i32 to index
    %c0_50 = arith.constant 0 : index
    %95 = vector.load %arg20[%94, %c0_50] : memref<80x128xf32, #tpu.memory_space<vmem>>, vector<16x128xf32>
    %96 = arith.mulf %37, %93 : vector<16x128xf32>
    %97 = vector.extract_strided_slice %96 {offsets = [0, 0], sizes = [16, 64], strides = [1, 1]} : vector<16x128xf32> to vector<16x64xf32>
    %cst_51 = arith.constant dense<0.000000e+00> : vector<16xf32>
    %98 = vector.multi_reduction <add>, %97, %cst_51 [1] : vector<16x64xf32> to vector<16xf32>
    %99 = vector.shape_cast %98 : vector<16xf32> to vector<16x1xf32>
    %100 = vector.extract_strided_slice %96 {offsets = [0, 64], sizes = [16, 64], strides = [1, 1]} : vector<16x128xf32> to vector<16x64xf32>
    %cst_52 = arith.constant dense<0.000000e+00> : vector<16xf32>
    %101 = vector.multi_reduction <add>, %100, %cst_52 [1] : vector<16x64xf32> to vector<16xf32>
    %102 = vector.shape_cast %101 : vector<16xf32> to vector<16x1xf32>
    %c1_i32_53 = arith.constant 1 : i32
    %103 = arith.muli %c1_i32_53, %61 : i32
    %c32_i32_54 = arith.constant 32 : i32
    %104 = arith.addi %c32_i32_54, %103 : i32
    %105 = arith.index_cast %104 : i32 to index
    %c0_55 = arith.constant 0 : index
    %106 = vector.load %arg19[%105, %c0_55] : memref<80x128xf32, #tpu.memory_space<vmem>>, vector<16x128xf32>
    %107 = arith.index_cast %104 : i32 to index
    %c0_56 = arith.constant 0 : index
    %108 = vector.load %arg20[%107, %c0_56] : memref<80x128xf32, #tpu.memory_space<vmem>>, vector<16x128xf32>
    %109 = arith.mulf %37, %106 : vector<16x128xf32>
    %110 = vector.extract_strided_slice %109 {offsets = [0, 0], sizes = [16, 64], strides = [1, 1]} : vector<16x128xf32> to vector<16x64xf32>
    %cst_57 = arith.constant dense<0.000000e+00> : vector<16xf32>
    %111 = vector.multi_reduction <add>, %110, %cst_57 [1] : vector<16x64xf32> to vector<16xf32>
    %112 = vector.shape_cast %111 : vector<16xf32> to vector<16x1xf32>
    %113 = vector.extract_strided_slice %109 {offsets = [0, 64], sizes = [16, 64], strides = [1, 1]} : vector<16x128xf32> to vector<16x64xf32>
    %cst_58 = arith.constant dense<0.000000e+00> : vector<16xf32>
    %114 = vector.multi_reduction <add>, %113, %cst_58 [1] : vector<16x64xf32> to vector<16xf32>
    %115 = vector.shape_cast %114 : vector<16xf32> to vector<16x1xf32>
    %c2_i32_59 = arith.constant 2 : i32
    %116 = arith.muli %c2_i32_59, %61 : i32
    %c32_i32_60 = arith.constant 32 : i32
    %117 = arith.addi %c32_i32_60, %116 : i32
    %118 = arith.index_cast %117 : i32 to index
    %c0_61 = arith.constant 0 : index
    %119 = vector.load %arg19[%118, %c0_61] : memref<80x128xf32, #tpu.memory_space<vmem>>, vector<16x128xf32>
    %120 = arith.index_cast %117 : i32 to index
    %c0_62 = arith.constant 0 : index
    %121 = vector.load %arg20[%120, %c0_62] : memref<80x128xf32, #tpu.memory_space<vmem>>, vector<16x128xf32>
    %122 = arith.mulf %37, %119 : vector<16x128xf32>
    %123 = vector.extract_strided_slice %122 {offsets = [0, 0], sizes = [16, 64], strides = [1, 1]} : vector<16x128xf32> to vector<16x64xf32>
    %cst_63 = arith.constant dense<0.000000e+00> : vector<16xf32>
    %124 = vector.multi_reduction <add>, %123, %cst_63 [1] : vector<16x64xf32> to vector<16xf32>
    %125 = vector.shape_cast %124 : vector<16xf32> to vector<16x1xf32>
    %126 = vector.extract_strided_slice %122 {offsets = [0, 64], sizes = [16, 64], strides = [1, 1]} : vector<16x128xf32> to vector<16x64xf32>
    %cst_64 = arith.constant dense<0.000000e+00> : vector<16xf32>
    %127 = vector.multi_reduction <add>, %126, %cst_64 [1] : vector<16x64xf32> to vector<16xf32>
    %128 = vector.shape_cast %127 : vector<16xf32> to vector<16x1xf32>
    %129 = tpu.concatenate %73, %86, %99, %112, %125 in 1 : vector<16x1xf32>, vector<16x1xf32>, vector<16x1xf32>, vector<16x1xf32>, vector<16x1xf32> -> vector<16x5xf32>
    %130 = vector.extract_strided_slice %43 {offsets = [0, 0], sizes = [16, 5], strides = [1, 1]} : vector<16x10xf32> to vector<16x5xf32>
    %131 = arith.addf %129, %130 : vector<16x5xf32>
    %cst_65 = arith.constant 1.250000e-01 : f32
    %132 = vector.broadcast %cst_65 : f32 to vector<16x5xf32>
    %133 = arith.mulf %131, %132 : vector<16x5xf32>
    %134 = vector.extract_strided_slice %63 {offsets = [0, 0], sizes = [16, 5], strides = [1, 1]} : vector<16x10xf32> to vector<16x5xf32>
    %135 = arith.addf %133, %134 : vector<16x5xf32>
    %cst_66 = arith.constant dense<0xFF800000> : vector<16xf32>
    %136 = vector.multi_reduction <maximumf>, %135, %cst_66 [1] : vector<16x5xf32> to vector<16xf32>
    %137 = vector.shape_cast %136 : vector<16xf32> to vector<16x1xf32>
    %138 = vector.broadcast %137 : vector<16x1xf32> to vector<16x5xf32>
    %139 = arith.subf %135, %138 : vector<16x5xf32>
    %140 = math.exp %139 : vector<16x5xf32>
    %cst_67 = arith.constant dense<0.000000e+00> : vector<16xf32>
    %141 = vector.multi_reduction <add>, %140, %cst_67 [1] : vector<16x5xf32> to vector<16xf32>
    %142 = vector.shape_cast %141 : vector<16xf32> to vector<16x1xf32>
    %143 = vector.broadcast %142 : vector<16x1xf32> to vector<16x5xf32>
    %144 = arith.divf %140, %143 : vector<16x5xf32>
    %145 = tpu.concatenate %76, %89, %102, %115, %128 in 1 : vector<16x1xf32>, vector<16x1xf32>, vector<16x1xf32>, vector<16x1xf32>, vector<16x1xf32> -> vector<16x5xf32>
    %146 = vector.extract_strided_slice %43 {offsets = [0, 5], sizes = [16, 5], strides = [1, 1]} : vector<16x10xf32> to vector<16x5xf32>
    %147 = arith.addf %145, %146 : vector<16x5xf32>
    %cst_68 = arith.constant 1.250000e-01 : f32
    %148 = vector.broadcast %cst_68 : f32 to vector<16x5xf32>
    %149 = arith.mulf %147, %148 : vector<16x5xf32>
    %150 = vector.extract_strided_slice %63 {offsets = [0, 5], sizes = [16, 5], strides = [1, 1]} : vector<16x10xf32> to vector<16x5xf32>
    %151 = arith.addf %149, %150 : vector<16x5xf32>
    %cst_69 = arith.constant dense<0xFF800000> : vector<16xf32>
    %152 = vector.multi_reduction <maximumf>, %151, %cst_69 [1] : vector<16x5xf32> to vector<16xf32>
    %153 = vector.shape_cast %152 : vector<16xf32> to vector<16x1xf32>
    %154 = vector.broadcast %153 : vector<16x1xf32> to vector<16x5xf32>
    %155 = arith.subf %151, %154 : vector<16x5xf32>
    %156 = math.exp %155 : vector<16x5xf32>
    %cst_70 = arith.constant dense<0.000000e+00> : vector<16xf32>
    %157 = vector.multi_reduction <add>, %156, %cst_70 [1] : vector<16x5xf32> to vector<16xf32>
    %158 = vector.shape_cast %157 : vector<16xf32> to vector<16x1xf32>
    %159 = vector.broadcast %158 : vector<16x1xf32> to vector<16x5xf32>
    %160 = arith.divf %156, %159 : vector<16x5xf32>
    %cst_71 = arith.constant 0.000000e+00 : f32
    %161 = vector.broadcast %cst_71 : f32 to vector<16x128xf32>
    %162 = vector.extract_strided_slice %144 {offsets = [0, 0], sizes = [16, 1], strides = [1, 1]} : vector<16x5xf32> to vector<16x1xf32>
    %163 = vector.shape_cast %162 : vector<16x1xf32> to vector<16x1xf32>
    %164 = vector.broadcast %163 : vector<16x1xf32> to vector<16x64xf32>
    %165 = vector.extract_strided_slice %160 {offsets = [0, 0], sizes = [16, 1], strides = [1, 1]} : vector<16x5xf32> to vector<16x1xf32>
    %166 = vector.shape_cast %165 : vector<16x1xf32> to vector<16x1xf32>
    %167 = vector.broadcast %166 : vector<16x1xf32> to vector<16x64xf32>
    %168 = tpu.concatenate %164, %167 in 1 : vector<16x64xf32>, vector<16x64xf32> -> vector<16x128xf32>
    %169 = arith.mulf %168, %69 : vector<16x128xf32>
    %170 = arith.addf %161, %169 : vector<16x128xf32>
    %171 = vector.extract_strided_slice %144 {offsets = [0, 1], sizes = [16, 1], strides = [1, 1]} : vector<16x5xf32> to vector<16x1xf32>
    %172 = vector.shape_cast %171 : vector<16x1xf32> to vector<16x1xf32>
    %173 = vector.broadcast %172 : vector<16x1xf32> to vector<16x64xf32>
    %174 = vector.extract_strided_slice %160 {offsets = [0, 1], sizes = [16, 1], strides = [1, 1]} : vector<16x5xf32> to vector<16x1xf32>
    %175 = vector.shape_cast %174 : vector<16x1xf32> to vector<16x1xf32>
    %176 = vector.broadcast %175 : vector<16x1xf32> to vector<16x64xf32>
    %177 = tpu.concatenate %173, %176 in 1 : vector<16x64xf32>, vector<16x64xf32> -> vector<16x128xf32>
    %178 = arith.mulf %177, %82 : vector<16x128xf32>
    %179 = arith.addf %170, %178 : vector<16x128xf32>
    %180 = vector.extract_strided_slice %144 {offsets = [0, 2], sizes = [16, 1], strides = [1, 1]} : vector<16x5xf32> to vector<16x1xf32>
    %181 = vector.shape_cast %180 : vector<16x1xf32> to vector<16x1xf32>
    %182 = vector.broadcast %181 : vector<16x1xf32> to vector<16x64xf32>
    %183 = vector.extract_strided_slice %160 {offsets = [0, 2], sizes = [16, 1], strides = [1, 1]} : vector<16x5xf32> to vector<16x1xf32>
    %184 = vector.shape_cast %183 : vector<16x1xf32> to vector<16x1xf32>
    %185 = vector.broadcast %184 : vector<16x1xf32> to vector<16x64xf32>
    %186 = tpu.concatenate %182, %185 in 1 : vector<16x64xf32>, vector<16x64xf32> -> vector<16x128xf32>
    %187 = arith.mulf %186, %95 : vector<16x128xf32>
    %188 = arith.addf %179, %187 : vector<16x128xf32>
    %189 = vector.extract_strided_slice %144 {offsets = [0, 3], sizes = [16, 1], strides = [1, 1]} : vector<16x5xf32> to vector<16x1xf32>
    %190 = vector.shape_cast %189 : vector<16x1xf32> to vector<16x1xf32>
    %191 = vector.broadcast %190 : vector<16x1xf32> to vector<16x64xf32>
    %192 = vector.extract_strided_slice %160 {offsets = [0, 3], sizes = [16, 1], strides = [1, 1]} : vector<16x5xf32> to vector<16x1xf32>
    %193 = vector.shape_cast %192 : vector<16x1xf32> to vector<16x1xf32>
    %194 = vector.broadcast %193 : vector<16x1xf32> to vector<16x64xf32>
    %195 = tpu.concatenate %191, %194 in 1 : vector<16x64xf32>, vector<16x64xf32> -> vector<16x128xf32>
    %196 = arith.mulf %195, %108 : vector<16x128xf32>
    %197 = arith.addf %188, %196 : vector<16x128xf32>
    %198 = vector.extract_strided_slice %144 {offsets = [0, 4], sizes = [16, 1], strides = [1, 1]} : vector<16x5xf32> to vector<16x1xf32>
    %199 = vector.shape_cast %198 : vector<16x1xf32> to vector<16x1xf32>
    %200 = vector.broadcast %199 : vector<16x1xf32> to vector<16x64xf32>
    %201 = vector.extract_strided_slice %160 {offsets = [0, 4], sizes = [16, 1], strides = [1, 1]} : vector<16x5xf32> to vector<16x1xf32>
    %202 = vector.shape_cast %201 : vector<16x1xf32> to vector<16x1xf32>
    %203 = vector.broadcast %202 : vector<16x1xf32> to vector<16x64xf32>
    %204 = tpu.concatenate %200, %203 in 1 : vector<16x64xf32>, vector<16x64xf32> -> vector<16x128xf32>
    %205 = arith.mulf %204, %121 : vector<16x128xf32>
    %206 = arith.addf %197, %205 : vector<16x128xf32>
    %207 = arith.truncf %206 : vector<16x128xf32> to vector<16x128xbf16>
    %c0_72 = arith.constant 0 : index
    %c0_73 = arith.constant 0 : index
    %c0_74 = arith.constant 0 : index
    %208 = vector.load %arg9[%c0_72, %c0_73, %c0_74] : memref<1x128x128xbf16, #tpu.memory_space<vmem>>, vector<1x128x128xbf16>
    %209 = vector.shape_cast %208 : vector<1x128x128xbf16> to vector<128x128xbf16>
    %cst_75 = arith.constant dense<0.000000e+00> : vector<16x128xf32>
    %210 = tpu.matmul %207, %209, %cst_75 {dimension_numbers = #tpu.dot_dimension_numbers<[1], [0], [0], [1], [0, 0, 1, 1], [], []>} : vector<16x128xbf16>, vector<128x128xbf16>, vector<16x128xf32> -> vector<16x128xf32>
    %c0_76 = arith.constant 0 : index
    %c0_77 = arith.constant 0 : index
    %c0_78 = arith.constant 0 : index
    %211 = vector.load %arg10[%c0_76, %c0_77, %c0_78] : memref<1x1x128xf32, #tpu.memory_space<vmem>>, vector<1x1x128xf32>
    %212 = vector.shape_cast %211 : vector<1x1x128xf32> to vector<1x128xf32>
    %213 = vector.broadcast %212 : vector<1x128xf32> to vector<16x128xf32>
    %214 = arith.addf %210, %213 : vector<16x128xf32>
    %c0_i32_79 = arith.constant 0 : i32
    %215 = arith.cmpi eq, %arg1, %c0_i32_79 : i32
    %216 = arith.extui %215 : i1 to i32
    %c0_i32_80 = arith.constant 0 : i32
    %217 = arith.cmpi ne, %216, %c0_i32_80 : i32
    scf.if %217 {
      %c0_112 = arith.constant 0 : index
      %c0_113 = arith.constant 0 : index
      %c0_114 = arith.constant 0 : index
      %268 = vector.load %arg18[%c0_112, %c0_113, %c0_114] : memref<1x16x128xf32, #tpu.memory_space<vmem>>, vector<1x16x128xf32>
      %269 = vector.shape_cast %268 : vector<1x16x128xf32> to vector<16x128xf32>
      %270 = vector.shape_cast %214 : vector<16x128xf32> to vector<1x16x128xf32>
      tpu.vector_store %arg18[%c0_112, %c0_113, %c0_114], %270 {strides = array<i32>} : memref<1x16x128xf32, #tpu.memory_space<vmem>>, vector<1x16x128xf32>,
    } else {
    }
    %c0_i32_81 = arith.constant 0 : i32
    %218 = arith.cmpi sgt, %arg1, %c0_i32_81 : i32
    %219 = arith.extui %218 : i1 to i32
    %c0_i32_82 = arith.constant 0 : i32
    %220 = arith.cmpi ne, %219, %c0_i32_82 : i32
    scf.if %220 {
      %c0_112 = arith.constant 0 : index
      %c0_113 = arith.constant 0 : index
      %c0_114 = arith.constant 0 : index
      %268 = vector.load %arg18[%c0_112, %c0_113, %c0_114] : memref<1x16x128xf32, #tpu.memory_space<vmem>>, vector<1x16x128xf32>
      %269 = vector.shape_cast %268 : vector<1x16x128xf32> to vector<16x128xf32>
      %270 = arith.addf %269, %214 : vector<16x128xf32>
      %c0_115 = arith.constant 0 : index
      %c0_116 = arith.constant 0 : index
      %c0_117 = arith.constant 0 : index
      %271 = vector.load %arg18[%c0_115, %c0_116, %c0_117] : memref<1x16x128xf32, #tpu.memory_space<vmem>>, vector<1x16x128xf32>
      %272 = vector.shape_cast %271 : vector<1x16x128xf32> to vector<16x128xf32>
      %273 = vector.shape_cast %270 : vector<16x128xf32> to vector<1x16x128xf32>
      tpu.vector_store %arg18[%c0_115, %c0_116, %c0_117], %273 {strides = array<i32>} : memref<1x16x128xf32, #tpu.memory_space<vmem>>, vector<1x16x128xf32>,
    } else {
    }
    %221 = arith.addf %4, %214 : vector<16x128xf32>
    %cst_83 = arith.constant dense<0.000000e+00> : vector<16xf32>
    %222 = vector.multi_reduction <add>, %221, %cst_83 [1] : vector<16x128xf32> to vector<16xf32>
    %223 = vector.shape_cast %222 : vector<16xf32> to vector<16x1xf32>
    %cst_84 = arith.constant 1.280000e+02 : f32
    %224 = vector.broadcast %cst_84 : f32 to vector<16x1xf32>
    %225 = arith.divf %223, %224 : vector<16x1xf32>
    %226 = vector.broadcast %225 : vector<16x1xf32> to vector<16x128xf32>
    %227 = arith.subf %221, %226 : vector<16x128xf32>
    %228 = arith.mulf %227, %227 : vector<16x128xf32>
    %cst_85 = arith.constant dense<0.000000e+00> : vector<16xf32>
    %229 = vector.multi_reduction <add>, %228, %cst_85 [1] : vector<16x128xf32> to vector<16xf32>
    %230 = vector.shape_cast %229 : vector<16xf32> to vector<16x1xf32>
    %cst_86 = arith.constant 1.280000e+02 : f32
    %231 = vector.broadcast %cst_86 : f32 to vector<16x1xf32>
    %232 = arith.divf %230, %231 : vector<16x1xf32>
    %cst_87 = arith.constant 9.99999974E-6 : f32
    %233 = vector.broadcast %cst_87 : f32 to vector<16x1xf32>
    %234 = arith.addf %232, %233 : vector<16x1xf32>
    %235 = math.rsqrt %234 : vector<16x1xf32>
    %236 = vector.broadcast %235 : vector<16x1xf32> to vector<16x128xf32>
    %237 = arith.mulf %227, %236 : vector<16x128xf32>
    %c0_88 = arith.constant 0 : index
    %c0_89 = arith.constant 0 : index
    %c0_90 = arith.constant 0 : index
    %238 = vector.load %arg11[%c0_88, %c0_89, %c0_90] : memref<1x1x128xf32, #tpu.memory_space<vmem>>, vector<1x1x128xf32>
    %239 = vector.shape_cast %238 : vector<1x1x128xf32> to vector<1x128xf32>
    %240 = vector.broadcast %239 : vector<1x128xf32> to vector<16x128xf32>
    %241 = arith.mulf %237, %240 : vector<16x128xf32>
    %c0_91 = arith.constant 0 : index
    %c0_92 = arith.constant 0 : index
    %c0_93 = arith.constant 0 : index
    %242 = vector.load %arg12[%c0_91, %c0_92, %c0_93] : memref<1x1x128xf32, #tpu.memory_space<vmem>>, vector<1x1x128xf32>
    %243 = vector.shape_cast %242 : vector<1x1x128xf32> to vector<1x128xf32>
    %244 = vector.broadcast %243 : vector<1x128xf32> to vector<16x128xf32>
    %245 = arith.addf %241, %244 : vector<16x128xf32>
    %246 = arith.truncf %245 : vector<16x128xf32> to vector<16x128xbf16>
    %c0_94 = arith.constant 0 : index
    %c0_95 = arith.constant 0 : index
    %c0_96 = arith.constant 0 : index
    %247 = vector.load %arg13[%c0_94, %c0_95, %c0_96] : memref<1x128x512xbf16, #tpu.memory_space<vmem>>, vector<1x128x512xbf16>
    %248 = vector.shape_cast %247 : vector<1x128x512xbf16> to vector<128x512xbf16>
    %cst_97 = arith.constant dense<0.000000e+00> : vector<16x512xf32>
    %249 = tpu.matmul %246, %248, %cst_97 {dimension_numbers = #tpu.dot_dimension_numbers<[1], [0], [0], [1], [0, 0, 1, 1], [], []>} : vector<16x128xbf16>, vector<128x512xbf16>, vector<16x512xf32> -> vector<16x512xf32>
    %c0_98 = arith.constant 0 : index
    %c0_99 = arith.constant 0 : index
    %c0_100 = arith.constant 0 : index
    %250 = vector.load %arg14[%c0_98, %c0_99, %c0_100] : memref<1x1x512xf32, #tpu.memory_space<vmem>>, vector<1x1x512xf32>
    %251 = vector.shape_cast %250 : vector<1x1x512xf32> to vector<1x512xf32>
    %252 = vector.broadcast %251 : vector<1x512xf32> to vector<16x512xf32>
    %253 = arith.addf %249, %252 : vector<16x512xf32>
    %cst_101 = arith.constant 0.000000e+00 : f32
    %254 = vector.broadcast %cst_101 : f32 to vector<16x512xf32>
    %255 = arith.maximumf %253, %254 : vector<16x512xf32>
    %256 = arith.truncf %255 : vector<16x512xf32> to vector<16x512xbf16>
    %c0_102 = arith.constant 0 : index
    %c0_103 = arith.constant 0 : index
    %c0_104 = arith.constant 0 : index
    %257 = vector.load %arg15[%c0_102, %c0_103, %c0_104] : memref<1x512x128xbf16, #tpu.memory_space<vmem>>, vector<1x512x128xbf16>
    %258 = vector.shape_cast %257 : vector<1x512x128xbf16> to vector<512x128xbf16>
    %cst_105 = arith.constant dense<0.000000e+00> : vector<16x128xf32>
    %259 = tpu.matmul %256, %258, %cst_105 {dimension_numbers = #tpu.dot_dimension_numbers<[1], [0], [0], [1], [0, 0, 1, 1], [], []>} : vector<16x512xbf16>, vector<512x128xbf16>, vector<16x128xf32> -> vector<16x128xf32>
    %c0_106 = arith.constant 0 : index
    %c0_107 = arith.constant 0 : index
    %c0_108 = arith.constant 0 : index
    %260 = vector.load %arg16[%c0_106, %c0_107, %c0_108] : memref<1x1x128xf32, #tpu.memory_space<vmem>>, vector<1x1x128xf32>
    %261 = vector.shape_cast %260 : vector<1x1x128xf32> to vector<1x128xf32>
    %262 = vector.broadcast %261 : vector<1x128xf32> to vector<16x128xf32>
    %263 = arith.addf %259, %262 : vector<16x128xf32>
    %264 = arith.addf %221, %263 : vector<16x128xf32>
    %c0_109 = arith.constant 0 : index
    %c0_110 = arith.constant 0 : index
    %c0_111 = arith.constant 0 : index
    %265 = vector.load %arg17[%c0_109, %c0_110, %c0_111] : memref<1x16x128xf32, #tpu.memory_space<vmem>>, vector<1x16x128xf32>
    %266 = vector.shape_cast %265 : vector<1x16x128xf32> to vector<16x128xf32>
    %267 = vector.shape_cast %264 : vector<16x128xf32> to vector<1x16x128xf32>
    tpu.vector_store %arg17[%c0_109, %c0_110, %c0_111], %267 {strides = array<i32>} : memref<1x16x128xf32, #tpu.memory_space<vmem>>, vector<1x16x128xf32>,
    return
  }
  func.func @transform_0(%arg0: i32, %arg1: i32) -> (i32, i32, i32) {
    %c0_i32 = arith.constant 0 : i32
    %c0_i32_0 = arith.constant 0 : i32
    %c0_i32_1 = arith.constant 0 : i32
    return %arg0, %c0_i32, %c0_i32_0 : i32, i32, i32
  }
  func.func @transform_1(%arg0: i32, %arg1: i32) -> (i32, i32, i32) {
    %c0_i32 = arith.constant 0 : i32
    %c0_i32_0 = arith.constant 0 : i32
    %c0_i32_1 = arith.constant 0 : i32
    return %arg1, %c0_i32, %c0_i32_0 : i32, i32, i32
  }
  func.func @transform_2(%arg0: i32, %arg1: i32) -> (i32, i32, i32) {
    %c0_i32 = arith.constant 0 : i32
    %c0_i32_0 = arith.constant 0 : i32
    %c0_i32_1 = arith.constant 0 : i32
    return %arg1, %c0_i32, %c0_i32_0 : i32, i32, i32
  }
  func.func @transform_3(%arg0: i32, %arg1: i32) -> (i32, i32, i32) {
    %c0_i32 = arith.constant 0 : i32
    %c0_i32_0 = arith.constant 0 : i32
    %c0_i32_1 = arith.constant 0 : i32
    return %arg1, %c0_i32, %c0_i32_0 : i32, i32, i32
  }
  func.func @transform_4(%arg0: i32, %arg1: i32) -> (i32, i32, i32) {
    %c0_i32 = arith.constant 0 : i32
    %c0_i32_0 = arith.constant 0 : i32
    %c0_i32_1 = arith.constant 0 : i32
    return %arg1, %c0_i32, %c0_i32_0 : i32, i32, i32
  }
  func.func @transform_5(%arg0: i32, %arg1: i32) -> (i32, i32, i32) {
    %c0_i32 = arith.constant 0 : i32
    %c0_i32_0 = arith.constant 0 : i32
    %c0_i32_1 = arith.constant 0 : i32
    return %arg1, %c0_i32, %c0_i32_0 : i32, i32, i32
  }
  func.func @transform_6(%arg0: i32, %arg1: i32) -> (i32, i32, i32) {
    %c0_i32 = arith.constant 0 : i32
    %c0_i32_0 = arith.constant 0 : i32
    %c0_i32_1 = arith.constant 0 : i32
    return %arg1, %c0_i32, %c0_i32_0 : i32, i32, i32
  }
  func.func @transform_7(%arg0: i32, %arg1: i32) -> (i32, i32, i32) {
    %c0_i32 = arith.constant 0 : i32
    %c0_i32_0 = arith.constant 0 : i32
    %c0_i32_1 = arith.constant 0 : i32
    return %arg1, %c0_i32, %c0_i32_0 : i32, i32, i32
  }
  func.func @transform_8(%arg0: i32, %arg1: i32) -> (i32, i32, i32) {
    %c0_i32 = arith.constant 0 : i32
    %c0_i32_0 = arith.constant 0 : i32
    %c0_i32_1 = arith.constant 0 : i32
    return %arg1, %c0_i32, %c0_i32_0 : i32, i32, i32
  }
  func.func @transform_9(%arg0: i32, %arg1: i32) -> (i32, i32, i32) {
    %c0_i32 = arith.constant 0 : i32
    %c0_i32_0 = arith.constant 0 : i32
    %c0_i32_1 = arith.constant 0 : i32
    return %arg1, %c0_i32, %c0_i32_0 : i32, i32, i32
  }
  func.func @transform_10(%arg0: i32, %arg1: i32) -> (i32, i32, i32) {
    %c0_i32 = arith.constant 0 : i32
    %c0_i32_0 = arith.constant 0 : i32
    %c0_i32_1 = arith.constant 0 : i32
    return %arg1, %c0_i32, %c0_i32_0 : i32, i32, i32
  }
  func.func @transform_11(%arg0: i32, %arg1: i32) -> (i32, i32, i32) {
    %c0_i32 = arith.constant 0 : i32
    %c0_i32_0 = arith.constant 0 : i32
    %c0_i32_1 = arith.constant 0 : i32
    return %arg1, %c0_i32, %c0_i32_0 : i32, i32, i32
  }
  func.func @transform_12(%arg0: i32, %arg1: i32) -> (i32, i32, i32) {
    %c0_i32 = arith.constant 0 : i32
    %c0_i32_0 = arith.constant 0 : i32
    %c0_i32_1 = arith.constant 0 : i32
    return %arg1, %c0_i32, %c0_i32_0 : i32, i32, i32
  }
  func.func @transform_13(%arg0: i32, %arg1: i32) -> (i32, i32, i32) {
    %c0_i32 = arith.constant 0 : i32
    %c0_i32_0 = arith.constant 0 : i32
    %c0_i32_1 = arith.constant 0 : i32
    return %arg1, %c0_i32, %c0_i32_0 : i32, i32, i32
  }
  func.func @transform_14(%arg0: i32, %arg1: i32) -> (i32, i32, i32) {
    %c0_i32 = arith.constant 0 : i32
    %c0_i32_0 = arith.constant 0 : i32
    %c0_i32_1 = arith.constant 0 : i32
    return %arg1, %c0_i32, %c0_i32_0 : i32, i32, i32
  }
  func.func @transform_15(%arg0: i32, %arg1: i32) -> (i32, i32, i32) {
    %c0_i32 = arith.constant 0 : i32
    %c0_i32_0 = arith.constant 0 : i32
    %c0_i32_1 = arith.constant 0 : i32
    return %arg0, %c0_i32, %c0_i32_0 : i32, i32, i32
  }
  func.func @transform_16(%arg0: i32, %arg1: i32) -> (i32, i32, i32) {
    %c0_i32 = arith.constant 0 : i32
    %c0_i32_0 = arith.constant 0 : i32
    %c0_i32_1 = arith.constant 0 : i32
    return %arg0, %c0_i32, %c0_i32_0 : i32, i32, i32
  }
}

</mosaic_0001>

<llo_original>
// kernel: model_forward.2
$region0: #{model_forward.2}
  #allocation0 [shape = 'u32[]', space=smem, size = 0x4, offset = 0x4, fixed_abs, tag = 'smem constant byte address 0x4 - core index']
  #allocation1 [shape = 'u32[144,128]{1,0:T(1,128)}', space=vmem, size = 0x12000, scoped, tag = 'internal scratch']
  %s0 = inlined_call_operand.vmem [shape: f32[160,1152], index: 0, kind: input, shape index: {}]
  %s1 = inlined_call_operand.vmem [shape: bf16[1152,128], index: 1, kind: input, shape index: {}]
  %s2 = inlined_call_operand.vmem [shape: f32[1,128], index: 2, kind: input, shape index: {}]
  %s3 = inlined_call_operand.vmem [shape: f32[160,128], index: 3, kind: output, shape index: {}]
  %s4 = sld [smem:[#allocation0]]
  $region22: #{model_forward.2} parent=0
    _
  %s6 = ssub.s32 1, %s4
  %s7 = scalar_select 0, %s6, %s4
  // Predicated region
  $region2: #{model_forward.2} parent=0 // pred_check
    _
  $region3: #{model_forward.2} parent=0 // pred_check_branch
    %9 = sbr.rel (0) target = $region5
  $region4: #{model_forward.2} parent=0 // pred_region
    _
  $region5: #{model_forward.2} parent=0 // pred_fallthru
    _
  // Predicated region
  $region6: #{model_forward.2} parent=0 // pred_check
    _
  $region7: #{model_forward.2} parent=0 // pred_check_branch
    %11 = sbr.rel (0) target = $region9
  $region8: #{model_forward.2} parent=0 // pred_region
    _
  $region9: #{model_forward.2} parent=0 // pred_fallthru
    _
  // Predicated region
  $region10: #{model_forward.2} parent=0 // pred_check
    _
  $region11: #{model_forward.2} parent=0 // pred_check_branch
    %13 = sbr.rel (0) target = $region13
  $region12: #{model_forward.2} parent=0 // pred_region
    _
  $region13: #{model_forward.2} parent=0 // pred_fallthru
    _
  %v15 = vld [vmem:[%s0] sm:$0xff]
  %v16 = vld [vmem:[%s0 + $0x8] sm:$0xff]
  %v17 = vld [vmem:[%s0 + $0x10] sm:$0xff]
  %v18 = vld [vmem:[%s0 + $0x18] sm:$0xff]
  %v19 = vld [vmem:[%s0 + $0x20] sm:$0xff]
  %v20 = vld [vmem:[%s0 + $0x28] sm:$0xff]
  %v21 = vld [vmem:[%s0 + $0x30] sm:$0xff]
  %v22 = vld [vmem:[%s0 + $0x38] sm:$0xff]
  %v23 = vld [vmem:[%s0 + $0x40] sm:$0xff]
  %v24 = vld [vmem:[%s0 + $0x48] sm:$0xff]
  %v25 = vld [vmem:[%s0 + $0x50] sm:$0xff]
  %v26 = vld [vmem:[%s0 + $0x58] sm:$0xff]
  %v27 = vld [vmem:[%s0 + $0x60] sm:$0xff]
  %v28 = vld [vmem:[%s0 + $0x68] sm:$0xff]
  %v29 = vld [vmem:[%s0 + $0x70] sm:$0xff]
  %v30 = vld [vmem:[%s0 + $0x78] sm:$0xff]
  %v31 = vld [vmem:[%s0 + $0x80] sm:$0xff]
  %v32 = vld [vmem:[%s0 + $0x88] sm:$0xff]
  %v33 = vld [vmem:[%s0 + $0x90] sm:$0xff]
  %v34 = vld [vmem:[%s0 + $0x98] sm:$0xff]
  %v35 = vld [vmem:[%s0 + $0xa0] sm:$0xff]
  %v36 = vld [vmem:[%s0 + $0xa8] sm:$0xff]
  %v37 = vld [vmem:[%s0 + $0xb0] sm:$0xff]
  %v38 = vld [vmem:[%s0 + $0xb8] sm:$0xff]
  %v39 = vld [vmem:[%s0 + $0xc0] sm:$0xff]
  %v40 = vld [vmem:[%s0 + $0xc8] sm:$0xff]
  %v41 = vld [vmem:[%s0 + $0xd0] sm:$0xff]
  %v42 = vld [vmem:[%s0 + $0xd8] sm:$0xff]
  %v43 = vld [vmem:[%s0 + $0xe0] sm:$0xff]
  %v44 = vld [vmem:[%s0 + $0xe8] sm:$0xff]
  %v45 = vld [vmem:[%s0 + $0xf0] sm:$0xff]
  %v46 = vld [vmem:[%s0 + $0xf8] sm:$0xff]
  %v47 = vld [vmem:[%s0 + $0x100] sm:$0xff]
  %v48 = vld [vmem:[%s0 + $0x108] sm:$0xff]
  %v49 = vld [vmem:[%s0 + $0x110] sm:$0xff]
  %v50 = vld [vmem:[%s0 + $0x118] sm:$0xff]
  %v51 = vld [vmem:[%s0 + $0x120] sm:$0xff]
  %v52 = vld [vmem:[%s0 + $0x128] sm:$0xff]
  %v53 = vld [vmem:[%s0 + $0x130] sm:$0xff]
  %v54 = vld [vmem:[%s0 + $0x138] sm:$0xff]
  %v55 = vld [vmem:[%s0 + $0x140] sm:$0xff]
  %v56 = vld [vmem:[%s0 + $0x148] sm:$0xff]
  %v57 = vld [vmem:[%s0 + $0x150] sm:$0xff]
  %v58 = vld [vmem:[%s0 + $0x158] sm:$0xff]
  %v59 = vld [vmem:[%s0 + $0x160] sm:$0xff]
  %v60 = vld [vmem:[%s0 + $0x168] sm:$0xff]
  %v61 = vld [vmem:[%s0 + $0x170] sm:$0xff]
  %v62 = vld [vmem:[%s0 + $0x178] sm:$0xff]
  %v63 = vld [vmem:[%s0 + $0x180] sm:$0xff]
  %v64 = vld [vmem:[%s0 + $0x188] sm:$0xff]
  %v65 = vld [vmem:[%s0 + $0x190] sm:$0xff]
  %v66 = vld [vmem:[%s0 + $0x198] sm:$0xff]
  %v67 = vld [vmem:[%s0 + $0x1a0] sm:$0xff]
  %v68 = vld [vmem:[%s0 + $0x1a8] sm:$0xff]
  %v69 = vld [vmem:[%s0 + $0x1b0] sm:$0xff]
  %v70 = vld [vmem:[%s0 + $0x1b8] sm:$0xff]
  %v71 = vld [vmem:[%s0 + $0x1c0] sm:$0xff]
  %v72 = vld [vmem:[%s0 + $0x1c8] sm:$0xff]
  %v73 = vld [vmem:[%s0 + $0x1d0] sm:$0xff]
  %v74 = vld [vmem:[%s0 + $0x1d8] sm:$0xff]
  %v75 = vld [vmem:[%s0 + $0x1e0] sm:$0xff]
  %v76 = vld [vmem:[%s0 + $0x1e8] sm:$0xff]
  %v77 = vld [vmem:[%s0 + $0x1f0] sm:$0xff]
  %v78 = vld [vmem:[%s0 + $0x1f8] sm:$0xff]
  %v79 = vld [vmem:[%s0 + $0x200] sm:$0xff]
  %v80 = vld [vmem:[%s0 + $0x208] sm:$0xff]
  %v81 = vld [vmem:[%s0 + $0x210] sm:$0xff]
  %v82 = vld [vmem:[%s0 + $0x218] sm:$0xff]
  %v83 = vld [vmem:[%s0 + $0x220] sm:$0xff]
  %v84 = vld [vmem:[%s0 + $0x228] sm:$0xff]
  %v85 = vld [vmem:[%s0 + $0x230] sm:$0xff]
  %v86 = vld [vmem:[%s0 + $0x238] sm:$0xff]
  %v87 = vld [vmem:[%s0 + $0x240] sm:$0xff]
  %v88 = vld [vmem:[%s0 + $0x248] sm:$0xff]
  %v89 = vld [vmem:[%s0 + $0x250] sm:$0xff]
  %v90 = vld [vmem:[%s0 + $0x258] sm:$0xff]
  %v91 = vld [vmem:[%s0 + $0x260] sm:$0xff]
  %v92 = vld [vmem:[%s0 + $0x268] sm:$0xff]
  %v93 = vld [vmem:[%s0 + $0x270] sm:$0xff]
  %v94 = vld [vmem:[%s0 + $0x278] sm:$0xff]
  %v95 = vld [vmem:[%s0 + $0x280] sm:$0xff]
  %v96 = vld [vmem:[%s0 + $0x288] sm:$0xff]
  %v97 = vld [vmem:[%s0 + $0x290] sm:$0xff]
  %v98 = vld [vmem:[%s0 + $0x298] sm:$0xff]
  %v99 = vld [vmem:[%s0 + $0x2a0] sm:$0xff]
  %v100 = vld [vmem:[%s0 + $0x2a8] sm:$0xff]
  %v101 = vld [vmem:[%s0 + $0x2b0] sm:$0xff]
  %v102 = vld [vmem:[%s0 + $0x2b8] sm:$0xff]
  %v103 = vld [vmem:[%s0 + $0x2c0] sm:$0xff]
  %v104 = vld [vmem:[%s0 + $0x2c8] sm:$0xff]
  %v105 = vld [vmem:[%s0 + $0x2d0] sm:$0xff]
  %v106 = vld [vmem:[%s0 + $0x2d8] sm:$0xff]
  %v107 = vld [vmem:[%s0 + $0x2e0] sm:$0xff]
  %v108 = vld [vmem:[%s0 + $0x2e8] sm:$0xff]
  %v109 = vld [vmem:[%s0 + $0x2f0] sm:$0xff]
  %v110 = vld [vmem:[%s0 + $0x2f8] sm:$0xff]
  %v111 = vld [vmem:[%s0 + $0x300] sm:$0xff]
  %v112 = vld [vmem:[%s0 + $0x308] sm:$0xff]
  %v113 = vld [vmem:[%s0 + $0x310] sm:$0xff]
  %v114 = vld [vmem:[%s0 + $0x318] sm:$0xff]
  %v115 = vld [vmem:[%s0 + $0x320] sm:$0xff]
  %v116 = vld [vmem:[%s0 + $0x328] sm:$0xff]
  %v117 = vld [vmem:[%s0 + $0x330] sm:$0xff]
  %v118 = vld [vmem:[%s0 + $0x338] sm:$0xff]
  %v119 = vld [vmem:[%s0 + $0x340] sm:$0xff]
  %v120 = vld [vmem:[%s0 + $0x348] sm:$0xff]
  %v121 = vld [vmem:[%s0 + $0x350] sm:$0xff]
  %v122 = vld [vmem:[%s0 + $0x358] sm:$0xff]
  %v123 = vld [vmem:[%s0 + $0x360] sm:$0xff]
  %v124 = vld [vmem:[%s0 + $0x368] sm:$0xff]
  %v125 = vld [vmem:[%s0 + $0x370] sm:$0xff]
  %v126 = vld [vmem:[%s0 + $0x378] sm:$0xff]
  %v127 = vld [vmem:[%s0 + $0x380] sm:$0xff]
  %v128 = vld [vmem:[%s0 + $0x388] sm:$0xff]
  %v129 = vld [vmem:[%s0 + $0x390] sm:$0xff]
  %v130 = vld [vmem:[%s0 + $0x398] sm:$0xff]
  %v131 = vld [vmem:[%s0 + $0x3a0] sm:$0xff]
  %v132 = vld [vmem:[%s0 + $0x3a8] sm:$0xff]
  %v133 = vld [vmem:[%s0 + $0x3b0] sm:$0xff]
  %v134 = vld [vmem:[%s0 + $0x3b8] sm:$0xff]
  %v135 = vld [vmem:[%s0 + $0x3c0] sm:$0xff]
  %v136 = vld [vmem:[%s0 + $0x3c8] sm:$0xff]
  %v137 = vld [vmem:[%s0 + $0x3d0] sm:$0xff]
  %v138 = vld [vmem:[%s0 + $0x3d8] sm:$0xff]
  %v139 = vld [vmem:[%s0 + $0x3e0] sm:$0xff]
  %v140 = vld [vmem:[%s0 + $0x3e8] sm:$0xff]
  %v141 = vld [vmem:[%s0 + $0x3f0] sm:$0xff]
  %v142 = vld [vmem:[%s0 + $0x3f8] sm:$0xff]
  %v143 = vld [vmem:[%s0 + $0x400] sm:$0xff]
  %v144 = vld [vmem:[%s0 + $0x408] sm:$0xff]
  %v145 = vld [vmem:[%s0 + $0x410] sm:$0xff]
  %v146 = vld [vmem:[%s0 + $0x418] sm:$0xff]
  %v147 = vld [vmem:[%s0 + $0x420] sm:$0xff]
  %v148 = vld [vmem:[%s0 + $0x428] sm:$0xff]
  %v149 = vld [vmem:[%s0 + $0x430] sm:$0xff]
  %v150 = vld [vmem:[%s0 + $0x438] sm:$0xff]
  %v151 = vld [vmem:[%s0 + $0x440] sm:$0xff]
  %v152 = vld [vmem:[%s0 + $0x448] sm:$0xff]
  %v153 = vld [vmem:[%s0 + $0x450] sm:$0xff]
  %v154 = vld [vmem:[%s0 + $0x458] sm:$0xff]
  %v155 = vld [vmem:[%s0 + $0x460] sm:$0xff]
  %v156 = vld [vmem:[%s0 + $0x468] sm:$0xff]
  %v157 = vld [vmem:[%s0 + $0x470] sm:$0xff]
  %v158 = vld [vmem:[%s0 + $0x478] sm:$0xff]
  %v159 = vld [vmem:[%s0 + $0x480] sm:$0xff]
  %v160 = vld [vmem:[%s0 + $0x488] sm:$0xff]
  %v161 = vld [vmem:[%s0 + $0x490] sm:$0xff]
  %v162 = vld [vmem:[%s0 + $0x498] sm:$0xff]
  %v163 = vld [vmem:[%s0 + $0x4a0] sm:$0xff]
  %v164 = vld [vmem:[%s0 + $0x4a8] sm:$0xff]
  %v165 = vld [vmem:[%s0 + $0x4b0] sm:$0xff]
  %v166 = vld [vmem:[%s0 + $0x4b8] sm:$0xff]
  %v167 = vld [vmem:[%s0 + $0x4c0] sm:$0xff]
  %v168 = vld [vmem:[%s0 + $0x4c8] sm:$0xff]
  %v169 = vld [vmem:[%s0 + $0x4d0] sm:$0xff]
  %v170 = vld [vmem:[%s0 + $0x4d8] sm:$0xff]
  %v171 = vld [vmem:[%s0 + $0x4e0] sm:$0xff]
  %v172 = vld [vmem:[%s0 + $0x4e8] sm:$0xff]
  %v173 = vld [vmem:[%s0 + $0x4f0] sm:$0xff]
  %v174 = vld [vmem:[%s0 + $0x4f8] sm:$0xff]
  %v175 = vld [vmem:[%s0 + $0x500] sm:$0xff]
  %v176 = vld [vmem:[%s0 + $0x508] sm:$0xff]
  %v177 = vld [vmem:[%s0 + $0x510] sm:$0xff]
  %v178 = vld [vmem:[%s0 + $0x518] sm:$0xff]
  %v179 = vld [vmem:[%s0 + $0x520] sm:$0xff]
  %v180 = vld [vmem:[%s0 + $0x528] sm:$0xff]
  %v181 = vld [vmem:[%s0 + $0x530] sm:$0xff]
  %v182 = vld [vmem:[%s0 + $0x538] sm:$0xff]
  %v183 = vld [vmem:[%s0 + $0x540] sm:$0xff]
  %v184 = vld [vmem:[%s0 + $0x548] sm:$0xff]
  %v185 = vld [vmem:[%s0 + $0x550] sm:$0xff]
  %v186 = vld [vmem:[%s0 + $0x558] sm:$0xff]
  %v187 = vld [vmem:[%s0 + $0x560] sm:$0xff]
  %v188 = vld [vmem:[%s0 + $0x568] sm:$0xff]
  %v189 = vld [vmem:[%s0 + $0x570] sm:$0xff]
  %v190 = vld [vmem:[%s0 + $0x578] sm:$0xff]
  %v191 = vld [vmem:[%s0 + $0x580] sm:$0xff]
  %v192 = vld [vmem:[%s0 + $0x588] sm:$0xff]
  %v193 = vld [vmem:[%s0 + $0x590] sm:$0xff]
  %v194 = vld [vmem:[%s0 + $0x598] sm:$0xff]
  %v195 = vpack.c.bf16 %v24, %v15
  %v196 = vpack.c.bf16 %v25, %v16
  %v197 = vpack.c.bf16 %v26, %v17
  %v198 = vpack.c.bf16 %v27, %v18
  %v199 = vpack.c.bf16 %v28, %v19
  %v200 = vpack.c.bf16 %v29, %v20
  %v201 = vpack.c.bf16 %v30, %v21
  %v202 = vpack.c.bf16 %v31, %v22
  %v203 = vpack.c.bf16 %v32, %v23
  %v204 = vpack.c.bf16 %v42, %v33
  %v205 = vpack.c.bf16 %v43, %v34
  %v206 = vpack.c.bf16 %v44, %v35
  %v207 = vpack.c.bf16 %v45, %v36
  %v208 = vpack.c.bf16 %v46, %v37
  %v209 = vpack.c.bf16 %v47, %v38
  %v210 = vpack.c.bf16 %v48, %v39
  %v211 = vpack.c.bf16 %v49, %v40
  %v212 = vpack.c.bf16 %v50, %v41
  %v213 = vpack.c.bf16 %v60, %v51
  %v214 = vpack.c.bf16 %v61, %v52
  %v215 = vpack.c.bf16 %v62, %v53
  %v216 = vpack.c.bf16 %v63, %v54
  %v217 = vpack.c.bf16 %v64, %v55
  %v218 = vpack.c.bf16 %v65, %v56
  %v219 = vpack.c.bf16 %v66, %v57
  %v220 = vpack.c.bf16 %v67, %v58
  %v221 = vpack.c.bf16 %v68, %v59
  %v222 = vpack.c.bf16 %v78, %v69
  %v223 = vpack.c.bf16 %v79, %v70
  %v224 = vpack.c.bf16 %v80, %v71
  %v225 = vpack.c.bf16 %v81, %v72
  %v226 = vpack.c.bf16 %v82, %v73
  %v227 = vpack.c.bf16 %v83, %v74
  %v228 = vpack.c.bf16 %v84, %v75
  %v229 = vpack.c.bf16 %v85, %v76
  %v230 = vpack.c.bf16 %v86, %v77
  %v231 = vpack.c.bf16 %v96, %v87
  %v232 = vpack.c.bf16 %v97, %v88
  %v233 = vpack.c.bf16 %v98, %v89
  %v234 = vpack.c.bf16 %v99, %v90
  %v235 = vpack.c.bf16 %v100, %v91
  %v236 = vpack.c.bf16 %v101, %v92
  %v237 = vpack.c.bf16 %v102, %v93
  %v238 = vpack.c.bf16 %v103, %v94
  %v239 = vpack.c.bf16 %v104, %v95
  %v240 = vpack.c.bf16 %v114, %v105
  %v241 = vpack.c.bf16 %v115, %v106
  %v242 = vpack.c.bf16 %v116, %v107
  %v243 = vpack.c.bf16 %v117, %v108
  %v244 = vpack.c.bf16 %v118, %v109
  %v245 = vpack.c.bf16 %v119, %v110
  %v246 = vpack.c.bf16 %v120, %v111
  %v247 = vpack.c.bf16 %v121, %v112
  %v248 = vpack.c.bf16 %v122, %v113
  %v249 = vpack.c.bf16 %v132, %v123
  %v250 = vpack.c.bf16 %v133, %v124
  %v251 = vpack.c.bf16 %v134, %v125
  %v252 = vpack.c.bf16 %v135, %v126
  %v253 = vpack.c.bf16 %v136, %v127
  %v254 = vpack.c.bf16 %v137, %v128
  %v255 = vpack.c.bf16 %v138, %v129
  %v256 = vpack.c.bf16 %v139, %v130
  %v257 = vpack.c.bf16 %v140, %v131
  %v258 = vpack.c.bf16 %v150, %v141
  %v259 = vpack.c.bf16 %v151, %v142
  %v260 = vpack.c.bf16 %v152, %v143
  %v261 = vpack.c.bf16 %v153, %v144
  %v262 = vpack.c.bf16 %v154, %v145
  %v263 = vpack.c.bf16 %v155, %v146
  %v264 = vpack.c.bf16 %v156, %v147
  %v265 = vpack.c.bf16 %v157, %v148
  %v266 = vpack.c.bf16 %v158, %v149
  %v267 = vpack.c.bf16 %v168, %v159
  %v268 = vpack.c.bf16 %v169, %v160
  %v269 = vpack.c.bf16 %v170, %v161
  %v270 = vpack.c.bf16 %v171, %v162
  %v271 = vpack.c.bf16 %v172, %v163
  %v272 = vpack.c.bf16 %v173, %v164
  %v273 = vpack.c.bf16 %v174, %v165
  %v274 = vpack.c.bf16 %v175, %v166
  %v275 = vpack.c.bf16 %v176, %v167
  %v276 = vpack.c.bf16 %v186, %v177
  %v277 = vpack.c.bf16 %v187, %v178
  %v278 = vpack.c.bf16 %v188, %v179
  %v279 = vpack.c.bf16 %v189, %v180
  %v280 = vpack.c.bf16 %v190, %v181
  %v281 = vpack.c.bf16 %v191, %v182
  %v282 = vpack.c.bf16 %v192, %v183
  %v283 = vpack.c.bf16 %v193, %v184
  %v284 = vpack.c.bf16 %v194, %v185
  %v285 = vld [vmem:[%s1] sm:$0xf]
  %v286 = vld [vmem:[%s1 + $0x4] sm:$0xf]
  %v287 = vld [vmem:[%s1 + $0x8] sm:$0xf]
  %v288 = vld [vmem:[%s1 + $0xc] sm:$0xf]
  %v289 = vld [vmem:[%s1 + $0x10] sm:$0xf]
  %v290 = vld [vmem:[%s1 + $0x14] sm:$0xf]
  %v291 = vld [vmem:[%s1 + $0x18] sm:$0xf]
  %v292 = vld [vmem:[%s1 + $0x1c] sm:$0xf]
  %v293 = vld [vmem:[%s1 + $0x20] sm:$0xf]
  %v294 = vld [vmem:[%s1 + $0x24] sm:$0xf]
  %v295 = vld [vmem:[%s1 + $0x28] sm:$0xf]
  %v296 = vld [vmem:[%s1 + $0x2c] sm:$0xf]
  %v297 = vld [vmem:[%s1 + $0x30] sm:$0xf]
  %v298 = vld [vmem:[%s1 + $0x34] sm:$0xf]
  %v299 = vld [vmem:[%s1 + $0x38] sm:$0xf]
  %v300 = vld [vmem:[%s1 + $0x3c] sm:$0xf]
  %v301 = vld [vmem:[%s1 + $0x40] sm:$0xf]
  %v302 = vld [vmem:[%s1 + $0x44] sm:$0xf]
  %v303 = vld [vmem:[%s1 + $0x48] sm:$0xf]
  %v304 = vld [vmem:[%s1 + $0x4c] sm:$0xf]
  %v305 = vld [vmem:[%s1 + $0x50] sm:$0xf]
  %v306 = vld [vmem:[%s1 + $0x54] sm:$0xf]
  %v307 = vld [vmem:[%s1 + $0x58] sm:$0xf]
  %v308 = vld [vmem:[%s1 + $0x5c] sm:$0xf]
  %v309 = vld [vmem:[%s1 + $0x60] sm:$0xf]
  %v310 = vld [vmem:[%s1 + $0x64] sm:$0xf]
  %v311 = vld [vmem:[%s1 + $0x68] sm:$0xf]
  %v312 = vld [vmem:[%s1 + $0x6c] sm:$0xf]
  %v313 = vld [vmem:[%s1 + $0x70] sm:$0xf]
  %v314 = vld [vmem:[%s1 + $0x74] sm:$0xf]
  %v315 = vld [vmem:[%s1 + $0x78] sm:$0xf]
  %v316 = vld [vmem:[%s1 + $0x7c] sm:$0xf]
  %v317 = vld [vmem:[%s1 + $0x80] sm:$0xf]
  %v318 = vld [vmem:[%s1 + $0x84] sm:$0xf]
  %v319 = vld [vmem:[%s1 + $0x88] sm:$0xf]
  %v320 = vld [vmem:[%s1 + $0x8c] sm:$0xf]
  %v321 = vld [vmem:[%s1 + $0x90] sm:$0xf]
  %v322 = vld [vmem:[%s1 + $0x94] sm:$0xf]
  %v323 = vld [vmem:[%s1 + $0x98] sm:$0xf]
  %v324 = vld [vmem:[%s1 + $0x9c] sm:$0xf]
  %v325 = vld [vmem:[%s1 + $0xa0] sm:$0xf]
  %v326 = vld [vmem:[%s1 + $0xa4] sm:$0xf]
  %v327 = vld [vmem:[%s1 + $0xa8] sm:$0xf]
  %v328 = vld [vmem:[%s1 + $0xac] sm:$0xf]
  %v329 = vld [vmem:[%s1 + $0xb0] sm:$0xf]
  %v330 = vld [vmem:[%s1 + $0xb4] sm:$0xf]
  %v331 = vld [vmem:[%s1 + $0xb8] sm:$0xf]
  %v332 = vld [vmem:[%s1 + $0xbc] sm:$0xf]
  %v333 = vld [vmem:[%s1 + $0xc0] sm:$0xf]
  %v334 = vld [vmem:[%s1 + $0xc4] sm:$0xf]
  %v335 = vld [vmem:[%s1 + $0xc8] sm:$0xf]
  %v336 = vld [vmem:[%s1 + $0xcc] sm:$0xf]
  %v337 = vld [vmem:[%s1 + $0xd0] sm:$0xf]
  %v338 = vld [vmem:[%s1 + $0xd4] sm:$0xf]
  %v339 = vld [vmem:[%s1 + $0xd8] sm:$0xf]
  %v340 = vld [vmem:[%s1 + $0xdc] sm:$0xf]
  %v341 = vld [vmem:[%s1 + $0xe0] sm:$0xf]
  %v342 = vld [vmem:[%s1 + $0xe4] sm:$0xf]
  %v343 = vld [vmem:[%s1 + $0xe8] sm:$0xf]
  %v344 = vld [vmem:[%s1 + $0xec] sm:$0xf]
  %v345 = vld [vmem:[%s1 + $0xf0] sm:$0xf]
  %v346 = vld [vmem:[%s1 + $0xf4] sm:$0xf]
  %v347 = vld [vmem:[%s1 + $0xf8] sm:$0xf]
  %v348 = vld [vmem:[%s1 + $0xfc] sm:$0xf]
  %v349 = vld [vmem:[%s1 + $0x100] sm:$0xf]
  %v350 = vld [vmem:[%s1 + $0x104] sm:$0xf]
  %v351 = vld [vmem:[%s1 + $0x108] sm:$0xf]
  %v352 = vld [vmem:[%s1 + $0x10c] sm:$0xf]
  %v353 = vld [vmem:[%s1 + $0x110] sm:$0xf]
  %v354 = vld [vmem:[%s1 + $0x114] sm:$0xf]
  %v355 = vld [vmem:[%s1 + $0x118] sm:$0xf]
  %v356 = vld [vmem:[%s1 + $0x11c] sm:$0xf]
  %v357 = vld [vmem:[%s1 + $0x120] sm:$0xf]
  %v358 = vld [vmem:[%s1 + $0x124] sm:$0xf]
  %v359 = vld [vmem:[%s1 + $0x128] sm:$0xf]
  %v360 = vld [vmem:[%s1 + $0x12c] sm:$0xf]
  %v361 = vld [vmem:[%s1 + $0x130] sm:$0xf]
  %v362 = vld [vmem:[%s1 + $0x134] sm:$0xf]
  %v363 = vld [vmem:[%s1 + $0x138] sm:$0xf]
  %v364 = vld [vmem:[%s1 + $0x13c] sm:$0xf]
  %v365 = vld [vmem:[%s1 + $0x140] sm:$0xf]
  %v366 = vld [vmem:[%s1 + $0x144] sm:$0xf]
  %v367 = vld [vmem:[%s1 + $0x148] sm:$0xf]
  %v368 = vld [vmem:[%s1 + $0x14c] sm:$0xf]
  %v369 = vld [vmem:[%s1 + $0x150] sm:$0xf]
  %v370 = vld [vmem:[%s1 + $0x154] sm:$0xf]
  %v371 = vld [vmem:[%s1 + $0x158] sm:$0xf]
  %v372 = vld [vmem:[%s1 + $0x15c] sm:$0xf]
  %v373 = vld [vmem:[%s1 + $0x160] sm:$0xf]
  %v374 = vld [vmem:[%s1 + $0x164] sm:$0xf]
  %v375 = vld [vmem:[%s1 + $0x168] sm:$0xf]
  %v376 = vld [vmem:[%s1 + $0x16c] sm:$0xf]
  %v377 = vld [vmem:[%s1 + $0x170] sm:$0xf]
  %v378 = vld [vmem:[%s1 + $0x174] sm:$0xf]
  %v379 = vld [vmem:[%s1 + $0x178] sm:$0xf]
  %v380 = vld [vmem:[%s1 + $0x17c] sm:$0xf]
  %v381 = vld [vmem:[%s1 + $0x180] sm:$0xf]
  %v382 = vld [vmem:[%s1 + $0x184] sm:$0xf]
  %v383 = vld [vmem:[%s1 + $0x188] sm:$0xf]
  %v384 = vld [vmem:[%s1 + $0x18c] sm:$0xf]
  %v385 = vld [vmem:[%s1 + $0x190] sm:$0xf]
  %v386 = vld [vmem:[%s1 + $0x194] sm:$0xf]
  %v387 = vld [vmem:[%s1 + $0x198] sm:$0xf]
  %v388 = vld [vmem:[%s1 + $0x19c] sm:$0xf]
  %v389 = vld [vmem:[%s1 + $0x1a0] sm:$0xf]
  %v390 = vld [vmem:[%s1 + $0x1a4] sm:$0xf]
  %v391 = vld [vmem:[%s1 + $0x1a8] sm:$0xf]
  %v392 = vld [vmem:[%s1 + $0x1ac] sm:$0xf]
  %v393 = vld [vmem:[%s1 + $0x1b0] sm:$0xf]
  %v394 = vld [vmem:[%s1 + $0x1b4] sm:$0xf]
  %v395 = vld [vmem:[%s1 + $0x1b8] sm:$0xf]
  %v396 = vld [vmem:[%s1 + $0x1bc] sm:$0xf]
  %v397 = vld [vmem:[%s1 + $0x1c0] sm:$0xf]
  %v398 = vld [vmem:[%s1 + $0x1c4] sm:$0xf]
  %v399 = vld [vmem:[%s1 + $0x1c8] sm:$0xf]
  %v400 = vld [vmem:[%s1 + $0x1cc] sm:$0xf]
  %v401 = vld [vmem:[%s1 + $0x1d0] sm:$0xf]
  %v402 = vld [vmem:[%s1 + $0x1d4] sm:$0xf]
  %v403 = vld [vmem:[%s1 + $0x1d8] sm:$0xf]
  %v404 = vld [vmem:[%s1 + $0x1dc] sm:$0xf]
  %v405 = vld [vmem:[%s1 + $0x1e0] sm:$0xf]
  %v406 = vld [vmem:[%s1 + $0x1e4] sm:$0xf]
  %v407 = vld [vmem:[%s1 + $0x1e8] sm:$0xf]
  %v408 = vld [vmem:[%s1 + $0x1ec] sm:$0xf]
  %v409 = vld [vmem:[%s1 + $0x1f0] sm:$0xf]
  %v410 = vld [vmem:[%s1 + $0x1f4] sm:$0xf]
  %v411 = vld [vmem:[%s1 + $0x1f8] sm:$0xf]
  %v412 = vld [vmem:[%s1 + $0x1fc] sm:$0xf]
  %v413 = vld [vmem:[%s1 + $0x200] sm:$0xf]
  %v414 = vld [vmem:[%s1 + $0x204] sm:$0xf]
  %v415 = vld [vmem:[%s1 + $0x208] sm:$0xf]
  %v416 = vld [vmem:[%s1 + $0x20c] sm:$0xf]
  %v417 = vld [vmem:[%s1 + $0x210] sm:$0xf]
  %v418 = vld [vmem:[%s1 + $0x214] sm:$0xf]
  %v419 = vld [vmem:[%s1 + $0x218] sm:$0xf]
  %v420 = vld [vmem:[%s1 + $0x21c] sm:$0xf]
  %v421 = vld [vmem:[%s1 + $0x220] sm:$0xf]
  %v422 = vld [vmem:[%s1 + $0x224] sm:$0xf]
  %v423 = vld [vmem:[%s1 + $0x228] sm:$0xf]
  %v424 = vld [vmem:[%s1 + $0x22c] sm:$0xf]
  %v425 = vld [vmem:[%s1 + $0x230] sm:$0xf]
  %v426 = vld [vmem:[%s1 + $0x234] sm:$0xf]
  %v427 = vld [vmem:[%s1 + $0x238] sm:$0xf]
  %v428 = vld [vmem:[%s1 + $0x23c] sm:$0xf]
  %v429 = vld [vmem:[%s2] sm:$0x1]
  %v431 = vlaneseq
  %v432 = vshrl.u32 %v431, 7
  %v433 = vsub.s32 0, %v432
  %v434 = vrot.slane %v429, %v433
  %v580 = vunpack.c.l.b16 %v285
  %v581 = vunpack.c.l.b16 %v286
  %v582 = vunpack.c.l.b16 %v287
  %v583 = vunpack.c.l.b16 %v288
  %v584 = vunpack.c.l.b16 %v289
  %v585 = vunpack.c.l.b16 %v290
  %v586 = vunpack.c.l.b16 %v291
  %v587 = vunpack.c.l.b16 %v292
  %v588 = vunpack.c.l.b16 %v293
  %v589 = vunpack.c.l.b16 %v294
  %v590 = vunpack.c.l.b16 %v295
  %v591 = vunpack.c.l.b16 %v296
  %v592 = vunpack.c.l.b16 %v297
  %v593 = vunpack.c.l.b16 %v298
  %v594 = vunpack.c.l.b16 %v299
  %v595 = vunpack.c.l.b16 %v300
  %v596 = vunpack.c.l.b16 %v301
  %v597 = vunpack.c.l.b16 %v302
  %v598 = vunpack.c.l.b16 %v303
  %v599 = vunpack.c.l.b16 %v304
  %v600 = vunpack.c.l.b16 %v305
  %v601 = vunpack.c.l.b16 %v306
  %v602 = vunpack.c.l.b16 %v307
  %v603 = vunpack.c.l.b16 %v308
  %v604 = vunpack.c.l.b16 %v309
  %v605 = vunpack.c.l.b16 %v310
  %v606 = vunpack.c.l.b16 %v311
  %v607 = vunpack.c.l.b16 %v312
  %v608 = vunpack.c.l.b16 %v313
  %v609 = vunpack.c.l.b16 %v314
  %v610 = vunpack.c.l.b16 %v315
  %v611 = vunpack.c.l.b16 %v316
  %v612 = vunpack.c.l.b16 %v317
  %v613 = vunpack.c.l.b16 %v318
  %v614 = vunpack.c.l.b16 %v319
  %v615 = vunpack.c.l.b16 %v320
  %v616 = vunpack.c.l.b16 %v321
  %v617 = vunpack.c.l.b16 %v322
  %v618 = vunpack.c.l.b16 %v323
  %v619 = vunpack.c.l.b16 %v324
  %v620 = vunpack.c.l.b16 %v325
  %v621 = vunpack.c.l.b16 %v326
  %v622 = vunpack.c.l.b16 %v327
  %v623 = vunpack.c.l.b16 %v328
  %v624 = vunpack.c.l.b16 %v329
  %v625 = vunpack.c.l.b16 %v330
  %v626 = vunpack.c.l.b16 %v331
  %v627 = vunpack.c.l.b16 %v332
  %v628 = vunpack.c.l.b16 %v333
  %v629 = vunpack.c.l.b16 %v334
  %v630 = vunpack.c.l.b16 %v335
  %v631 = vunpack.c.l.b16 %v336
  %v632 = vunpack.c.l.b16 %v337
  %v633 = vunpack.c.l.b16 %v338
  %v634 = vunpack.c.l.b16 %v339
  %v635 = vunpack.c.l.b16 %v340
  %v636 = vunpack.c.l.b16 %v341
  %v637 = vunpack.c.l.b16 %v342
  %v638 = vunpack.c.l.b16 %v343
  %v639 = vunpack.c.l.b16 %v344
  %v640 = vunpack.c.l.b16 %v345
  %v641 = vunpack.c.l.b16 %v346
  %v642 = vunpack.c.l.b16 %v347
  %v643 = vunpack.c.l.b16 %v348
  %v644 = vunpack.c.l.b16 %v349
  %v645 = vunpack.c.l.b16 %v350
  %v646 = vunpack.c.l.b16 %v351
  %v647 = vunpack.c.l.b16 %v352
  %v648 = vunpack.c.l.b16 %v353
  %v649 = vunpack.c.l.b16 %v354
  %v650 = vunpack.c.l.b16 %v355
  %v651 = vunpack.c.l.b16 %v356
  %v652 = vunpack.c.l.b16 %v357
  %v653 = vunpack.c.l.b16 %v358
  %v654 = vunpack.c.l.b16 %v359
  %v655 = vunpack.c.l.b16 %v360
  %v656 = vunpack.c.l.b16 %v361
  %v657 = vunpack.c.l.b16 %v362
  %v658 = vunpack.c.l.b16 %v363
  %v659 = vunpack.c.l.b16 %v364
  %v660 = vunpack.c.l.b16 %v365
  %v661 = vunpack.c.l.b16 %v366
  %v662 = vunpack.c.l.b16 %v367
  %v663 = vunpack.c.l.b16 %v368
  %v664 = vunpack.c.l.b16 %v369
  %v665 = vunpack.c.l.b16 %v370
  %v666 = vunpack.c.l.b16 %v371
  %v667 = vunpack.c.l.b16 %v372
  %v668 = vunpack.c.l.b16 %v373
  %v669 = vunpack.c.l.b16 %v374
  %v670 = vunpack.c.l.b16 %v375
  %v671 = vunpack.c.l.b16 %v376
  %v672 = vunpack.c.l.b16 %v377
  %v673 = vunpack.c.l.b16 %v378
  %v674 = vunpack.c.l.b16 %v379
  %v675 = vunpack.c.l.b16 %v380
  %v676 = vunpack.c.l.b16 %v381
  %v677 = vunpack.c.l.b16 %v382
  %v678 = vunpack.c.l.b16 %v383
  %v679 = vunpack.c.l.b16 %v384
  %v680 = vunpack.c.l.b16 %v385
  %v681 = vunpack.c.l.b16 %v386
  %v682 = vunpack.c.l.b16 %v387
  %v683 = vunpack.c.l.b16 %v388
  %v684 = vunpack.c.l.b16 %v389
  %v685 = vunpack.c.l.b16 %v390
  %v686 = vunpack.c.l.b16 %v391
  %v687 = vunpack.c.l.b16 %v392
  %v688 = vunpack.c.l.b16 %v393
  %v689 = vunpack.c.l.b16 %v394
  %v690 = vunpack.c.l.b16 %v395
  %v691 = vunpack.c.l.b16 %v396
  %v692 = vunpack.c.l.b16 %v397
  %v693 = vunpack.c.l.b16 %v398
  %v694 = vunpack.c.l.b16 %v399
  %v695 = vunpack.c.l.b16 %v400
  %v696 = vunpack.c.l.b16 %v401
  %v697 = vunpack.c.l.b16 %v402
  %v698 = vunpack.c.l.b16 %v403
  %v699 = vunpack.c.l.b16 %v404
  %v700 = vunpack.c.l.b16 %v405
  %v701 = vunpack.c.l.b16 %v406
  %v702 = vunpack.c.l.b16 %v407
  %v703 = vunpack.c.l.b16 %v408
  %v704 = vunpack.c.l.b16 %v409
  %v705 = vunpack.c.l.b16 %v410
  %v706 = vunpack.c.l.b16 %v411
  %v707 = vunpack.c.l.b16 %v412
  %v708 = vunpack.c.l.b16 %v413
  %v709 = vunpack.c.l.b16 %v414
  %v710 = vunpack.c.l.b16 %v415
  %v711 = vunpack.c.l.b16 %v416
  %v712 = vunpack.c.l.b16 %v417
  %v713 = vunpack.c.l.b16 %v418
  %v714 = vunpack.c.l.b16 %v419
  %v715 = vunpack.c.l.b16 %v420
  %v716 = vunpack.c.l.b16 %v421
  %v717 = vunpack.c.l.b16 %v422
  %v718 = vunpack.c.l.b16 %v423
  %v719 = vunpack.c.l.b16 %v424
  %v720 = vunpack.c.l.b16 %v425
  %v721 = vunpack.c.l.b16 %v426
  %v722 = vunpack.c.l.b16 %v427
  %v723 = vunpack.c.l.b16 %v428
  %v724 = vpack.c.b16 %v581, %v580
  %v725 = vpack.c.b16 %v583, %v582
  %v726 = vpack.c.b16 %v585, %v584
  %v727 = vpack.c.b16 %v587, %v586
  %v728 = vpack.c.b16 %v589, %v588
  %v729 = vpack.c.b16 %v591, %v590
  %v730 = vpack.c.b16 %v593, %v592
  %v731 = vpack.c.b16 %v595, %v594
  %v732 = vpack.c.b16 %v597, %v596
  %v733 = vpack.c.b16 %v599, %v598
  %v734 = vpack.c.b16 %v601, %v600
  %v735 = vpack.c.b16 %v603, %v602
  %v736 = vpack.c.b16 %v605, %v604
  %v737 = vpack.c.b16 %v607, %v606
  %v738 = vpack.c.b16 %v609, %v608
  %v739 = vpack.c.b16 %v611, %v610
  %v740 = vpack.c.b16 %v613, %v612
  %v741 = vpack.c.b16 %v615, %v614
  %v742 = vpack.c.b16 %v617, %v616
  %v743 = vpack.c.b16 %v619, %v618
  %v744 = vpack.c.b16 %v621, %v620
  %v745 = vpack.c.b16 %v623, %v622
  %v746 = vpack.c.b16 %v625, %v624
  %v747 = vpack.c.b16 %v627, %v626
  %v748 = vpack.c.b16 %v629, %v628
  %v749 = vpack.c.b16 %v631, %v630
  %v750 = vpack.c.b16 %v633, %v632
  %v751 = vpack.c.b16 %v635, %v634
  %v752 = vpack.c.b16 %v637, %v636
  %v753 = vpack.c.b16 %v639, %v638
  %v754 = vpack.c.b16 %v641, %v640
  %v755 = vpack.c.b16 %v643, %v642
  %v756 = vpack.c.b16 %v645, %v644
  %v757 = vpack.c.b16 %v647, %v646
  %v758 = vpack.c.b16 %v649, %v648
  %v759 = vpack.c.b16 %v651, %v650
  %v760 = vpack.c.b16 %v653, %v652
  %v761 = vpack.c.b16 %v655, %v654
  %v762 = vpack.c.b16 %v657, %v656
  %v763 = vpack.c.b16 %v659, %v658
  %v764 = vpack.c.b16 %v661, %v660
  %v765 = vpack.c.b16 %v663, %v662
  %v766 = vpack.c.b16 %v665, %v664
  %v767 = vpack.c.b16 %v667, %v666
  %v768 = vpack.c.b16 %v669, %v668
  %v769 = vpack.c.b16 %v671, %v670
  %v770 = vpack.c.b16 %v673, %v672
  %v771 = vpack.c.b16 %v675, %v674
  %v772 = vpack.c.b16 %v677, %v676
  %v773 = vpack.c.b16 %v679, %v678
  %v774 = vpack.c.b16 %v681, %v680
  %v775 = vpack.c.b16 %v683, %v682
  %v776 = vpack.c.b16 %v685, %v684
  %v777 = vpack.c.b16 %v687, %v686
  %v778 = vpack.c.b16 %v689, %v688
  %v779 = vpack.c.b16 %v691, %v690
  %v780 = vpack.c.b16 %v693, %v692
  %v781 = vpack.c.b16 %v695, %v694
  %v782 = vpack.c.b16 %v697, %v696
  %v783 = vpack.c.b16 %v699, %v698
  %v784 = vpack.c.b16 %v701, %v700
  %v785 = vpack.c.b16 %v703, %v702
  %v786 = vpack.c.b16 %v705, %v704
  %v787 = vpack.c.b16 %v707, %v706
  %v788 = vpack.c.b16 %v709, %v708
  %v789 = vpack.c.b16 %v711, %v710
  %v790 = vpack.c.b16 %v713, %v712
  %v791 = vpack.c.b16 %v715, %v714
  %v792 = vpack.c.b16 %v717, %v716
  %v793 = vpack.c.b16 %v719, %v718
  %v794 = vpack.c.b16 %v721, %v720
  %v795 = vpack.c.b16 %v723, %v722
  %868 = vmatprep.subr.bf16.mxu0 0
  %869 = vmatpush1.bf16.msra.mxu0 %v724
  %870 = vmatprep.subr.bf16.mxu0 0
  %871 = vmatpush1.bf16.msra.mxu0 %v725
  %872 = vmatprep.subr.bf16.mxu0 0
  %873 = vmatpush1.bf16.msra.mxu0 %v726
  %874 = vmatprep.subr.bf16.mxu0 0
  %875 = vmatpush1.bf16.msra.mxu0 %v727
  %876 = vmatprep.subr.bf16.mxu0 0
  %877 = vmatpush1.bf16.msra.mxu0 %v728
  %878 = vmatprep.subr.bf16.mxu0 0
  %879 = vmatpush1.bf16.msra.mxu0 %v729
  %880 = vmatprep.subr.bf16.mxu0 0
  %881 = vmatpush1.bf16.msra.mxu0 %v730
  %882 = vmatprep.subr.bf16.mxu0 0
  %883 = vmatpush1.bf16.msra.mxu0 %v731
  %884 = vmatprep.subr.bf16.mxu0 0
  %885 = vmatpush1.bf16.msra.mxu0 %v732
  %886 = vmatprep.subr.bf16.mxu0 0
  %887 = vmatpush1.bf16.msra.mxu0 %v733
  %888 = vmatprep.subr.bf16.mxu0 0
  %889 = vmatpush1.bf16.msra.mxu0 %v734
  %890 = vmatprep.subr.bf16.mxu0 0
  %891 = vmatpush1.bf16.msra.mxu0 %v735
  %892 = vmatprep.subr.bf16.mxu0 0
  %893 = vmatpush1.bf16.msra.mxu0 %v736
  %894 = vmatprep.subr.bf16.mxu0 0
  %895 = vmatpush1.bf16.msra.mxu0 %v737
  %896 = vmatprep.subr.bf16.mxu0 0
  %897 = vmatpush1.bf16.msra.mxu0 %v738
  %898 = vmatprep.subr.bf16.mxu0 0
  %899 = vmatpush1.bf16.msra.mxu0 %v739
  %900 = vmatprep.mubr.bf16.mxu0 %v196
  %901 = vmatmul.mubr.bf16.gmra.mrb[0].mxu0 %v195
  %v902 = vpop.f32.mrb[0].mxu0
  %v903 = vadd.f32 %v434, %v902
  %v904 = vpop.f32.mrb[0].mxu0
  %v905 = vpop.f32.mrb[0].mxu0
  %v906 = vadd.f32 %v434, %v905
  %v907 = vpop.f32.mrb[0].mxu0
  %908 = vmatprep.mubr.bf16.mxu0 %v205
  %909 = vmatmul.mubr.bf16.gmra.mrb[0].mxu0 %v204
  %v910 = vpop.f32.mrb[0].mxu0
  %v911 = vadd.f32 %v434, %v910
  %v912 = vpop.f32.mrb[0].mxu0
  %v913 = vpop.f32.mrb[0].mxu0
  %v914 = vadd.f32 %v434, %v913
  %v915 = vpop.f32.mrb[0].mxu0
  %916 = vmatprep.mubr.bf16.mxu0 %v214
  %917 = vmatmul.mubr.bf16.gmra.mrb[0].mxu0 %v213
  %v918 = vpop.f32.mrb[0].mxu0
  %v919 = vadd.f32 %v434, %v918
  %v920 = vpop.f32.mrb[0].mxu0
  %v921 = vpop.f32.mrb[0].mxu0
  %v922 = vadd.f32 %v434, %v921
  %v923 = vpop.f32.mrb[0].mxu0
  %924 = vmatprep.mubr.bf16.mxu0 %v223
  %925 = vmatmul.mubr.bf16.gmra.mrb[0].mxu0 %v222
  %v926 = vpop.f32.mrb[0].mxu0
  %v927 = vadd.f32 %v434, %v926
  %v928 = vpop.f32.mrb[0].mxu0
  %v929 = vpop.f32.mrb[0].mxu0
  %v930 = vadd.f32 %v434, %v929
  %v931 = vpop.f32.mrb[0].mxu0
  %932 = vmatprep.mubr.bf16.mxu0 %v232
  %933 = vmatmul.mubr.bf16.gmra.mrb[0].mxu0 %v231
  %v934 = vpop.f32.mrb[0].mxu0
  %v935 = vadd.f32 %v434, %v934
  %v936 = vpop.f32.mrb[0].mxu0
  %v937 = vpop.f32.mrb[0].mxu0
  %v938 = vadd.f32 %v434, %v937
  %v939 = vpop.f32.mrb[0].mxu0
  %940 = vmatprep.mubr.bf16.mxu0 %v241
  %941 = vmatmul.mubr.bf16.gmra.mrb[0].mxu0 %v240
  %v942 = vpop.f32.mrb[0].mxu0
  %v943 = vadd.f32 %v434, %v942
  %v944 = vpop.f32.mrb[0].mxu0
  %v945 = vpop.f32.mrb[0].mxu0
  %v946 = vadd.f32 %v434, %v945
  %v947 = vpop.f32.mrb[0].mxu0
  %948 = vmatprep.mubr.bf16.mxu0 %v250
  %949 = vmatmul.mubr.bf16.gmra.mrb[0].mxu0 %v249
  %v950 = vpop.f32.mrb[0].mxu0
  %v951 = vadd.f32 %v434, %v950
  %v952 = vpop.f32.mrb[0].mxu0
  %v953 = vpop.f32.mrb[0].mxu0
  %v954 = vadd.f32 %v434, %v953
  %v955 = vpop.f32.mrb[0].mxu0
  %956 = vmatprep.mubr.bf16.mxu0 %v259
  %957 = vmatmul.mubr.bf16.gmra.mrb[0].mxu0 %v258
  %v958 = vpop.f32.mrb[0].mxu0
  %v959 = vadd.f32 %v434, %v958
  %v960 = vpop.f32.mrb[0].mxu0
  %v961 = vpop.f32.mrb[0].mxu0
  %v962 = vadd.f32 %v434, %v961
  %v963 = vpop.f32.mrb[0].mxu0
  %964 = vmatprep.mubr.bf16.mxu0 %v268
  %965 = vmatmul.mubr.bf16.gmra.mrb[0].mxu0 %v267
  %v966 = vpop.f32.mrb[0].mxu0
  %v967 = vadd.f32 %v434, %v966
  %v968 = vpop.f32.mrb[0].mxu0
  %v969 = vpop.f32.mrb[0].mxu0
  %v970 = vadd.f32 %v434, %v969
  %v971 = vpop.f32.mrb[0].mxu0
  %972 = vmatprep.mubr.bf16.mxu0 %v277
  %973 = vmatmul.mubr.bf16.gmra.mrb[0].mxu0 %v276
  %v974 = vpop.f32.mrb[0].mxu0
  %v975 = vadd.f32 %v434, %v974
  %v976 = vpop.f32.mrb[0].mxu0
  %v977 = vpop.f32.mrb[0].mxu0
  %v978 = vadd.f32 %v434, %v977
  %v979 = vpop.f32.mrb[0].mxu0
  %980 = vdwg.mxu0
  %981 = vmatprep.subr.bf16.mxu0 0
  %982 = vmatpush1.bf16.msra.mxu0 %v740
  %983 = vmatprep.subr.bf16.mxu0 0
  %984 = vmatpush1.bf16.msra.mxu0 %v741
  %985 = vmatprep.subr.bf16.mxu0 0
  %986 = vmatpush1.bf16.msra.mxu0 %v742
  %987 = vmatprep.subr.bf16.mxu0 0
  %988 = vmatpush1.bf16.msra.mxu0 %v743
  %989 = vmatprep.subr.bf16.mxu0 0
  %990 = vmatpush1.bf16.msra.mxu0 %v744
  %991 = vmatprep.subr.bf16.mxu0 0
  %992 = vmatpush1.bf16.msra.mxu0 %v745
  %993 = vmatprep.subr.bf16.mxu0 0
  %994 = vmatpush1.bf16.msra.mxu0 %v746
  %995 = vmatprep.subr.bf16.mxu0 0
  %996 = vmatpush1.bf16.msra.mxu0 %v747
  %997 = vmatprep.subr.bf16.mxu0 0
  %998 = vmatpush1.bf16.msra.mxu0 %v748
  %999 = vmatprep.subr.bf16.mxu0 0
  %1000 = vmatpush1.bf16.msra.mxu0 %v749
  %1001 = vmatprep.subr.bf16.mxu0 0
  %1002 = vmatpush1.bf16.msra.mxu0 %v750
  %1003 = vmatprep.subr.bf16.mxu0 0
  %1004 = vmatpush1.bf16.msra.mxu0 %v751
  %1005 = vmatprep.subr.bf16.mxu0 0
  %1006 = vmatpush1.bf16.msra.mxu0 %v752
  %1007 = vmatprep.subr.bf16.mxu0 0
  %1008 = vmatpush1.bf16.msra.mxu0 %v753
  %1009 = vmatprep.subr.bf16.mxu0 0
  %1010 = vmatpush1.bf16.msra.mxu0 %v754
  %1011 = vmatprep.subr.bf16.mxu0 0
  %1012 = vmatpush1.bf16.msra.mxu0 %v755
  %1013 = vmatprep.mubr.bf16.mxu0 %v198
  %1014 = vmatmul.mubr.bf16.gmra.mrb[0].mxu0 %v197
  %v1015 = vpop.f32.mrb[0].mxu0
  %v1016 = vadd.f32 %v903, %v1015
  %v1017 = vpop.f32.mrb[0].mxu0
  %v1018 = vpop.f32.mrb[0].mxu0
  %v1019 = vadd.f32 %v906, %v1018
  %v1020 = vpop.f32.mrb[0].mxu0
  %1021 = vmatprep.mubr.bf16.mxu0 %v207
  %1022 = vmatmul.mubr.bf16.gmra.mrb[0].mxu0 %v206
  %v1023 = vpop.f32.mrb[0].mxu0
  %v1024 = vadd.f32 %v911, %v1023
  %v1025 = vpop.f32.mrb[0].mxu0
  %v1026 = vpop.f32.mrb[0].mxu0
  %v1027 = vadd.f32 %v914, %v1026
  %v1028 = vpop.f32.mrb[0].mxu0
  %1029 = vmatprep.mubr.bf16.mxu0 %v216
  %1030 = vmatmul.mubr.bf16.gmra.mrb[0].mxu0 %v215
  %v1031 = vpop.f32.mrb[0].mxu0
  %v1032 = vadd.f32 %v919, %v1031
  %v1033 = vpop.f32.mrb[0].mxu0
  %v1034 = vpop.f32.mrb[0].mxu0
  %v1035 = vadd.f32 %v922, %v1034
  %v1036 = vpop.f32.mrb[0].mxu0
  %1037 = vmatprep.mubr.bf16.mxu0 %v225
  %1038 = vmatmul.mubr.bf16.gmra.mrb[0].mxu0 %v224
  %v1039 = vpop.f32.mrb[0].mxu0
  %v1040 = vadd.f32 %v927, %v1039
  %v1041 = vpop.f32.mrb[0].mxu0
  %v1042 = vpop.f32.mrb[0].mxu0
  %v1043 = vadd.f32 %v930, %v1042
  %v1044 = vpop.f32.mrb[0].mxu0
  %1045 = vmatprep.mubr.bf16.mxu0 %v234
  %1046 = vmatmul.mubr.bf16.gmra.mrb[0].mxu0 %v233
  %v1047 = vpop.f32.mrb[0].mxu0
  %v1048 = vadd.f32 %v935, %v1047
  %v1049 = vpop.f32.mrb[0].mxu0
  %v1050 = vpop.f32.mrb[0].mxu0
  %v1051 = vadd.f32 %v938, %v1050
  %v1052 = vpop.f32.mrb[0].mxu0
  %1053 = vmatprep.mubr.bf16.mxu0 %v243
  %1054 = vmatmul.mubr.bf16.gmra.mrb[0].mxu0 %v242
  %v1055 = vpop.f32.mrb[0].mxu0
  %v1056 = vadd.f32 %v943, %v1055
  %v1057 = vpop.f32.mrb[0].mxu0
  %v1058 = vpop.f32.mrb[0].mxu0
  %v1059 = vadd.f32 %v946, %v1058
  %v1060 = vpop.f32.mrb[0].mxu0
  %1061 = vmatprep.mubr.bf16.mxu0 %v252
  %1062 = vmatmul.mubr.bf16.gmra.mrb[0].mxu0 %v251
  %v1063 = vpop.f32.mrb[0].mxu0
  %v1064 = vadd.f32 %v951, %v1063
  %v1065 = vpop.f32.mrb[0].mxu0
  %v1066 = vpop.f32.mrb[0].mxu0
  %v1067 = vadd.f32 %v954, %v1066
  %v1068 = vpop.f32.mrb[0].mxu0
  %1069 = vmatprep.mubr.bf16.mxu0 %v261
  %1070 = vmatmul.mubr.bf16.gmra.mrb[0].mxu0 %v260
  %v1071 = vpop.f32.mrb[0].mxu0
  %v1072 = vadd.f32 %v959, %v1071
  %v1073 = vpop.f32.mrb[0].mxu0
  %v1074 = vpop.f32.mrb[0].mxu0
  %v1075 = vadd.f32 %v962, %v1074
  %v1076 = vpop.f32.mrb[0].mxu0
  %1077 = vmatprep.mubr.bf16.mxu0 %v270
  %1078 = vmatmul.mubr.bf16.gmra.mrb[0].mxu0 %v269
  %v1079 = vpop.f32.mrb[0].mxu0
  %v1080 = vadd.f32 %v967, %v1079
  %v1081 = vpop.f32.mrb[0].mxu0
  %v1082 = vpop.f32.mrb[0].mxu0
  %v1083 = vadd.f32 %v970, %v1082
  %v1084 = vpop.f32.mrb[0].mxu0
  %1085 = vmatprep.mubr.bf16.mxu0 %v279
  %1086 = vmatmul.mubr.bf16.gmra.mrb[0].mxu0 %v278
  %v1087 = vpop.f32.mrb[0].mxu0
  %v1088 = vadd.f32 %v975, %v1087
  %v1089 = vpop.f32.mrb[0].mxu0
  %v1090 = vpop.f32.mrb[0].mxu0
  %v1091 = vadd.f32 %v978, %v1090
  %v1092 = vpop.f32.mrb[0].mxu0
  %1093 = vdwg.mxu0
  %1094 = vmatprep.subr.bf16.mxu0 0
  %1095 = vmatpush1.bf16.msra.mxu0 %v756
  %1096 = vmatprep.subr.bf16.mxu0 0
  %1097 = vmatpush1.bf16.msra.mxu0 %v757
  %1098 = vmatprep.subr.bf16.mxu0 0
  %1099 = vmatpush1.bf16.msra.mxu0 %v758
  %1100 = vmatprep.subr.bf16.mxu0 0
  %1101 = vmatpush1.bf16.msra.mxu0 %v759
  %1102 = vmatprep.subr.bf16.mxu0 0
  %1103 = vmatpush1.bf16.msra.mxu0 %v760
  %1104 = vmatprep.subr.bf16.mxu0 0
  %1105 = vmatpush1.bf16.msra.mxu0 %v761
  %1106 = vmatprep.subr.bf16.mxu0 0
  %1107 = vmatpush1.bf16.msra.mxu0 %v762
  %1108 = vmatprep.subr.bf16.mxu0 0
  %1109 = vmatpush1.bf16.msra.mxu0 %v763
  %1110 = vmatprep.subr.bf16.mxu0 0
  %1111 = vmatpush1.bf16.msra.mxu0 %v764
  %1112 = vmatprep.subr.bf16.mxu0 0
  %1113 = vmatpush1.bf16.msra.mxu0 %v765
  %1114 = vmatprep.subr.bf16.mxu0 0
  %1115 = vmatpush1.bf16.msra.mxu0 %v766
  %1116 = vmatprep.subr.bf16.mxu0 0
  %1117 = vmatpush1.bf16.msra.mxu0 %v767
  %1118 = vmatprep.subr.bf16.mxu0 0
  %1119 = vmatpush1.bf16.msra.mxu0 %v768
  %1120 = vmatprep.subr.bf16.mxu0 0
  %1121 = vmatpush1.bf16.msra.mxu0 %v769
  %1122 = vmatprep.subr.bf16.mxu0 0
  %1123 = vmatpush1.bf16.msra.mxu0 %v770
  %1124 = vmatprep.subr.bf16.mxu0 0
  %1125 = vmatpush1.bf16.msra.mxu0 %v771
  %1126 = vmatprep.mubr.bf16.mxu0 %v200
  %1127 = vmatmul.mubr.bf16.gmra.mrb[0].mxu0 %v199
  %v1128 = vpop.f32.mrb[0].mxu0
  %v1129 = vadd.f32 %v1016, %v1128
  %v1130 = vpop.f32.mrb[0].mxu0
  %v1131 = vpop.f32.mrb[0].mxu0
  %v1132 = vadd.f32 %v1019, %v1131
  %v1133 = vpop.f32.mrb[0].mxu0
  %1134 = vmatprep.mubr.bf16.mxu0 %v209
  %1135 = vmatmul.mubr.bf16.gmra.mrb[0].mxu0 %v208
  %v1136 = vpop.f32.mrb[0].mxu0
  %v1137 = vadd.f32 %v1024, %v1136
  %v1138 = vpop.f32.mrb[0].mxu0
  %v1139 = vpop.f32.mrb[0].mxu0
  %v1140 = vadd.f32 %v1027, %v1139
  %v1141 = vpop.f32.mrb[0].mxu0
  %1142 = vmatprep.mubr.bf16.mxu0 %v218
  %1143 = vmatmul.mubr.bf16.gmra.mrb[0].mxu0 %v217
  %v1144 = vpop.f32.mrb[0].mxu0
  %v1145 = vadd.f32 %v1032, %v1144
  %v1146 = vpop.f32.mrb[0].mxu0
  %v1147 = vpop.f32.mrb[0].mxu0
  %v1148 = vadd.f32 %v1035, %v1147
  %v1149 = vpop.f32.mrb[0].mxu0
  %1150 = vmatprep.mubr.bf16.mxu0 %v227
  %1151 = vmatmul.mubr.bf16.gmra.mrb[0].mxu0 %v226
  %v1152 = vpop.f32.mrb[0].mxu0
  %v1153 = vadd.f32 %v1040, %v1152
  %v1154 = vpop.f32.mrb[0].mxu0
  %v1155 = vpop.f32.mrb[0].mxu0
  %v1156 = vadd.f32 %v1043, %v1155
  %v1157 = vpop.f32.mrb[0].mxu0
  %1158 = vmatprep.mubr.bf16.mxu0 %v236
  %1159 = vmatmul.mubr.bf16.gmra.mrb[0].mxu0 %v235
  %v1160 = vpop.f32.mrb[0].mxu0
  %v1161 = vadd.f32 %v1048, %v1160
  %v1162 = vpop.f32.mrb[0].mxu0
  %v1163 = vpop.f32.mrb[0].mxu0
  %v1164 = vadd.f32 %v1051, %v1163
  %v1165 = vpop.f32.mrb[0].mxu0
  %1166 = vmatprep.mubr.bf16.mxu0 %v245
  %1167 = vmatmul.mubr.bf16.gmra.mrb[0].mxu0 %v244
  %v1168 = vpop.f32.mrb[0].mxu0
  %v1169 = vadd.f32 %v1056, %v1168
  %v1170 = vpop.f32.mrb[0].mxu0
  %v1171 = vpop.f32.mrb[0].mxu0
  %v1172 = vadd.f32 %v1059, %v1171
  %v1173 = vpop.f32.mrb[0].mxu0
  %1174 = vmatprep.mubr.bf16.mxu0 %v254
  %1175 = vmatmul.mubr.bf16.gmra.mrb[0].mxu0 %v253
  %v1176 = vpop.f32.mrb[0].mxu0
  %v1177 = vadd.f32 %v1064, %v1176
  %v1178 = vpop.f32.mrb[0].mxu0
  %v1179 = vpop.f32.mrb[0].mxu0
  %v1180 = vadd.f32 %v1067, %v1179
  %v1181 = vpop.f32.mrb[0].mxu0
  %1182 = vmatprep.mubr.bf16.mxu0 %v263
  %1183 = vmatmul.mubr.bf16.gmra.mrb[0].mxu0 %v262
  %v1184 = vpop.f32.mrb[0].mxu0
  %v1185 = vadd.f32 %v1072, %v1184
  %v1186 = vpop.f32.mrb[0].mxu0
  %v1187 = vpop.f32.mrb[0].mxu0
  %v1188 = vadd.f32 %v1075, %v1187
  %v1189 = vpop.f32.mrb[0].mxu0
  %1190 = vmatprep.mubr.bf16.mxu0 %v272
  %1191 = vmatmul.mubr.bf16.gmra.mrb[0].mxu0 %v271
  %v1192 = vpop.f32.mrb[0].mxu0
  %v1193 = vadd.f32 %v1080, %v1192
  %v1194 = vpop.f32.mrb[0].mxu0
  %v1195 = vpop.f32.mrb[0].mxu0
  %v1196 = vadd.f32 %v1083, %v1195
  %v1197 = vpop.f32.mrb[0].mxu0
  %1198 = vmatprep.mubr.bf16.mxu0 %v281
  %1199 = vmatmul.mubr.bf16.gmra.mrb[0].mxu0 %v280
  %v1200 = vpop.f32.mrb[0].mxu0
  %v1201 = vadd.f32 %v1088, %v1200
  %v1202 = vpop.f32.mrb[0].mxu0
  %v1203 = vpop.f32.mrb[0].mxu0
  %v1204 = vadd.f32 %v1091, %v1203
  %v1205 = vpop.f32.mrb[0].mxu0
  %1206 = vdwg.mxu0
  %1207 = vmatprep.subr.bf16.mxu0 0
  %1208 = vmatpush1.bf16.msra.mxu0 %v772
  %1209 = vmatprep.subr.bf16.mxu0 0
  %1210 = vmatpush1.bf16.msra.mxu0 %v773
  %1211 = vmatprep.subr.bf16.mxu0 0
  %1212 = vmatpush1.bf16.msra.mxu0 %v774
  %1213 = vmatprep.subr.bf16.mxu0 0
  %1214 = vmatpush1.bf16.msra.mxu0 %v775
  %1215 = vmatprep.subr.bf16.mxu0 0
  %1216 = vmatpush1.bf16.msra.mxu0 %v776
  %1217 = vmatprep.subr.bf16.mxu0 0
  %1218 = vmatpush1.bf16.msra.mxu0 %v777
  %1219 = vmatprep.subr.bf16.mxu0 0
  %1220 = vmatpush1.bf16.msra.mxu0 %v778
  %1221 = vmatprep.subr.bf16.mxu0 0
  %1222 = vmatpush1.bf16.msra.mxu0 %v779
  %1223 = vmatprep.subr.bf16.mxu0 0
  %1224 = vmatpush1.bf16.msra.mxu0 %v780
  %1225 = vmatprep.subr.bf16.mxu0 0
  %1226 = vmatpush1.bf16.msra.mxu0 %v781
  %1227 = vmatprep.subr.bf16.mxu0 0
  %1228 = vmatpush1.bf16.msra.mxu0 %v782
  %1229 = vmatprep.subr.bf16.mxu0 0
  %1230 = vmatpush1.bf16.msra.mxu0 %v783
  %1231 = vmatprep.subr.bf16.mxu0 0
  %1232 = vmatpush1.bf16.msra.mxu0 %v784
  %1233 = vmatprep.subr.bf16.mxu0 0
  %1234 = vmatpush1.bf16.msra.mxu0 %v785
  %1235 = vmatprep.subr.bf16.mxu0 0
  %1236 = vmatpush1.bf16.msra.mxu0 %v786
  %1237 = vmatprep.subr.bf16.mxu0 0
  %1238 = vmatpush1.bf16.msra.mxu0 %v787
  %1239 = vmatprep.mubr.bf16.mxu0 %v202
  %1240 = vmatmul.mubr.bf16.gmra.mrb[0].mxu0 %v201
  %v1241 = vpop.f32.mrb[0].mxu0
  %v1242 = vadd.f32 %v1129, %v1241
  %v1243 = vpop.f32.mrb[0].mxu0
  %v1244 = vpop.f32.mrb[0].mxu0
  %v1245 = vadd.f32 %v1132, %v1244
  %v1246 = vpop.f32.mrb[0].mxu0
  %1247 = vmatprep.mubr.bf16.mxu0 %v211
  %1248 = vmatmul.mubr.bf16.gmra.mrb[0].mxu0 %v210
  %v1249 = vpop.f32.mrb[0].mxu0
  %v1250 = vadd.f32 %v1137, %v1249
  %v1251 = vpop.f32.mrb[0].mxu0
  %v1252 = vpop.f32.mrb[0].mxu0
  %v1253 = vadd.f32 %v1140, %v1252
  %v1254 = vpop.f32.mrb[0].mxu0
  %1255 = vmatprep.mubr.bf16.mxu0 %v220
  %1256 = vmatmul.mubr.bf16.gmra.mrb[0].mxu0 %v219
  %v1257 = vpop.f32.mrb[0].mxu0
  %v1258 = vadd.f32 %v1145, %v1257
  %v1259 = vpop.f32.mrb[0].mxu0
  %v1260 = vpop.f32.mrb[0].mxu0
  %v1261 = vadd.f32 %v1148, %v1260
  %v1262 = vpop.f32.mrb[0].mxu0
  %1263 = vmatprep.mubr.bf16.mxu0 %v229
  %1264 = vmatmul.mubr.bf16.gmra.mrb[0].mxu0 %v228
  %v1265 = vpop.f32.mrb[0].mxu0
  %v1266 = vadd.f32 %v1153, %v1265
  %v1267 = vpop.f32.mrb[0].mxu0
  %v1268 = vpop.f32.mrb[0].mxu0
  %v1269 = vadd.f32 %v1156, %v1268
  %v1270 = vpop.f32.mrb[0].mxu0
  %1271 = vmatprep.mubr.bf16.mxu0 %v238
  %1272 = vmatmul.mubr.bf16.gmra.mrb[0].mxu0 %v237
  %v1273 = vpop.f32.mrb[0].mxu0
  %v1274 = vadd.f32 %v1161, %v1273
  %v1275 = vpop.f32.mrb[0].mxu0
  %v1276 = vpop.f32.mrb[0].mxu0
  %v1277 = vadd.f32 %v1164, %v1276
  %v1278 = vpop.f32.mrb[0].mxu0
  %1279 = vmatprep.mubr.bf16.mxu0 %v247
  %1280 = vmatmul.mubr.bf16.gmra.mrb[0].mxu0 %v246
  %v1281 = vpop.f32.mrb[0].mxu0
  %v1282 = vadd.f32 %v1169, %v1281
  %v1283 = vpop.f32.mrb[0].mxu0
  %v1284 = vpop.f32.mrb[0].mxu0
  %v1285 = vadd.f32 %v1172, %v1284
  %v1286 = vpop.f32.mrb[0].mxu0
  %1287 = vmatprep.mubr.bf16.mxu0 %v256
  %1288 = vmatmul.mubr.bf16.gmra.mrb[0].mxu0 %v255
  %v1289 = vpop.f32.mrb[0].mxu0
  %v1290 = vadd.f32 %v1177, %v1289
  %v1291 = vpop.f32.mrb[0].mxu0
  %v1292 = vpop.f32.mrb[0].mxu0
  %v1293 = vadd.f32 %v1180, %v1292
  %v1294 = vpop.f32.mrb[0].mxu0
  %1295 = vmatprep.mubr.bf16.mxu0 %v265
  %1296 = vmatmul.mubr.bf16.gmra.mrb[0].mxu0 %v264
  %v1297 = vpop.f32.mrb[0].mxu0
  %v1298 = vadd.f32 %v1185, %v1297
  %v1299 = vpop.f32.mrb[0].mxu0
  %v1300 = vpop.f32.mrb[0].mxu0
  %v1301 = vadd.f32 %v1188, %v1300
  %v1302 = vpop.f32.mrb[0].mxu0
  %1303 = vmatprep.mubr.bf16.mxu0 %v274
  %1304 = vmatmul.mubr.bf16.gmra.mrb[0].mxu0 %v273
  %v1305 = vpop.f32.mrb[0].mxu0
  %v1306 = vadd.f32 %v1193, %v1305
  %v1307 = vpop.f32.mrb[0].mxu0
  %v1308 = vpop.f32.mrb[0].mxu0
  %v1309 = vadd.f32 %v1196, %v1308
  %v1310 = vpop.f32.mrb[0].mxu0
  %1311 = vmatprep.mubr.bf16.mxu0 %v283
  %1312 = vmatmul.mubr.bf16.gmra.mrb[0].mxu0 %v282
  %v1313 = vpop.f32.mrb[0].mxu0
  %v1314 = vadd.f32 %v1201, %v1313
  %v1315 = vpop.f32.mrb[0].mxu0
  %v1316 = vpop.f32.mrb[0].mxu0
  %v1317 = vadd.f32 %v1204, %v1316
  %v1318 = vpop.f32.mrb[0].mxu0
  %1319 = vdwg.mxu0
  %1320 = vmatprep.subr.bf16.mxu0 0
  %1321 = vmatpush1.bf16.msra.mxu0 %v788
  %1322 = vmatprep.subr.bf16.mxu0 0
  %1323 = vmatpush1.bf16.msra.mxu0 %v789
  %1324 = vmatprep.subr.bf16.mxu0 0
  %1325 = vmatpush1.bf16.msra.mxu0 %v790
  %1326 = vmatprep.subr.bf16.mxu0 0
  %1327 = vmatpush1.bf16.msra.mxu0 %v791
  %1328 = vmatprep.subr.bf16.mxu0 0
  %1329 = vmatpush1.bf16.msra.mxu0 %v792
  %1330 = vmatprep.subr.bf16.mxu0 0
  %1331 = vmatpush1.bf16.msra.mxu0 %v793
  %1332 = vmatprep.subr.bf16.mxu0 0
  %1333 = vmatpush1.bf16.msra.mxu0 %v794
  %1334 = vmatprep.subr.bf16.mxu0 0
  %1335 = vmatpush1.bf16.msra.mxu0 %v795
  %1336 = vmatprep.subr.bf16.mxu0 0
  %1337 = vmatpush1.bf16.msra.mxu0 0
  %1338 = vmatprep.subr.bf16.mxu0 0
  %1339 = vmatpush1.bf16.msra.mxu0 0
  %1340 = vmatprep.subr.bf16.mxu0 0
  %1341 = vmatpush1.bf16.msra.mxu0 0
  %1342 = vmatprep.subr.bf16.mxu0 0
  %1343 = vmatpush1.bf16.msra.mxu0 0
  %1344 = vmatprep.subr.bf16.mxu0 0
  %1345 = vmatpush1.bf16.msra.mxu0 0
  %1346 = vmatprep.subr.bf16.mxu0 0
  %1347 = vmatpush1.bf16.msra.mxu0 0
  %1348 = vmatprep.subr.bf16.mxu0 0
  %1349 = vmatpush1.bf16.msra.mxu0 0
  %1350 = vmatprep.subr.bf16.mxu0 0
  %1351 = vmatpush1.bf16.msra.mxu0 0
  %1352 = vmatprep.mubr.bf16.mxu0 0
  %1353 = vmatmul.mubr.bf16.gmra.mrb[0].mxu0 %v203
  %v1354 = vpop.f32.mrb[0].mxu0
  %v1355 = vadd.f32 %v1242, %v1354
  %v1356 = vpop.f32.mrb[0].mxu0
  %v1357 = vpop.f32.mrb[0].mxu0
  %v1358 = vadd.f32 %v1245, %v1357
  %v1359 = vpop.f32.mrb[0].mxu0
  %1360 = vmatprep.mubr.bf16.mxu0 0
  %1361 = vmatmul.mubr.bf16.gmra.mrb[0].mxu0 %v212
  %v1362 = vpop.f32.mrb[0].mxu0
  %v1363 = vadd.f32 %v1250, %v1362
  %v1364 = vpop.f32.mrb[0].mxu0
  %v1365 = vpop.f32.mrb[0].mxu0
  %v1366 = vadd.f32 %v1253, %v1365
  %v1367 = vpop.f32.mrb[0].mxu0
  %1368 = vmatprep.mubr.bf16.mxu0 0
  %1369 = vmatmul.mubr.bf16.gmra.mrb[0].mxu0 %v221
  %v1370 = vpop.f32.mrb[0].mxu0
  %v1371 = vadd.f32 %v1258, %v1370
  %v1372 = vpop.f32.mrb[0].mxu0
  %v1373 = vpop.f32.mrb[0].mxu0
  %v1374 = vadd.f32 %v1261, %v1373
  %v1375 = vpop.f32.mrb[0].mxu0
  %1376 = vmatprep.mubr.bf16.mxu0 0
  %1377 = vmatmul.mubr.bf16.gmra.mrb[0].mxu0 %v230
  %v1378 = vpop.f32.mrb[0].mxu0
  %v1379 = vadd.f32 %v1266, %v1378
  %v1380 = vpop.f32.mrb[0].mxu0
  %v1381 = vpop.f32.mrb[0].mxu0
  %v1382 = vadd.f32 %v1269, %v1381
  %v1383 = vpop.f32.mrb[0].mxu0
  %1384 = vmatprep.mubr.bf16.mxu0 0
  %1385 = vmatmul.mubr.bf16.gmra.mrb[0].mxu0 %v239
  %v1386 = vpop.f32.mrb[0].mxu0
  %v1387 = vadd.f32 %v1274, %v1386
  %v1388 = vpop.f32.mrb[0].mxu0
  %v1389 = vpop.f32.mrb[0].mxu0
  %v1390 = vadd.f32 %v1277, %v1389
  %v1391 = vpop.f32.mrb[0].mxu0
  %1392 = vmatprep.mubr.bf16.mxu0 0
  %1393 = vmatmul.mubr.bf16.gmra.mrb[0].mxu0 %v248
  %v1394 = vpop.f32.mrb[0].mxu0
  %v1395 = vadd.f32 %v1282, %v1394
  %v1396 = vpop.f32.mrb[0].mxu0
  %v1397 = vpop.f32.mrb[0].mxu0
  %v1398 = vadd.f32 %v1285, %v1397
  %v1399 = vpop.f32.mrb[0].mxu0
  %1400 = vmatprep.mubr.bf16.mxu0 0
  %1401 = vmatmul.mubr.bf16.gmra.mrb[0].mxu0 %v257
  %v1402 = vpop.f32.mrb[0].mxu0
  %v1403 = vadd.f32 %v1290, %v1402
  %v1404 = vpop.f32.mrb[0].mxu0
  %v1405 = vpop.f32.mrb[0].mxu0
  %v1406 = vadd.f32 %v1293, %v1405
  %v1407 = vpop.f32.mrb[0].mxu0
  %1408 = vmatprep.mubr.bf16.mxu0 0
  %1409 = vmatmul.mubr.bf16.gmra.mrb[0].mxu0 %v266
  %v1410 = vpop.f32.mrb[0].mxu0
  %v1411 = vadd.f32 %v1298, %v1410
  %v1412 = vpop.f32.mrb[0].mxu0
  %v1413 = vpop.f32.mrb[0].mxu0
  %v1414 = vadd.f32 %v1301, %v1413
  %v1415 = vpop.f32.mrb[0].mxu0
  %1416 = vmatprep.mubr.bf16.mxu0 0
  %1417 = vmatmul.mubr.bf16.gmra.mrb[0].mxu0 %v275
  %v1418 = vpop.f32.mrb[0].mxu0
  %v1419 = vadd.f32 %v1306, %v1418
  %v1420 = vpop.f32.mrb[0].mxu0
  %v1421 = vpop.f32.mrb[0].mxu0
  %v1422 = vadd.f32 %v1309, %v1421
  %v1423 = vpop.f32.mrb[0].mxu0
  %1424 = vmatprep.mubr.bf16.mxu0 0
  %1425 = vmatmul.mubr.bf16.gmra.mrb[0].mxu0 %v284
  %v1426 = vpop.f32.mrb[0].mxu0
  %v1427 = vadd.f32 %v1314, %v1426
  %v1428 = vpop.f32.mrb[0].mxu0
  %v1429 = vpop.f32.mrb[0].mxu0
  %v1430 = vadd.f32 %v1317, %v1429
  %v1431 = vpop.f32.mrb[0].mxu0
  %1432 = vdwg.mxu0
  %1433 = vst [vmem:[%s3] sm:$0xff] %v1355
  %1434 = vst [vmem:[%s3 + $0x8] sm:$0xff] %v1358
  %1435 = vst [vmem:[%s3 + $0x10] sm:$0xff] %v1363
  %1436 = vst [vmem:[%s3 + $0x18] sm:$0xff] %v1366
  %1437 = vst [vmem:[%s3 + $0x20] sm:$0xff] %v1371
  %1438 = vst [vmem:[%s3 + $0x28] sm:$0xff] %v1374
  %1439 = vst [vmem:[%s3 + $0x30] sm:$0xff] %v1379
  %1440 = vst [vmem:[%s3 + $0x38] sm:$0xff] %v1382
  %1441 = vst [vmem:[%s3 + $0x40] sm:$0xff] %v1387
  %1442 = vst [vmem:[%s3 + $0x48] sm:$0xff] %v1390
  %1443 = vst [vmem:[%s3 + $0x50] sm:$0xff] %v1395
  %1444 = vst [vmem:[%s3 + $0x58] sm:$0xff] %v1398
  %1445 = vst [vmem:[%s3 + $0x60] sm:$0xff] %v1403
  %1446 = vst [vmem:[%s3 + $0x68] sm:$0xff] %v1406
  %1447 = vst [vmem:[%s3 + $0x70] sm:$0xff] %v1411
  %1448 = vst [vmem:[%s3 + $0x78] sm:$0xff] %v1414
  %1449 = vst [vmem:[%s3 + $0x80] sm:$0xff] %v1419
  %1450 = vst [vmem:[%s3 + $0x88] sm:$0xff] %v1422
  %1451 = vst [vmem:[%s3 + $0x90] sm:$0xff] %v1427
  %1452 = vst [vmem:[%s3 + $0x98] sm:$0xff] %v1430
  // Predicated region
  $region14: #{model_forward.2} parent=0 // pred_check
    _
  $region15: #{model_forward.2} parent=0 // pred_check_branch
    %1454 = sbr.rel (0) target = $region17
  $region16: #{model_forward.2} parent=0 // pred_region
    _
  $region17: #{model_forward.2} parent=0 // pred_fallthru
    _
  // Predicated region
  $region18: #{model_forward.2} parent=0 // pred_check
    _
  $region19: #{model_forward.2} parent=0 // pred_check_branch
    %1456 = sbr.rel (0) target = $region21
  $region20: #{model_forward.2} parent=0 // pred_region
    _
  $region21: #{model_forward.2} parent=0 // pred_fallthru
    _

// kernel: model_forward.3
$region0: #{model_forward.3}
  #allocation0 [shape = 'u32[]', space=smem, size = 0x4, offset = 0x4, fixed_abs, tag = 'smem constant byte address 0x4 - core index']
  #allocation1 [shape = 'u32[144,128]{1,0:T(1,128)}', space=vmem, size = 0x12000, scoped, tag = 'internal scratch']
  #allocation2 [shape = 'f32[80,128]{1,0:T(8,128)}', space=vmem, size = 0xa000, scoped, tag = 'scratch operand']
  #allocation3 [shape = 'f32[80,128]{1,0:T(8,128)}', space=vmem, size = 0xa000, scoped, tag = 'scratch operand']
  %s0 = inlined_call_operand.hbm [shape: f32[2,16,128], index: 0, kind: input, shape index: {}]
  %s1 = inlined_call_operand.hbm [shape: f32[9,16,10], index: 1, kind: input, shape index: {}]
  %s2 = inlined_call_operand.hbm [shape: f32[9,1,128], index: 2, kind: input, shape index: {}]
  %s3 = inlined_call_operand.hbm [shape: f32[9,1,128], index: 3, kind: input, shape index: {}]
  %s4 = inlined_call_operand.hbm [shape: bf16[9,128,384], index: 4, kind: input, shape index: {}]
  %s5 = inlined_call_operand.hbm [shape: f32[9,1,384], index: 5, kind: input, shape index: {}]
  %s6 = inlined_call_operand.hbm [shape: bf16[9,128,10], index: 6, kind: input, shape index: {}]
  %s7 = inlined_call_operand.hbm [shape: bf16[9,128,128], index: 7, kind: input, shape index: {}]
  %s8 = inlined_call_operand.hbm [shape: f32[9,1,128], index: 8, kind: input, shape index: {}]
  %s9 = inlined_call_operand.hbm [shape: f32[9,1,128], index: 9, kind: input, shape index: {}]
  %s10 = inlined_call_operand.hbm [shape: f32[9,1,128], index: 10, kind: input, shape index: {}]
  %s11 = inlined_call_operand.hbm [shape: bf16[9,128,512], index: 11, kind: input, shape index: {}]
  %s12 = inlined_call_operand.hbm [shape: f32[9,1,512], index: 12, kind: input, shape index: {}]
  %s13 = inlined_call_operand.hbm [shape: bf16[9,512,128], index: 13, kind: input, shape index: {}]
  %s14 = inlined_call_operand.hbm [shape: f32[9,1,128], index: 14, kind: input, shape index: {}]
  %s15 = inlined_call_operand.hbm [shape: f32[2,16,128], index: 15, kind: output, shape index: {0}]
  %s16 = inlined_call_operand.hbm [shape: f32[2,16,128], index: 16, kind: output, shape index: {1}]
  %17 = xla_tuple %s15, %s16
  %s18 = sld [smem:[#allocation0]]
  $region173: #{model_forward.3} parent=0
    _
  %s20 = ssub.s32 1, %s18
  %s21 = scalar_select 0, %s20, %s18
  $region1: #{model_forward.3} parent=0
    #allocation4 [shape = 'u8[16384]{0}', space=vmem, size = 0x4000, scoped, tag = 'input window, operand 0']
    #allocation5 [shape = 's32[2]{0}', space=sflag, size = 0x8, scoped, tag = 'scoped memory for model_forward.3']
    #allocation6 [shape = 's32[2]{0}', space=sflag, size = 0x8, scoped, tag = 'scoped memory for model_forward.3']
    #allocation7 [shape = 'u8[16384]{0}', space=vmem, size = 0x4000, scoped, tag = 'input window, operand 1']
    #allocation8 [shape = 's32[2]{0}', space=sflag, size = 0x8, scoped, tag = 'scoped memory for model_forward.3']
    #allocation9 [shape = 'u8[1024]{0}', space=vmem, size = 0x400, scoped, tag = 'input window, operand 2']
    #allocation10 [shape = 'u8[1024]{0}', space=vmem, size = 0x400, scoped, tag = 'input window, operand 3']
    #allocation11 [shape = 's32[2]{0}', space=sflag, size = 0x8, scoped, tag = 'scoped memory for model_forward.3']
    #allocation12 [shape = 'u8[196608]{0}', space=vmem, size = 0x30000, scoped, tag = 'input window, operand 4']
    #allocation13 [shape = 'u8[3072]{0}', space=vmem, size = 0xc00, scoped, tag = 'input window, operand 5']
    #allocation14 [shape = 's32[2]{0}', space=sflag, size = 0x8, scoped, tag = 'scoped memory for model_forward.3']
    #allocation15 [shape = 'u8[65536]{0}', space=vmem, size = 0x10000, scoped, tag = 'input window, operand 6']
    #allocation16 [shape = 'u8[65536]{0}', space=vmem, size = 0x10000, scoped, tag = 'input window, operand 7']
    #allocation17 [shape = 's32[2]{0}', space=sflag, size = 0x8, scoped, tag = 'scoped memory for model_forward.3']
    #allocation18 [shape = 'u8[1024]{0}', space=vmem, size = 0x400, scoped, tag = 'input window, operand 8']
    #allocation19 [shape = 'u8[1024]{0}', space=vmem, size = 0x400, scoped, tag = 'input window, operand 9']
    #allocation20 [shape = 's32[2]{0}', space=sflag, size = 0x8, scoped, tag = 'scoped memory for model_forward.3']
    #allocation21 [shape = 'u8[1024]{0}', space=vmem, size = 0x400, scoped, tag = 'input window, operand 10']
    #allocation22 [shape = 'u8[262144]{0}', space=vmem, size = 0x40000, scoped, tag = 'input window, operand 11']
    #allocation23 [shape = 's32[2]{0}', space=sflag, size = 0x8, scoped, tag = 'scoped memory for model_forward.3']
    #allocation24 [shape = 'u8[4096]{0}', space=vmem, size = 0x1000, scoped, tag = 'input window, operand 12']
    #allocation25 [shape = 'u8[262144]{0}', space=vmem, size = 0x40000, scoped, tag = 'input window, operand 13']
    #allocation26 [shape = 's32[2]{0}', space=sflag, size = 0x8, scoped, tag = 'scoped memory for model_forward.3']
    #allocation27 [shape = 'u8[1024]{0}', space=vmem, size = 0x400, scoped, tag = 'input window, operand 14']
    #allocation28 [shape = 'u8[16384]{0}', space=vmem, size = 0x4000, scoped, tag = 'output window, operand 0']
    #allocation29 [shape = 'u8[16384]{0}', space=vmem, size = 0x4000, scoped, tag = 'output window, operand 1']
    #allocation30 [shape = 's32[2]{0}', space=sflag, size = 0x8, scoped, tag = 'scoped memory for model_forward.3']
    %22 = vsyncpa [#allocation5], 0
    %s23 = scalar_lea.sflag [#allocation5], 1
    %24 = vsyncpa %s23, 0
    %25 = vsyncpa [#allocation8], 0
    %s26 = scalar_lea.sflag [#allocation8], 1
    %27 = vsyncpa %s26, 0
    %28 = vsyncpa [#allocation11], 0
    %s29 = scalar_lea.sflag [#allocation11], 1
    %30 = vsyncpa %s29, 0
    %31 = vsyncpa [#allocation14], 0
    %s32 = scalar_lea.sflag [#allocation14], 1
    %33 = vsyncpa %s32, 0
    %34 = vsyncpa [#allocation17], 0
    %s35 = scalar_lea.sflag [#allocation17], 1
    %36 = vsyncpa %s35, 0
    %37 = vsyncpa [#allocation20], 0
    %s38 = scalar_lea.sflag [#allocation20], 1
    %39 = vsyncpa %s38, 0
    %40 = vsyncpa [#allocation23], 0
    %s41 = scalar_lea.sflag [#allocation23], 1
    %42 = vsyncpa %s41, 0
    %43 = vsyncpa [#allocation26], 0
    %s44 = scalar_lea.sflag [#allocation26], 1
    %45 = vsyncpa %s44, 0
    %46 = vsyncpa [#allocation6], 0
    %s47 = scalar_lea.sflag [#allocation6], 1
    %48 = vsyncpa %s47, 0
    %49 = vsyncpa [#allocation30], 0
    %s50 = scalar_lea.sflag [#allocation30], 1
    %51 = vsyncpa %s50, 0
    loop: start=0, step=1, limit=20
    $region2: #{model_forward.3} parent=1 // loop_pre_header
      _
    $region3: #{model_forward.3} parent=1 // loop_header
      %s53 = sphi 0, %s57
      %p54 = scmp.ge.s32.totalorder %s53, 20
      %s60 = sphi 0, %s72
      %s61 = sphi 0, %s68
      %s62 = sphi 0, %s60
      %s63 = sphi 0, %s61
      %s64 = sphi 0, %s62
      %s65 = sphi 0, %s63
      %s75 = sphi 0, %s77
      %s78 = sphi 0, %s75
      %s79 = sphi 0, %s78
      %s95 = sphi 0, %s79
      %s101 = sphi 0, %s103
      %s104 = sphi 0, %s101
      %s105 = sphi 0, %s104
      %s121 = sphi 0, %s105
      %s127 = sphi 0, %s129
      %s130 = sphi 0, %s127
      %s131 = sphi 0, %s130
      %s147 = sphi 0, %s131
      %s153 = sphi 0, %s155
      %s156 = sphi 0, %s153
      %s157 = sphi 0, %s156
      %s173 = sphi 0, %s157
      %s179 = sphi 0, %s181
      %s182 = sphi 0, %s179
      %s183 = sphi 0, %s182
      %s199 = sphi 0, %s183
      %s205 = sphi 0, %s207
      %s208 = sphi 0, %s205
      %s209 = sphi 0, %s208
      %s225 = sphi 0, %s209
      %s231 = sphi 0, %s233
      %s234 = sphi 0, %s231
      %s235 = sphi 0, %s234
      %s251 = sphi 0, %s235
      %s257 = sphi 0, %s259
      %s260 = sphi 0, %s257
      %s261 = sphi 0, %s260
      %s277 = sphi 0, %s261
      %s283 = sphi 0, %s285
      %s286 = sphi 0, %s283
      %s287 = sphi 0, %s286
      %s303 = sphi 0, %s287
      %s309 = sphi 0, %s311
      %s312 = sphi 0, %s309
      %s313 = sphi 0, %s312
      %s329 = sphi 0, %s313
      %s335 = sphi 0, %s337
      %s338 = sphi 0, %s335
      %s339 = sphi 0, %s338
      %s355 = sphi 0, %s339
      %s361 = sphi 0, %s363
      %s364 = sphi 0, %s361
      %s365 = sphi 0, %s364
      %s381 = sphi 0, %s365
      %s387 = sphi 0, %s389
      %s390 = sphi 0, %s387
      %s391 = sphi 0, %s390
      %s407 = sphi 0, %s391
      %s413 = sphi 0, %s415
      %s416 = sphi 0, %s413
      %s417 = sphi 0, %s416
      %s433 = sphi 0, %s417
      %s439 = sphi 0, %s441
      %s442 = sphi 0, %s439
      %s443 = sphi 0, %s442
      %s459 = sphi 0, %s443
      %s465 = sphi 0, %s467
      %s468 = sphi 0, %s465
      %s469 = sphi 0, %s468
      %s485 = sphi 0, %s469
      %s491 = sphi 0, %s493
      %s494 = sphi 0, %s491
      %s495 = sphi 0, %s494
      %s511 = sphi 0, %s495
    $region4: #{model_forward.3} parent=1 // loop_header_branch
      %56 = sbr.rel (%p54) target = $region8
    $region5: #{model_forward.3} parent=1 // loop_body
      %s58 = ssub.s32 %s53, 1
      %s59 = ssub.s32 %s53, 2
      %s66 = sadd.s32 1, %s61
      %p67 = scmp.ge.s32.totalorder %s66, 9
      %s68 = scalar_select %p67, 0, %s66
      %s69 = sadd.s32 1, %s60
      %s70 = scalar_select %p67, %s69, %s60
      %p71 = scmp.ge.s32.totalorder %s70, 2
      %s72 = scalar_select %p71, 0, %s70
      %s73 = ssub.s32 %s60, %s72
      %p74 = scmp.eq.s32.totalorder %s73, 0
      %s76 = sadd.s32 %s75, 1
      %s77 = scalar_select %p74, %s75, %s76
      %p80 = pneg %p74
      %p81 = scmp.eq.s32.totalorder %s53, 17
      %p82 = por %p80, %p81
      %p83 = scmp.ne.s32.totalorder %s75, %s78
      %p84 = scmp.eq.s32.totalorder %s53, 0
      %p85 = por %p83, %p84
      %p86 = scmp.ne.s32.totalorder %s75, %s78
      %p87 = scmp.eq.s32.totalorder %s58, 17
      %p88 = por %p86, %p87
      %p89 = scmp.ne.s32.totalorder %s78, %s79
      %p90 = scmp.eq.s32.totalorder %s58, 0
      %p91 = por %p89, %p90
      %p92 = scmp.ne.s32.totalorder %s78, %s79
      %p93 = scmp.eq.s32.totalorder %s59, 17
      %p94 = por %p92, %p93
      %p96 = scmp.ne.s32.totalorder %s79, %s95
      %p97 = scmp.eq.s32.totalorder %s59, 0
      %p98 = por %p96, %p97
      %s99 = ssub.s32 %s61, %s68
      %p100 = scmp.eq.s32.totalorder %s99, 0
      %s102 = sadd.s32 %s101, 1
      %s103 = scalar_select %p100, %s101, %s102
      %p106 = pneg %p100
      %p107 = scmp.eq.s32.totalorder %s53, 17
      %p108 = por %p106, %p107
      %p109 = scmp.ne.s32.totalorder %s101, %s104
      %p110 = scmp.eq.s32.totalorder %s53, 0
      %p111 = por %p109, %p110
      %p112 = scmp.ne.s32.totalorder %s101, %s104
      %p113 = scmp.eq.s32.totalorder %s58, 17
      %p114 = por %p112, %p113
      %p115 = scmp.ne.s32.totalorder %s104, %s105
      %p116 = scmp.eq.s32.totalorder %s58, 0
      %p117 = por %p115, %p116
      %p118 = scmp.ne.s32.totalorder %s104, %s105
      %p119 = scmp.eq.s32.totalorder %s59, 17
      %p120 = por %p118, %p119
      %p122 = scmp.ne.s32.totalorder %s105, %s121
      %p123 = scmp.eq.s32.totalorder %s59, 0
      %p124 = por %p122, %p123
      %s125 = ssub.s32 %s61, %s68
      %p126 = scmp.eq.s32.totalorder %s125, 0
      %s128 = sadd.s32 %s127, 1
      %s129 = scalar_select %p126, %s127, %s128
      %p132 = pneg %p126
      %p133 = scmp.eq.s32.totalorder %s53, 17
      %p134 = por %p132, %p133
      %p135 = scmp.ne.s32.totalorder %s127, %s130
      %p136 = scmp.eq.s32.totalorder %s53, 0
      %p137 = por %p135, %p136
      %p138 = scmp.ne.s32.totalorder %s127, %s130
      %p139 = scmp.eq.s32.totalorder %s58, 17
      %p140 = por %p138, %p139
      %p141 = scmp.ne.s32.totalorder %s130, %s131
      %p142 = scmp.eq.s32.totalorder %s58, 0
      %p143 = por %p141, %p142
      %p144 = scmp.ne.s32.totalorder %s130, %s131
      %p145 = scmp.eq.s32.totalorder %s59, 17
      %p146 = por %p144, %p145
      %p148 = scmp.ne.s32.totalorder %s131, %s147
      %p149 = scmp.eq.s32.totalorder %s59, 0
      %p150 = por %p148, %p149
      %s151 = ssub.s32 %s61, %s68
      %p152 = scmp.eq.s32.totalorder %s151, 0
      %s154 = sadd.s32 %s153, 1
      %s155 = scalar_select %p152, %s153, %s154
      %p158 = pneg %p152
      %p159 = scmp.eq.s32.totalorder %s53, 17
      %p160 = por %p158, %p159
      %p161 = scmp.ne.s32.totalorder %s153, %s156
      %p162 = scmp.eq.s32.totalorder %s53, 0
      %p163 = por %p161, %p162
      %p164 = scmp.ne.s32.totalorder %s153, %s156
      %p165 = scmp.eq.s32.totalorder %s58, 17
      %p166 = por %p164, %p165
      %p167 = scmp.ne.s32.totalorder %s156, %s157
      %p168 = scmp.eq.s32.totalorder %s58, 0
      %p169 = por %p167, %p168
      %p170 = scmp.ne.s32.totalorder %s156, %s157
      %p171 = scmp.eq.s32.totalorder %s59, 17
      %p172 = por %p170, %p171
      %p174 = scmp.ne.s32.totalorder %s157, %s173
      %p175 = scmp.eq.s32.totalorder %s59, 0
      %p176 = por %p174, %p175
      %s177 = ssub.s32 %s61, %s68
      %p178 = scmp.eq.s32.totalorder %s177, 0
      %s180 = sadd.s32 %s179, 1
      %s181 = scalar_select %p178, %s179, %s180
      %p184 = pneg %p178
      %p185 = scmp.eq.s32.totalorder %s53, 17
      %p186 = por %p184, %p185
      %p187 = scmp.ne.s32.totalorder %s179, %s182
      %p188 = scmp.eq.s32.totalorder %s53, 0
      %p189 = por %p187, %p188
      %p190 = scmp.ne.s32.totalorder %s179, %s182
      %p191 = scmp.eq.s32.totalorder %s58, 17
      %p192 = por %p190, %p191
      %p193 = scmp.ne.s32.totalorder %s182, %s183
      %p194 = scmp.eq.s32.totalorder %s58, 0
      %p195 = por %p193, %p194
      %p196 = scmp.ne.s32.totalorder %s182, %s183
      %p197 = scmp.eq.s32.totalorder %s59, 17
      %p198 = por %p196, %p197
      %p200 = scmp.ne.s32.totalorder %s183, %s199
      %p201 = scmp.eq.s32.totalorder %s59, 0
      %p202 = por %p200, %p201
      %s203 = ssub.s32 %s61, %s68
      %p204 = scmp.eq.s32.totalorder %s203, 0
      %s206 = sadd.s32 %s205, 1
      %s207 = scalar_select %p204, %s205, %s206
      %p210 = pneg %p204
      %p211 = scmp.eq.s32.totalorder %s53, 17
      %p212 = por %p210, %p211
      %p213 = scmp.ne.s32.totalorder %s205, %s208
      %p214 = scmp.eq.s32.totalorder %s53, 0
      %p215 = por %p213, %p214
      %p216 = scmp.ne.s32.totalorder %s205, %s208
      %p217 = scmp.eq.s32.totalorder %s58, 17
      %p218 = por %p216, %p217
      %p219 = scmp.ne.s32.totalorder %s208, %s209
      %p220 = scmp.eq.s32.totalorder %s58, 0
      %p221 = por %p219, %p220
      %p222 = scmp.ne.s32.totalorder %s208, %s209
      %p223 = scmp.eq.s32.totalorder %s59, 17
      %p224 = por %p222, %p223
      %p226 = scmp.ne.s32.totalorder %s209, %s225
      %p227 = scmp.eq.s32.totalorder %s59, 0
      %p228 = por %p226, %p227
      %s229 = ssub.s32 %s61, %s68
      %p230 = scmp.eq.s32.totalorder %s229, 0
      %s232 = sadd.s32 %s231, 1
      %s233 = scalar_select %p230, %s231, %s232
      %p236 = pneg %p230
      %p237 = scmp.eq.s32.totalorder %s53, 17
      %p238 = por %p236, %p237
      %p239 = scmp.ne.s32.totalorder %s231, %s234
      %p240 = scmp.eq.s32.totalorder %s53, 0
      %p241 = por %p239, %p240
      %p242 = scmp.ne.s32.totalorder %s231, %s234
      %p243 = scmp.eq.s32.totalorder %s58, 17
      %p244 = por %p242, %p243
      %p245 = scmp.ne.s32.totalorder %s234, %s235
      %p246 = scmp.eq.s32.totalorder %s58, 0
      %p247 = por %p245, %p246
      %p248 = scmp.ne.s32.totalorder %s234, %s235
      %p249 = scmp.eq.s32.totalorder %s59, 17
      %p250 = por %p248, %p249
      %p252 = scmp.ne.s32.totalorder %s235, %s251
      %p253 = scmp.eq.s32.totalorder %s59, 0
      %p254 = por %p252, %p253
      %s255 = ssub.s32 %s61, %s68
      %p256 = scmp.eq.s32.totalorder %s255, 0
      %s258 = sadd.s32 %s257, 1
      %s259 = scalar_select %p256, %s257, %s258
      %p262 = pneg %p256
      %p263 = scmp.eq.s32.totalorder %s53, 17
      %p264 = por %p262, %p263
      %p265 = scmp.ne.s32.totalorder %s257, %s260
      %p266 = scmp.eq.s32.totalorder %s53, 0
      %p267 = por %p265, %p266
      %p268 = scmp.ne.s32.totalorder %s257, %s260
      %p269 = scmp.eq.s32.totalorder %s58, 17
      %p270 = por %p268, %p269
      %p271 = scmp.ne.s32.totalorder %s260, %s261
      %p272 = scmp.eq.s32.totalorder %s58, 0
      %p273 = por %p271, %p272
      %p274 = scmp.ne.s32.totalorder %s260, %s261
      %p275 = scmp.eq.s32.totalorder %s59, 17
      %p276 = por %p274, %p275
      %p278 = scmp.ne.s32.totalorder %s261, %s277
      %p279 = scmp.eq.s32.totalorder %s59, 0
      %p280 = por %p278, %p279
      %s281 = ssub.s32 %s61, %s68
      %p282 = scmp.eq.s32.totalorder %s281, 0
      %s284 = sadd.s32 %s283, 1
      %s285 = scalar_select %p282, %s283, %s284
      %p288 = pneg %p282
      %p289 = scmp.eq.s32.totalorder %s53, 17
      %p290 = por %p288, %p289
      %p291 = scmp.ne.s32.totalorder %s283, %s286
      %p292 = scmp.eq.s32.totalorder %s53, 0
      %p293 = por %p291, %p292
      %p294 = scmp.ne.s32.totalorder %s283, %s286
      %p295 = scmp.eq.s32.totalorder %s58, 17
      %p296 = por %p294, %p295
      %p297 = scmp.ne.s32.totalorder %s286, %s287
      %p298 = scmp.eq.s32.totalorder %s58, 0
      %p299 = por %p297, %p298
      %p300 = scmp.ne.s32.totalorder %s286, %s287
      %p301 = scmp.eq.s32.totalorder %s59, 17
      %p302 = por %p300, %p301
      %p304 = scmp.ne.s32.totalorder %s287, %s303
      %p305 = scmp.eq.s32.totalorder %s59, 0
      %p306 = por %p304, %p305
      %s307 = ssub.s32 %s61, %s68
      %p308 = scmp.eq.s32.totalorder %s307, 0
      %s310 = sadd.s32 %s309, 1
      %s311 = scalar_select %p308, %s309, %s310
      %p314 = pneg %p308
      %p315 = scmp.eq.s32.totalorder %s53, 17
      %p316 = por %p314, %p315
      %p317 = scmp.ne.s32.totalorder %s309, %s312
      %p318 = scmp.eq.s32.totalorder %s53, 0
      %p319 = por %p317, %p318
      %p320 = scmp.ne.s32.totalorder %s309, %s312
      %p321 = scmp.eq.s32.totalorder %s58, 17
      %p322 = por %p320, %p321
      %p323 = scmp.ne.s32.totalorder %s312, %s313
      %p324 = scmp.eq.s32.totalorder %s58, 0
      %p325 = por %p323, %p324
      %p326 = scmp.ne.s32.totalorder %s312, %s313
      %p327 = scmp.eq.s32.totalorder %s59, 17
      %p328 = por %p326, %p327
      %p330 = scmp.ne.s32.totalorder %s313, %s329
      %p331 = scmp.eq.s32.totalorder %s59, 0
      %p332 = por %p330, %p331
      %s333 = ssub.s32 %s61, %s68
      %p334 = scmp.eq.s32.totalorder %s333, 0
      %s336 = sadd.s32 %s335, 1
      %s337 = scalar_select %p334, %s335, %s336
      %p340 = pneg %p334
      %p341 = scmp.eq.s32.totalorder %s53, 17
      %p342 = por %p340, %p341
      %p343 = scmp.ne.s32.totalorder %s335, %s338
      %p344 = scmp.eq.s32.totalorder %s53, 0
      %p345 = por %p343, %p344
      %p346 = scmp.ne.s32.totalorder %s335, %s338
      %p347 = scmp.eq.s32.totalorder %s58, 17
      %p348 = por %p346, %p347
      %p349 = scmp.ne.s32.totalorder %s338, %s339
      %p350 = scmp.eq.s32.totalorder %s58, 0
      %p351 = por %p349, %p350
      %p352 = scmp.ne.s32.totalorder %s338, %s339
      %p353 = scmp.eq.s32.totalorder %s59, 17
      %p354 = por %p352, %p353
      %p356 = scmp.ne.s32.totalorder %s339, %s355
      %p357 = scmp.eq.s32.totalorder %s59, 0
      %p358 = por %p356, %p357
      %s359 = ssub.s32 %s61, %s68
      %p360 = scmp.eq.s32.totalorder %s359, 0
      %s362 = sadd.s32 %s361, 1
      %s363 = scalar_select %p360, %s361, %s362
      %p366 = pneg %p360
      %p367 = scmp.eq.s32.totalorder %s53, 17
      %p368 = por %p366, %p367
      %p369 = scmp.ne.s32.totalorder %s361, %s364
      %p370 = scmp.eq.s32.totalorder %s53, 0
      %p371 = por %p369, %p370
      %p372 = scmp.ne.s32.totalorder %s361, %s364
      %p373 = scmp.eq.s32.totalorder %s58, 17
      %p374 = por %p372, %p373
      %p375 = scmp.ne.s32.totalorder %s364, %s365
      %p376 = scmp.eq.s32.totalorder %s58, 0
      %p377 = por %p375, %p376
      %p378 = scmp.ne.s32.totalorder %s364, %s365
      %p379 = scmp.eq.s32.totalorder %s59, 17
      %p380 = por %p378, %p379
      %p382 = scmp.ne.s32.totalorder %s365, %s381
      %p383 = scmp.eq.s32.totalorder %s59, 0
      %p384 = por %p382, %p383
      %s385 = ssub.s32 %s61, %s68
      %p386 = scmp.eq.s32.totalorder %s385, 0
      %s388 = sadd.s32 %s387, 1
      %s389 = scalar_select %p386, %s387, %s388
      %p392 = pneg %p386
      %p393 = scmp.eq.s32.totalorder %s53, 17
      %p394 = por %p392, %p393
      %p395 = scmp.ne.s32.totalorder %s387, %s390
      %p396 = scmp.eq.s32.totalorder %s53, 0
      %p397 = por %p395, %p396
      %p398 = scmp.ne.s32.totalorder %s387, %s390
      %p399 = scmp.eq.s32.totalorder %s58, 17
      %p400 = por %p398, %p399
      %p401 = scmp.ne.s32.totalorder %s390, %s391
      %p402 = scmp.eq.s32.totalorder %s58, 0
      %p403 = por %p401, %p402
      %p404 = scmp.ne.s32.totalorder %s390, %s391
      %p405 = scmp.eq.s32.totalorder %s59, 17
      %p406 = por %p404, %p405
      %p408 = scmp.ne.s32.totalorder %s391, %s407
      %p409 = scmp.eq.s32.totalorder %s59, 0
      %p410 = por %p408, %p409
      %s411 = ssub.s32 %s61, %s68
      %p412 = scmp.eq.s32.totalorder %s411, 0
      %s414 = sadd.s32 %s413, 1
      %s415 = scalar_select %p412, %s413, %s414
      %p418 = pneg %p412
      %p419 = scmp.eq.s32.totalorder %s53, 17
      %p420 = por %p418, %p419
      %p421 = scmp.ne.s32.totalorder %s413, %s416
      %p422 = scmp.eq.s32.totalorder %s53, 0
      %p423 = por %p421, %p422
      %p424 = scmp.ne.s32.totalorder %s413, %s416
      %p425 = scmp.eq.s32.totalorder %s58, 17
      %p426 = por %p424, %p425
      %p427 = scmp.ne.s32.totalorder %s416, %s417
      %p428 = scmp.eq.s32.totalorder %s58, 0
      %p429 = por %p427, %p428
      %p430 = scmp.ne.s32.totalorder %s416, %s417
      %p431 = scmp.eq.s32.totalorder %s59, 17
      %p432 = por %p430, %p431
      %p434 = scmp.ne.s32.totalorder %s417, %s433
      %p435 = scmp.eq.s32.totalorder %s59, 0
      %p436 = por %p434, %p435
      %s437 = ssub.s32 %s61, %s68
      %p438 = scmp.eq.s32.totalorder %s437, 0
      %s440 = sadd.s32 %s439, 1
      %s441 = scalar_select %p438, %s439, %s440
      %p444 = pneg %p438
      %p445 = scmp.eq.s32.totalorder %s53, 17
      %p446 = por %p444, %p445
      %p447 = scmp.ne.s32.totalorder %s439, %s442
      %p448 = scmp.eq.s32.totalorder %s53, 0
      %p449 = por %p447, %p448
      %p450 = scmp.ne.s32.totalorder %s439, %s442
      %p451 = scmp.eq.s32.totalorder %s58, 17
      %p452 = por %p450, %p451
      %p453 = scmp.ne.s32.totalorder %s442, %s443
      %p454 = scmp.eq.s32.totalorder %s58, 0
      %p455 = por %p453, %p454
      %p456 = scmp.ne.s32.totalorder %s442, %s443
      %p457 = scmp.eq.s32.totalorder %s59, 17
      %p458 = por %p456, %p457
      %p460 = scmp.ne.s32.totalorder %s443, %s459
      %p461 = scmp.eq.s32.totalorder %s59, 0
      %p462 = por %p460, %p461
      %s463 = ssub.s32 %s60, %s72
      %p464 = scmp.eq.s32.totalorder %s463, 0
      %s466 = sadd.s32 %s465, 1
      %s467 = scalar_select %p464, %s465, %s466
      %p470 = pneg %p464
      %p471 = scmp.eq.s32.totalorder %s53, 17
      %p472 = por %p470, %p471
      %p473 = scmp.ne.s32.totalorder %s465, %s468
      %p474 = scmp.eq.s32.totalorder %s53, 0
      %p475 = por %p473, %p474
      %p476 = scmp.ne.s32.totalorder %s465, %s468
      %p477 = scmp.eq.s32.totalorder %s58, 17
      %p478 = por %p476, %p477
      %p479 = scmp.ne.s32.totalorder %s468, %s469
      %p480 = scmp.eq.s32.totalorder %s58, 0
      %p481 = por %p479, %p480
      %p482 = scmp.ne.s32.totalorder %s468, %s469
      %p483 = scmp.eq.s32.totalorder %s59, 17
      %p484 = por %p482, %p483
      %p486 = scmp.ne.s32.totalorder %s469, %s485
      %p487 = scmp.eq.s32.totalorder %s59, 0
      %p488 = por %p486, %p487
      %s489 = ssub.s32 %s60, %s72
      %p490 = scmp.eq.s32.totalorder %s489, 0
      %s492 = sadd.s32 %s491, 1
      %s493 = scalar_select %p490, %s491, %s492
      %p496 = pneg %p490
      %p497 = scmp.eq.s32.totalorder %s53, 17
      %p498 = por %p496, %p497
      %p499 = scmp.ne.s32.totalorder %s491, %s494
      %p500 = scmp.eq.s32.totalorder %s53, 0
      %p501 = por %p499, %p500
      %p502 = scmp.ne.s32.totalorder %s491, %s494
      %p503 = scmp.eq.s32.totalorder %s58, 17
      %p504 = por %p502, %p503
      %p505 = scmp.ne.s32.totalorder %s494, %s495
      %p506 = scmp.eq.s32.totalorder %s58, 0
      %p507 = por %p505, %p506
      %p508 = scmp.ne.s32.totalorder %s494, %s495
      %p509 = scmp.eq.s32.totalorder %s59, 17
      %p510 = por %p508, %p509
      %p512 = scmp.ne.s32.totalorder %s495, %s511
      %p513 = scmp.eq.s32.totalorder %s59, 0
      %p514 = por %p512, %p513
      %p515 = scmp.le.s32.totalorder 1, %s53
      %p516 = scmp.lt.s32.totalorder %s53, 19
      %p517 = pnand %p515, %p516
      %p518 = pneg %p517
      // Predicated region
      $region9: #{model_forward.3} parent=5 // pred_check
        _
      $region10: #{model_forward.3} parent=5 // pred_check_branch
        %520 = sbr.rel (%p517) target = $region12
      $region11: #{model_forward.3} parent=5 // pred_region
        %s521 = ssub.s32 %s53, 1
      $region12: #{model_forward.3} parent=5 // pred_fallthru
        _
      %p522 = scmp.lt.s32.totalorder %s53, 18
      // Predicated region
      $region13: #{model_forward.3} parent=5 // pred_check
        %p523 = pneg %p522
      $region14: #{model_forward.3} parent=5 // pred_check_branch
        %525 = sbr.rel (%p523) target = $region16
      $region15: #{model_forward.3} parent=5 // pred_region
        // Predicated region
        $region17: #{model_forward.3} parent=15 // pred_check
          %p526 = pneg %p85
        $region18: #{model_forward.3} parent=15 // pred_check_branch
          %528 = sbr.rel (%p526) target = $region20
        $region19: #{model_forward.3} parent=15 // pred_region
          %s529 = sand.u32 %s75, 1
          %s530 = scalar_lea.sflag [#allocation5], %s529
          %s531 = sand.u32 %s75, 1
          %s532 = smul.addr %s531, 16
          %s533 = scalar_lea.vmem [#allocation4], %s532
          %s535 = ssub.s32 256, 256
          %536 = vsyncadd %s530, %s535
          %s537 = smul.addr %s60, 2
          %s538 = smul.addr %s537, 128
          %s539 = scalar_lea.hbm %s0, %s538
          %s540 = sshll.u32 %s533, 4
          %s541 = int_to_ptr.vmem [resolvable:$true] %s540
          %546 = dma.hbm_to_vmem [thread:$0]  %s539, 256, %s541, %s530, 128, 128, 8
        $region20: #{model_forward.3} parent=15 // pred_fallthru
          _
        // Predicated region
        $region21: #{model_forward.3} parent=15 // pred_check
          %p547 = pneg %p111
        $region22: #{model_forward.3} parent=15 // pred_check_branch
          %549 = sbr.rel (%p547) target = $region24
        $region23: #{model_forward.3} parent=15 // pred_region
          %s550 = sand.u32 %s53, 1
          %s551 = scalar_lea.sflag [#allocation8], %s550
          %s552 = sand.u32 %s101, 1
          %s553 = smul.addr %s552, 16
          %s554 = scalar_lea.vmem [#allocation7], %s553
          %s556 = ssub.s32 256, 256
          %557 = vsyncadd %s551, %s556
          %s558 = smul.addr %s61, 2
          %s559 = smul.addr %s558, 128
          %s560 = scalar_lea.hbm %s1, %s559
          %s561 = sshll.u32 %s554, 4
          %s562 = int_to_ptr.vmem [resolvable:$true] %s561
          %567 = dma.hbm_to_vmem [thread:$0]  %s560, 256, %s562, %s551, 128, 128, 8
        $region24: #{model_forward.3} parent=15 // pred_fallthru
          _
        // Predicated region
        $region25: #{model_forward.3} parent=15 // pred_check
          %p568 = pneg %p137
        $region26: #{model_forward.3} parent=15 // pred_check_branch
          %570 = sbr.rel (%p568) target = $region28
        $region27: #{model_forward.3} parent=15 // pred_region
          %s571 = sand.u32 %s53, 1
          %s572 = scalar_lea.sflag [#allocation8], %s571
          %s573 = sand.u32 %s127, 1
          %s574 = scalar_lea.vmem [#allocation9], %s573
          %s576 = ssub.s32 16, 16
          %577 = vsyncadd %s572, %s576
          %s578 = smul.addr %s61, 16
          %s579 = scalar_lea.hbm %s2, %s578
          %s581 = sshll.u32 %s574, 4
          %s582 = int_to_ptr.vmem [resolvable:$true] %s581
          %584 = dma.hbm_to_vmem [thread:$0]  %s579, 16, %s582, %s572
        $region28: #{model_forward.3} parent=15 // pred_fallthru
          _
        // Predicated region
        $region29: #{model_forward.3} parent=15 // pred_check
          %p585 = pneg %p163
        $region30: #{model_forward.3} parent=15 // pred_check_branch
          %587 = sbr.rel (%p585) target = $region32
        $region31: #{model_forward.3} parent=15 // pred_region
          %s588 = sand.u32 %s53, 1
          %s589 = scalar_lea.sflag [#allocation11], %s588
          %s590 = sand.u32 %s153, 1
          %s591 = scalar_lea.vmem [#allocation10], %s590
          %s593 = ssub.s32 16, 16
          %594 = vsyncadd %s589, %s593
          %s595 = smul.addr %s61, 16
          %s596 = scalar_lea.hbm %s3, %s595
          %s598 = sshll.u32 %s591, 4
          %s599 = int_to_ptr.vmem [resolvable:$true] %s598
          %601 = dma.hbm_to_vmem [thread:$0]  %s596, 16, %s599, %s589
        $region32: #{model_forward.3} parent=15 // pred_fallthru
          _
        // Predicated region
        $region33: #{model_forward.3} parent=15 // pred_check
          %p602 = pneg %p189
        $region34: #{model_forward.3} parent=15 // pred_check_branch
          %604 = sbr.rel (%p602) target = $region36
        $region35: #{model_forward.3} parent=15 // pred_region
          %s605 = sand.u32 %s53, 1
          %s606 = scalar_lea.sflag [#allocation11], %s605
          %s607 = sand.u32 %s179, 1
          %s608 = smul.addr %s607, 192
          %s609 = scalar_lea.vmem [#allocation12], %s608
          %s611 = ssub.s32 3072, 3072
          %612 = vsyncadd %s606, %s611
          %s613 = smul.addr %s61, 48
          %s614 = smul.addr %s613, 64
          %s615 = scalar_lea.hbm %s4, %s614
          %s616 = sshll.u32 %s609, 4
          %s617 = int_to_ptr.vmem [resolvable:$true] %s616
          %622 = dma.hbm_to_vmem [thread:$0]  %s615, 3072, %s617, %s606, 192, 192, 12
        $region36: #{model_forward.3} parent=15 // pred_fallthru
          _
        // Predicated region
        $region37: #{model_forward.3} parent=15 // pred_check
          %p623 = pneg %p215
        $region38: #{model_forward.3} parent=15 // pred_check_branch
          %625 = sbr.rel (%p623) target = $region40
        $region39: #{model_forward.3} parent=15 // pred_region
          %s626 = sand.u32 %s53, 1
          %s627 = scalar_lea.sflag [#allocation14], %s626
          %s628 = sand.u32 %s205, 1
          %s629 = smul.addr %s628, 3
          %s630 = scalar_lea.vmem [#allocation13], %s629
          %s632 = ssub.s32 48, 48
          %633 = vsyncadd %s627, %s632
          %s634 = smul.addr %s61, 3
          %s635 = smul.addr %s634, 16
          %s636 = scalar_lea.hbm %s5, %s635
          %s638 = sshll.u32 %s630, 4
          %s639 = int_to_ptr.vmem [resolvable:$true] %s638
          %641 = dma.hbm_to_vmem [thread:$0]  %s636, 48, %s639, %s627
        $region40: #{model_forward.3} parent=15 // pred_fallthru
          _
        // Predicated region
        $region41: #{model_forward.3} parent=15 // pred_check
          %p642 = pneg %p241
        $region42: #{model_forward.3} parent=15 // pred_check_branch
          %644 = sbr.rel (%p642) target = $region44
        $region43: #{model_forward.3} parent=15 // pred_region
          %s645 = sand.u32 %s53, 1
          %s646 = scalar_lea.sflag [#allocation14], %s645
          %s647 = sand.u32 %s231, 1
          %s648 = smul.addr %s647, 64
          %s649 = scalar_lea.vmem [#allocation15], %s648
          %s651 = ssub.s32 1024, 1024
          %652 = vsyncadd %s646, %s651
          %s653 = smul.addr %s61, 16
          %s654 = smul.addr %s653, 64
          %s655 = scalar_lea.hbm %s6, %s654
          %s656 = sshll.u32 %s649, 4
          %s657 = int_to_ptr.vmem [resolvable:$true] %s656
          %662 = dma.hbm_to_vmem [thread:$0]  %s655, 1024, %s657, %s646, 64, 64, 4
        $region44: #{model_forward.3} parent=15 // pred_fallthru
          _
        // Predicated region
        $region45: #{model_forward.3} parent=15 // pred_check
          %p663 = pneg %p267
        $region46: #{model_forward.3} parent=15 // pred_check_branch
          %665 = sbr.rel (%p663) target = $region48
        $region47: #{model_forward.3} parent=15 // pred_region
          %s666 = sand.u32 %s53, 1
          %s667 = scalar_lea.sflag [#allocation17], %s666
          %s668 = sand.u32 %s257, 1
          %s669 = smul.addr %s668, 64
          %s670 = scalar_lea.vmem [#allocation16], %s669
          %s672 = ssub.s32 1024, 1024
          %673 = vsyncadd %s667, %s672
          %s674 = smul.addr %s61, 16
          %s675 = smul.addr %s674, 64
          %s676 = scalar_lea.hbm %s7, %s675
          %s677 = sshll.u32 %s670, 4
          %s678 = int_to_ptr.vmem [resolvable:$true] %s677
          %683 = dma.hbm_to_vmem [thread:$0]  %s676, 1024, %s678, %s667, 64, 64, 4
        $region48: #{model_forward.3} parent=15 // pred_fallthru
          _
        // Predicated region
        $region49: #{model_forward.3} parent=15 // pred_check
          %p684 = pneg %p293
        $region50: #{model_forward.3} parent=15 // pred_check_branch
          %686 = sbr.rel (%p684) target = $region52
        $region51: #{model_forward.3} parent=15 // pred_region
          %s687 = sand.u32 %s53, 1
          %s688 = scalar_lea.sflag [#allocation17], %s687
          %s689 = sand.u32 %s283, 1
          %s690 = scalar_lea.vmem [#allocation18], %s689
          %s692 = ssub.s32 16, 16
          %693 = vsyncadd %s688, %s692
          %s694 = smul.addr %s61, 16
          %s695 = scalar_lea.hbm %s8, %s694
          %s697 = sshll.u32 %s690, 4
          %s698 = int_to_ptr.vmem [resolvable:$true] %s697
          %700 = dma.hbm_to_vmem [thread:$0]  %s695, 16, %s698, %s688
        $region52: #{model_forward.3} parent=15 // pred_fallthru
          _
        // Predicated region
        $region53: #{model_forward.3} parent=15 // pred_check
          %p701 = pneg %p319
        $region54: #{model_forward.3} parent=15 // pred_check_branch
          %703 = sbr.rel (%p701) target = $region56
        $region55: #{model_forward.3} parent=15 // pred_region
          %s704 = sand.u32 %s53, 1
          %s705 = scalar_lea.sflag [#allocation20], %s704
          %s706 = sand.u32 %s309, 1
          %s707 = scalar_lea.vmem [#allocation19], %s706
          %s709 = ssub.s32 16, 16
          %710 = vsyncadd %s705, %s709
          %s711 = smul.addr %s61, 16
          %s712 = scalar_lea.hbm %s9, %s711
          %s714 = sshll.u32 %s707, 4
          %s715 = int_to_ptr.vmem [resolvable:$true] %s714
          %717 = dma.hbm_to_vmem [thread:$0]  %s712, 16, %s715, %s705
        $region56: #{model_forward.3} parent=15 // pred_fallthru
          _
        // Predicated region
        $region57: #{model_forward.3} parent=15 // pred_check
          %p718 = pneg %p345
        $region58: #{model_forward.3} parent=15 // pred_check_branch
          %720 = sbr.rel (%p718) target = $region60
        $region59: #{model_forward.3} parent=15 // pred_region
          %s721 = sand.u32 %s53, 1
          %s722 = scalar_lea.sflag [#allocation20], %s721
          %s723 = sand.u32 %s335, 1
          %s724 = scalar_lea.vmem [#allocation21], %s723
          %s726 = ssub.s32 16, 16
          %727 = vsyncadd %s722, %s726
          %s728 = smul.addr %s61, 16
          %s729 = scalar_lea.hbm %s10, %s728
          %s731 = sshll.u32 %s724, 4
          %s732 = int_to_ptr.vmem [resolvable:$true] %s731
          %734 = dma.hbm_to_vmem [thread:$0]  %s729, 16, %s732, %s722
        $region60: #{model_forward.3} parent=15 // pred_fallthru
          _
        // Predicated region
        $region61: #{model_forward.3} parent=15 // pred_check
          %p735 = pneg %p371
        $region62: #{model_forward.3} parent=15 // pred_check_branch
          %737 = sbr.rel (%p735) target = $region64
        $region63: #{model_forward.3} parent=15 // pred_region
          %s738 = sand.u32 %s53, 1
          %s739 = scalar_lea.sflag [#allocation23], %s738
          %s740 = sand.u32 %s361, 1
          %s741 = smul.addr %s740, 256
          %s742 = scalar_lea.vmem [#allocation22], %s741
          %s744 = ssub.s32 4096, 4096
          %745 = vsyncadd %s739, %s744
          %s746 = smul.addr %s61, 64
          %s747 = smul.addr %s746, 64
          %s748 = scalar_lea.hbm %s11, %s747
          %s749 = sshll.u32 %s742, 4
          %s750 = int_to_ptr.vmem [resolvable:$true] %s749
          %755 = dma.hbm_to_vmem [thread:$0]  %s748, 4096, %s750, %s739, 256, 256, 16
        $region64: #{model_forward.3} parent=15 // pred_fallthru
          _
        // Predicated region
        $region65: #{model_forward.3} parent=15 // pred_check
          %p756 = pneg %p397
        $region66: #{model_forward.3} parent=15 // pred_check_branch
          %758 = sbr.rel (%p756) target = $region68
        $region67: #{model_forward.3} parent=15 // pred_region
          %s759 = sand.u32 %s53, 1
          %s760 = scalar_lea.sflag [#allocation23], %s759
          %s761 = sand.u32 %s387, 1
          %s762 = smul.addr %s761, 4
          %s763 = scalar_lea.vmem [#allocation24], %s762
          %s765 = ssub.s32 64, 64
          %766 = vsyncadd %s760, %s765
          %s767 = smul.addr %s61, 4
          %s768 = smul.addr %s767, 16
          %s769 = scalar_lea.hbm %s12, %s768
          %s771 = sshll.u32 %s763, 4
          %s772 = int_to_ptr.vmem [resolvable:$true] %s771
          %774 = dma.hbm_to_vmem [thread:$0]  %s769, 64, %s772, %s760
        $region68: #{model_forward.3} parent=15 // pred_fallthru
          _
        // Predicated region
        $region69: #{model_forward.3} parent=15 // pred_check
          %p775 = pneg %p423
        $region70: #{model_forward.3} parent=15 // pred_check_branch
          %777 = sbr.rel (%p775) target = $region72
        $region71: #{model_forward.3} parent=15 // pred_region
          %s778 = sand.u32 %s53, 1
          %s779 = scalar_lea.sflag [#allocation26], %s778
          %s780 = sand.u32 %s413, 1
          %s781 = smul.addr %s780, 256
          %s782 = scalar_lea.vmem [#allocation25], %s781
          %s784 = ssub.s32 4096, 4096
          %785 = vsyncadd %s779, %s784
          %s786 = smul.addr %s61, 64
          %s787 = smul.addr %s786, 64
          %s788 = scalar_lea.hbm %s13, %s787
          %s789 = sshll.u32 %s782, 4
          %s790 = int_to_ptr.vmem [resolvable:$true] %s789
          %795 = dma.hbm_to_vmem [thread:$0]  %s788, 4096, %s790, %s779, 64, 64, 4
        $region72: #{model_forward.3} parent=15 // pred_fallthru
          _
        // Predicated region
        $region73: #{model_forward.3} parent=15 // pred_check
          %p796 = pneg %p449
        $region74: #{model_forward.3} parent=15 // pred_check_branch
          %798 = sbr.rel (%p796) target = $region76
        $region75: #{model_forward.3} parent=15 // pred_region
          %s799 = sand.u32 %s53, 1
          %s800 = scalar_lea.sflag [#allocation26], %s799
          %s801 = sand.u32 %s439, 1
          %s802 = scalar_lea.vmem [#allocation27], %s801
          %s804 = ssub.s32 16, 16
          %805 = vsyncadd %s800, %s804
          %s806 = smul.addr %s61, 16
          %s807 = scalar_lea.hbm %s14, %s806
          %s809 = sshll.u32 %s802, 4
          %s810 = int_to_ptr.vmem [resolvable:$true] %s809
          %812 = dma.hbm_to_vmem [thread:$0]  %s807, 16, %s810, %s800
        $region76: #{model_forward.3} parent=15 // pred_fallthru
          _
      $region16: #{model_forward.3} parent=5 // pred_fallthru
        _
      %p813 = scmp.le.s32.totalorder 1, %s53
      %p814 = scmp.lt.s32.totalorder %s53, 19
      %p815 = pnand %p813, %p814
      %p816 = pneg %p815
      // Predicated region
      $region77: #{model_forward.3} parent=5 // pred_check
        _
      $region78: #{model_forward.3} parent=5 // pred_check_branch
        %818 = sbr.rel (%p815) target = $region80
      $region79: #{model_forward.3} parent=5 // pred_region
        %s819 = ssub.s32 %s53, 1
        %s820 = sand.u32 %s78, 1
        %s821 = scalar_lea.sflag [#allocation5], %s820
        %s822 = sand.u32 %s78, 1
        %s823 = smul.addr %s822, 16
        %s824 = scalar_lea.vmem [#allocation4], %s823
        // Predicated region
        $region81: #{model_forward.3} parent=79 // pred_check
          %p825 = pneg %p91
        $region82: #{model_forward.3} parent=79 // pred_check_branch
          %827 = sbr.rel (%p825) target = $region84
        $region83: #{model_forward.3} parent=79 // pred_region
          %828 = dma.done %s821, 256
        $region84: #{model_forward.3} parent=79 // pred_fallthru
          _
        %s829 = sand.u32 %s58, 1
        %s830 = scalar_lea.sflag [#allocation8], %s829
        %s831 = sand.u32 %s104, 1
        %s832 = smul.addr %s831, 16
        %s833 = scalar_lea.vmem [#allocation7], %s832
        // Predicated region
        $region85: #{model_forward.3} parent=79 // pred_check
          %p834 = pneg %p117
        $region86: #{model_forward.3} parent=79 // pred_check_branch
          %836 = sbr.rel (%p834) target = $region88
        $region87: #{model_forward.3} parent=79 // pred_region
          %837 = dma.done %s830, 256
        $region88: #{model_forward.3} parent=79 // pred_fallthru
          _
        %s838 = sand.u32 %s58, 1
        %s839 = scalar_lea.sflag [#allocation8], %s838
        %s840 = sand.u32 %s130, 1
        %s841 = scalar_lea.vmem [#allocation9], %s840
        // Predicated region
        $region89: #{model_forward.3} parent=79 // pred_check
          %p842 = pneg %p143
        $region90: #{model_forward.3} parent=79 // pred_check_branch
          %844 = sbr.rel (%p842) target = $region92
        $region91: #{model_forward.3} parent=79 // pred_region
          %845 = dma.done %s839, 16
        $region92: #{model_forward.3} parent=79 // pred_fallthru
          _
        %s846 = sand.u32 %s58, 1
        %s847 = scalar_lea.sflag [#allocation11], %s846
        %s848 = sand.u32 %s156, 1
        %s849 = scalar_lea.vmem [#allocation10], %s848
        // Predicated region
        $region93: #{model_forward.3} parent=79 // pred_check
          %p850 = pneg %p169
        $region94: #{model_forward.3} parent=79 // pred_check_branch
          %852 = sbr.rel (%p850) target = $region96
        $region95: #{model_forward.3} parent=79 // pred_region
          %853 = dma.done %s847, 16
        $region96: #{model_forward.3} parent=79 // pred_fallthru
          _
        %s854 = sand.u32 %s58, 1
        %s855 = scalar_lea.sflag [#allocation11], %s854
        %s856 = sand.u32 %s182, 1
        %s857 = smul.addr %s856, 192
        %s858 = scalar_lea.vmem [#allocation12], %s857
        // Predicated region
        $region97: #{model_forward.3} parent=79 // pred_check
          %p859 = pneg %p195
        $region98: #{model_forward.3} parent=79 // pred_check_branch
          %861 = sbr.rel (%p859) target = $region100
        $region99: #{model_forward.3} parent=79 // pred_region
          %862 = dma.done %s855, 3072
        $region100: #{model_forward.3} parent=79 // pred_fallthru
          _
        %s863 = sand.u32 %s58, 1
        %s864 = scalar_lea.sflag [#allocation14], %s863
        %s865 = sand.u32 %s208, 1
        %s866 = smul.addr %s865, 3
        %s867 = scalar_lea.vmem [#allocation13], %s866
        // Predicated region
        $region101: #{model_forward.3} parent=79 // pred_check
          %p868 = pneg %p221
        $region102: #{model_forward.3} parent=79 // pred_check_branch
          %870 = sbr.rel (%p868) target = $region104
        $region103: #{model_forward.3} parent=79 // pred_region
          %871 = dma.done %s864, 48
        $region104: #{model_forward.3} parent=79 // pred_fallthru
          _
        %s872 = sand.u32 %s58, 1
        %s873 = scalar_lea.sflag [#allocation14], %s872
        %s874 = sand.u32 %s234, 1
        %s875 = smul.addr %s874, 64
        %s876 = scalar_lea.vmem [#allocation15], %s875
        // Predicated region
        $region105: #{model_forward.3} parent=79 // pred_check
          %p877 = pneg %p247
        $region106: #{model_forward.3} parent=79 // pred_check_branch
          %879 = sbr.rel (%p877) target = $region108
        $region107: #{model_forward.3} parent=79 // pred_region
          %880 = dma.done %s873, 1024
        $region108: #{model_forward.3} parent=79 // pred_fallthru
          _
        %s881 = sand.u32 %s58, 1
        %s882 = scalar_lea.sflag [#allocation17], %s881
        %s883 = sand.u32 %s260, 1
        %s884 = smul.addr %s883, 64
        %s885 = scalar_lea.vmem [#allocation16], %s884
        // Predicated region
        $region109: #{model_forward.3} parent=79 // pred_check
          %p886 = pneg %p273
        $region110: #{model_forward.3} parent=79 // pred_check_branch
          %888 = sbr.rel (%p886) target = $region112
        $region111: #{model_forward.3} parent=79 // pred_region
          %889 = dma.done %s882, 1024
        $region112: #{model_forward.3} parent=79 // pred_fallthru
          _
        %s890 = sand.u32 %s58, 1
        %s891 = scalar_lea.sflag [#allocation17], %s890
        %s892 = sand.u32 %s286, 1
        %s893 = scalar_lea.vmem [#allocation18], %s892
        // Predicated region
        $region113: #{model_forward.3} parent=79 // pred_check
          %p894 = pneg %p299
        $region114: #{model_forward.3} parent=79 // pred_check_branch
          %896 = sbr.rel (%p894) target = $region116
        $region115: #{model_forward.3} parent=79 // pred_region
          %897 = dma.done %s891, 16
        $region116: #{model_forward.3} parent=79 // pred_fallthru
          _
        %s898 = sand.u32 %s58, 1
        %s899 = scalar_lea.sflag [#allocation20], %s898
        %s900 = sand.u32 %s312, 1
        %s901 = scalar_lea.vmem [#allocation19], %s900
        // Predicated region
        $region117: #{model_forward.3} parent=79 // pred_check
          %p902 = pneg %p325
        $region118: #{model_forward.3} parent=79 // pred_check_branch
          %904 = sbr.rel (%p902) target = $region120
        $region119: #{model_forward.3} parent=79 // pred_region
          %905 = dma.done %s899, 16
        $region120: #{model_forward.3} parent=79 // pred_fallthru
          _
        %s906 = sand.u32 %s58, 1
        %s907 = scalar_lea.sflag [#allocation20], %s906
        %s908 = sand.u32 %s338, 1
        %s909 = scalar_lea.vmem [#allocation21], %s908
        // Predicated region
        $region121: #{model_forward.3} parent=79 // pred_check
          %p910 = pneg %p351
        $region122: #{model_forward.3} parent=79 // pred_check_branch
          %912 = sbr.rel (%p910) target = $region124
        $region123: #{model_forward.3} parent=79 // pred_region
          %913 = dma.done %s907, 16
        $region124: #{model_forward.3} parent=79 // pred_fallthru
          _
        %s914 = sand.u32 %s58, 1
        %s915 = scalar_lea.sflag [#allocation23], %s914
        %s916 = sand.u32 %s364, 1
        %s917 = smul.addr %s916, 256
        %s918 = scalar_lea.vmem [#allocation22], %s917
        // Predicated region
        $region125: #{model_forward.3} parent=79 // pred_check
          %p919 = pneg %p377
        $region126: #{model_forward.3} parent=79 // pred_check_branch
          %921 = sbr.rel (%p919) target = $region128
        $region127: #{model_forward.3} parent=79 // pred_region
          %922 = dma.done %s915, 4096
        $region128: #{model_forward.3} parent=79 // pred_fallthru
          _
        %s923 = sand.u32 %s58, 1
        %s924 = scalar_lea.sflag [#allocation23], %s923
        %s925 = sand.u32 %s390, 1
        %s926 = smul.addr %s925, 4
        %s927 = scalar_lea.vmem [#allocation24], %s926
        // Predicated region
        $region129: #{model_forward.3} parent=79 // pred_check
          %p928 = pneg %p403
        $region130: #{model_forward.3} parent=79 // pred_check_branch
          %930 = sbr.rel (%p928) target = $region132
        $region131: #{model_forward.3} parent=79 // pred_region
          %931 = dma.done %s924, 64
        $region132: #{model_forward.3} parent=79 // pred_fallthru
          _
        %s932 = sand.u32 %s58, 1
        %s933 = scalar_lea.sflag [#allocation26], %s932
        %s934 = sand.u32 %s416, 1
        %s935 = smul.addr %s934, 256
        %s936 = scalar_lea.vmem [#allocation25], %s935
        // Predicated region
        $region133: #{model_forward.3} parent=79 // pred_check
          %p937 = pneg %p429
        $region134: #{model_forward.3} parent=79 // pred_check_branch
          %939 = sbr.rel (%p937) target = $region136
        $region135: #{model_forward.3} parent=79 // pred_region
          %940 = dma.done %s933, 4096
        $region136: #{model_forward.3} parent=79 // pred_fallthru
          _
        %s941 = sand.u32 %s58, 1
        %s942 = scalar_lea.sflag [#allocation26], %s941
        %s943 = sand.u32 %s442, 1
        %s944 = scalar_lea.vmem [#allocation27], %s943
        // Predicated region
        $region137: #{model_forward.3} parent=79 // pred_check
          %p945 = pneg %p455
        $region138: #{model_forward.3} parent=79 // pred_check_branch
          %947 = sbr.rel (%p945) target = $region140
        $region139: #{model_forward.3} parent=79 // pred_region
          %948 = dma.done %s942, 16
        $region140: #{model_forward.3} parent=79 // pred_fallthru
          _
        %s949 = sand.u32 %s78, 1
        %s950 = scalar_lea.sflag [#allocation5], %s949
        %s951 = sand.u32 %s78, 1
        %s952 = smul.addr %s951, 16
        %s953 = scalar_lea.vmem [#allocation4], %s952
        %p954 = pneg %p91
        %p955 = pneg %p88
        %s956 = sand.u32 %s58, 1
        %s957 = scalar_lea.sflag [#allocation8], %s956
        %s958 = sand.u32 %s104, 1
        %s959 = smul.addr %s958, 16
        %s960 = scalar_lea.vmem [#allocation7], %s959
        %p961 = pneg %p117
        %p962 = pneg %p114
        %s963 = sand.u32 %s58, 1
        %s964 = scalar_lea.sflag [#allocation8], %s963
        %s965 = sand.u32 %s130, 1
        %s966 = scalar_lea.vmem [#allocation9], %s965
        %p967 = pneg %p143
        %p968 = pneg %p140
        %s969 = sand.u32 %s58, 1
        %s970 = scalar_lea.sflag [#allocation11], %s969
        %s971 = sand.u32 %s156, 1
        %s972 = scalar_lea.vmem [#allocation10], %s971
        %p973 = pneg %p169
        %p974 = pneg %p166
        %s975 = sand.u32 %s58, 1
        %s976 = scalar_lea.sflag [#allocation11], %s975
        %s977 = sand.u32 %s182, 1
        %s978 = smul.addr %s977, 192
        %s979 = scalar_lea.vmem [#allocation12], %s978
        %p980 = pneg %p195
        %p981 = pneg %p192
        %s982 = sand.u32 %s58, 1
        %s983 = scalar_lea.sflag [#allocation14], %s982
        %s984 = sand.u32 %s208, 1
        %s985 = smul.addr %s984, 3
        %s986 = scalar_lea.vmem [#allocation13], %s985
        %p987 = pneg %p221
        %p988 = pneg %p218
        %s989 = sand.u32 %s58, 1
        %s990 = scalar_lea.sflag [#allocation14], %s989
        %s991 = sand.u32 %s234, 1
        %s992 = smul.addr %s991, 64
        %s993 = scalar_lea.vmem [#allocation15], %s992
        %p994 = pneg %p247
        %p995 = pneg %p244
        %s996 = sand.u32 %s58, 1
        %s997 = scalar_lea.sflag [#allocation17], %s996
        %s998 = sand.u32 %s260, 1
        %s999 = smul.addr %s998, 64
        %s1000 = scalar_lea.vmem [#allocation16], %s999
        %p1001 = pneg %p273
        %p1002 = pneg %p270
        %s1003 = sand.u32 %s58, 1
        %s1004 = scalar_lea.sflag [#allocation17], %s1003
        %s1005 = sand.u32 %s286, 1
        %s1006 = scalar_lea.vmem [#allocation18], %s1005
        %p1007 = pneg %p299
        %p1008 = pneg %p296
        %s1009 = sand.u32 %s58, 1
        %s1010 = scalar_lea.sflag [#allocation20], %s1009
        %s1011 = sand.u32 %s312, 1
        %s1012 = scalar_lea.vmem [#allocation19], %s1011
        %p1013 = pneg %p325
        %p1014 = pneg %p322
        %s1015 = sand.u32 %s58, 1
        %s1016 = scalar_lea.sflag [#allocation20], %s1015
        %s1017 = sand.u32 %s338, 1
        %s1018 = scalar_lea.vmem [#allocation21], %s1017
        %p1019 = pneg %p351
        %p1020 = pneg %p348
        %s1021 = sand.u32 %s58, 1
        %s1022 = scalar_lea.sflag [#allocation23], %s1021
        %s1023 = sand.u32 %s364, 1
        %s1024 = smul.addr %s1023, 256
        %s1025 = scalar_lea.vmem [#allocation22], %s1024
        %p1026 = pneg %p377
        %p1027 = pneg %p374
        %s1028 = sand.u32 %s58, 1
        %s1029 = scalar_lea.sflag [#allocation23], %s1028
        %s1030 = sand.u32 %s390, 1
        %s1031 = smul.addr %s1030, 4
        %s1032 = scalar_lea.vmem [#allocation24], %s1031
        %p1033 = pneg %p403
        %p1034 = pneg %p400
        %s1035 = sand.u32 %s58, 1
        %s1036 = scalar_lea.sflag [#allocation26], %s1035
        %s1037 = sand.u32 %s416, 1
        %s1038 = smul.addr %s1037, 256
        %s1039 = scalar_lea.vmem [#allocation25], %s1038
        %p1040 = pneg %p429
        %p1041 = pneg %p426
        %s1042 = sand.u32 %s58, 1
        %s1043 = scalar_lea.sflag [#allocation26], %s1042
        %s1044 = sand.u32 %s442, 1
        %s1045 = scalar_lea.vmem [#allocation27], %s1044
        %p1046 = pneg %p455
        %p1047 = pneg %p452
        %p1048 = pneg %p481
        %p1049 = pneg %p478
        %s1050 = sand.u32 %s468, 1
        %s1051 = scalar_lea.sflag [#allocation6], %s1050
        %s1052 = sand.u32 %s468, 1
        %s1053 = smul.addr %s1052, 16
        %s1054 = scalar_lea.vmem [#allocation28], %s1053
        %p1055 = pneg %p507
        %p1056 = pneg %p504
        %s1057 = sand.u32 %s494, 1
        %s1058 = scalar_lea.sflag [#allocation30], %s1057
        %s1059 = sand.u32 %s494, 1
        %s1060 = smul.addr %s1059, 16
        %s1061 = scalar_lea.vmem [#allocation29], %s1060
        %p1063 = scmp.eq.s32.totalorder %s63, 0
        // Predicated region
        $region141: #{model_forward.3} parent=79 // pred_check
          %p1064 = pneg %p1063
        $region142: #{model_forward.3} parent=79 // pred_check_branch
          %1066 = sbr.rel (%p1064) target = $region144
        $region143: #{model_forward.3} parent=79 // pred_region
          %v1067 = vld [vmem:[%s824] sm:$0xff]
          %v1068 = vld [vmem:[%s824 + $0x8] sm:$0xff]
          %1069 = vst [vmem:[%s1054] sm:$0xff] %v1067
          %1070 = vst [vmem:[%s1054 + $0x8] sm:$0xff] %v1068
          %1071 = vst [vmem:[#allocation2] sm:$0xff] 0.0
          %1072 = vst [vmem:[#allocation2 + $0x8] sm:$0xff] 0.0
          %1073 = vst [vmem:[#allocation2 + $0x10] sm:$0xff] 0.0
          %1074 = vst [vmem:[#allocation2 + $0x18] sm:$0xff] 0.0
          %1075 = vst [vmem:[#allocation2 + $0x20] sm:$0xff] 0.0
          %1076 = vst [vmem:[#allocation2 + $0x28] sm:$0xff] 0.0
          %1077 = vst [vmem:[#allocation2 + $0x30] sm:$0xff] 0.0
          %1078 = vst [vmem:[#allocation2 + $0x38] sm:$0xff] 0.0
          %1079 = vst [vmem:[#allocation2 + $0x40] sm:$0xff] 0.0
          %1080 = vst [vmem:[#allocation2 + $0x48] sm:$0xff] 0.0
          %1081 = vst [vmem:[#allocation3] sm:$0xff] 0.0
          %1082 = vst [vmem:[#allocation3 + $0x8] sm:$0xff] 0.0
          %1083 = vst [vmem:[#allocation3 + $0x10] sm:$0xff] 0.0
          %1084 = vst [vmem:[#allocation3 + $0x18] sm:$0xff] 0.0
          %1085 = vst [vmem:[#allocation3 + $0x20] sm:$0xff] 0.0
          %1086 = vst [vmem:[#allocation3 + $0x28] sm:$0xff] 0.0
          %1087 = vst [vmem:[#allocation3 + $0x30] sm:$0xff] 0.0
          %1088 = vst [vmem:[#allocation3 + $0x38] sm:$0xff] 0.0
          %1089 = vst [vmem:[#allocation3 + $0x40] sm:$0xff] 0.0
          %1090 = vst [vmem:[#allocation3 + $0x48] sm:$0xff] 0.0
        $region144: #{model_forward.3} parent=79 // pred_fallthru
          _
        %v1091 = vld [vmem:[%s1054] sm:$0xff]
        %v1092 = vld [vmem:[%s1054 + $0x8] sm:$0xff]
        %1093 = vadd.xlane.f32.xlu0 %v1091
        %v1094 = vpop.xlane.xlu0 %1093
        %1095 = vadd.xlane.f32.xlu0 %v1092
        %v1096 = vpop.xlane.xlu0 %1095
        %v1097 = vrcp.pop 128.0
        %v1098 = vmul.f32 %v1094, %v1097
        %v1099 = vmul.f32 %v1096, %v1097
        %v1100 = vsub.f32 %v1091, %v1098
        %v1101 = vsub.f32 %v1092, %v1099
        %v1102 = vmul.f32 %v1100, %v1100
        %v1103 = vmul.f32 %v1101, %v1101
        %1104 = vadd.xlane.f32.xlu0 %v1102
        %v1105 = vpop.xlane.xlu0 %1104
        %1106 = vadd.xlane.f32.xlu0 %v1103
        %v1107 = vpop.xlane.xlu0 %1106
        %v1108 = vmul.f32 %v1105, %v1097
        %v1109 = vmul.f32 %v1107, %v1097
        %v1110 = vadd.f32 %v1108, 1e-05
        %v1111 = vadd.f32 %v1109, 1e-05
        %v1112 = vrsqrt.pop %v1110
        %v1113 = vrsqrt.pop %v1111
        %v1114 = vmul.f32 %v1100, %v1112
        %v1115 = vmul.f32 %v1101, %v1113
        %v1116 = vld [vmem:[%s841] sm:$0x1]
        %v1118 = vlaneseq
        %v1119 = vshrl.u32 %v1118, 7
        %v1120 = vsub.s32 0, %v1119
        %v1121 = vrot.slane %v1116, %v1120
        %v1123 = vmul.f32 %v1114, %v1121
        %v1124 = vmul.f32 %v1115, %v1121
        %v1125 = vld [vmem:[%s849] sm:$0x1]
        %v1127 = vlaneseq
        %v1128 = vshrl.u32 %v1127, 7
        %v1129 = vsub.s32 0, %v1128
        %v1130 = vrot.slane %v1125, %v1129
        %v1132 = vadd.f32 %v1123, %v1130
        %v1133 = vadd.f32 %v1124, %v1130
        %v1134 = vpack.c.bf16 %v1133, %v1132
        %v1135 = vld [vmem:[%s858] sm:$0xff]
        %v1136 = vld [vmem:[%s858 + $0x8] sm:$0xf]
        %v1137 = vld [vmem:[%s858 + $0xc] sm:$0xff]
        %v1138 = vld [vmem:[%s858 + $0x14] sm:$0xf]
        %v1139 = vld [vmem:[%s858 + $0x18] sm:$0xff]
        %v1140 = vld [vmem:[%s858 + $0x20] sm:$0xf]
        %v1141 = vld [vmem:[%s858 + $0x24] sm:$0xff]
        %v1142 = vld [vmem:[%s858 + $0x2c] sm:$0xf]
        %v1143 = vld [vmem:[%s858 + $0x30] sm:$0xff]
        %v1144 = vld [vmem:[%s858 + $0x38] sm:$0xf]
        %v1145 = vld [vmem:[%s858 + $0x3c] sm:$0xff]
        %v1146 = vld [vmem:[%s858 + $0x44] sm:$0xf]
        %v1147 = vld [vmem:[%s858 + $0x48] sm:$0xff]
        %v1148 = vld [vmem:[%s858 + $0x50] sm:$0xf]
        %v1149 = vld [vmem:[%s858 + $0x54] sm:$0xff]
        %v1150 = vld [vmem:[%s858 + $0x5c] sm:$0xf]
        %v1151 = vld [vmem:[%s858 + $0x60] sm:$0xff]
        %v1152 = vld [vmem:[%s858 + $0x68] sm:$0xf]
        %v1153 = vld [vmem:[%s858 + $0x6c] sm:$0xff]
        %v1154 = vld [vmem:[%s858 + $0x74] sm:$0xf]
        %v1155 = vld [vmem:[%s858 + $0x78] sm:$0xff]
        %v1156 = vld [vmem:[%s858 + $0x80] sm:$0xf]
        %v1157 = vld [vmem:[%s858 + $0x84] sm:$0xff]
        %v1158 = vld [vmem:[%s858 + $0x8c] sm:$0xf]
        %v1159 = vld [vmem:[%s858 + $0x90] sm:$0xff]
        %v1160 = vld [vmem:[%s858 + $0x98] sm:$0xf]
        %v1161 = vld [vmem:[%s858 + $0x9c] sm:$0xff]
        %v1162 = vld [vmem:[%s858 + $0xa4] sm:$0xf]
        %v1163 = vld [vmem:[%s858 + $0xa8] sm:$0xff]
        %v1164 = vld [vmem:[%s858 + $0xb0] sm:$0xf]
        %v1165 = vld [vmem:[%s858 + $0xb4] sm:$0xff]
        %v1166 = vld [vmem:[%s858 + $0xbc] sm:$0xf]
        %v1167 = vld [vmem:[%s867] sm:$0x7]
        %v1169 = vlaneseq
        %v1170 = vshrl.u32 %v1169, 7
        %v1171 = vsub.s32 0, %v1170
        %v1172 = vrot.slane %v1167, %v1171
        %v1173 = vlaneseq
        %v1174 = vshrl.u32 %v1173, 7
        %v1175 = vsub.s32 1, %v1174
        %v1176 = vrot.slane %v1167, %v1175
        %v1177 = vlaneseq
        %v1178 = vshrl.u32 %v1177, 7
        %v1179 = vsub.s32 2, %v1178
        %v1180 = vrot.slane %v1167, %v1179
        %v1216 = vunpack.c.l.b16 %v1135
        %v1217 = vunpack.c.h.b16 %v1135
        %v1218 = vunpack.c.l.b16 %v1136
        %v1219 = vunpack.c.l.b16 %v1137
        %v1220 = vunpack.c.h.b16 %v1137
        %v1221 = vunpack.c.l.b16 %v1138
        %v1222 = vunpack.c.l.b16 %v1139
        %v1223 = vunpack.c.h.b16 %v1139
        %v1224 = vunpack.c.l.b16 %v1140
        %v1225 = vunpack.c.l.b16 %v1141
        %v1226 = vunpack.c.h.b16 %v1141
        %v1227 = vunpack.c.l.b16 %v1142
        %v1228 = vunpack.c.l.b16 %v1143
        %v1229 = vunpack.c.h.b16 %v1143
        %v1230 = vunpack.c.l.b16 %v1144
        %v1231 = vunpack.c.l.b16 %v1145
        %v1232 = vunpack.c.h.b16 %v1145
        %v1233 = vunpack.c.l.b16 %v1146
        %v1234 = vunpack.c.l.b16 %v1147
        %v1235 = vunpack.c.h.b16 %v1147
        %v1236 = vunpack.c.l.b16 %v1148
        %v1237 = vunpack.c.l.b16 %v1149
        %v1238 = vunpack.c.h.b16 %v1149
        %v1239 = vunpack.c.l.b16 %v1150
        %v1240 = vunpack.c.l.b16 %v1151
        %v1241 = vunpack.c.h.b16 %v1151
        %v1242 = vunpack.c.l.b16 %v1152
        %v1243 = vunpack.c.l.b16 %v1153
        %v1244 = vunpack.c.h.b16 %v1153
        %v1245 = vunpack.c.l.b16 %v1154
        %v1246 = vunpack.c.l.b16 %v1155
        %v1247 = vunpack.c.h.b16 %v1155
        %v1248 = vunpack.c.l.b16 %v1156
        %v1249 = vunpack.c.l.b16 %v1157
        %v1250 = vunpack.c.h.b16 %v1157
        %v1251 = vunpack.c.l.b16 %v1158
        %v1252 = vunpack.c.l.b16 %v1159
        %v1253 = vunpack.c.h.b16 %v1159
        %v1254 = vunpack.c.l.b16 %v1160
        %v1255 = vunpack.c.l.b16 %v1161
        %v1256 = vunpack.c.h.b16 %v1161
        %v1257 = vunpack.c.l.b16 %v1162
        %v1258 = vunpack.c.l.b16 %v1163
        %v1259 = vunpack.c.h.b16 %v1163
        %v1260 = vunpack.c.l.b16 %v1164
        %v1261 = vunpack.c.l.b16 %v1165
        %v1262 = vunpack.c.h.b16 %v1165
        %v1263 = vunpack.c.l.b16 %v1166
        %v1264 = vpack.c.b16 %v1219, %v1216
        %v1265 = vpack.c.b16 %v1220, %v1217
        %v1266 = vpack.c.b16 %v1221, %v1218
        %v1267 = vpack.c.b16 %v1225, %v1222
        %v1268 = vpack.c.b16 %v1226, %v1223
        %v1269 = vpack.c.b16 %v1227, %v1224
        %v1270 = vpack.c.b16 %v1231, %v1228
        %v1271 = vpack.c.b16 %v1232, %v1229
        %v1272 = vpack.c.b16 %v1233, %v1230
        %v1273 = vpack.c.b16 %v1237, %v1234
        %v1274 = vpack.c.b16 %v1238, %v1235
        %v1275 = vpack.c.b16 %v1239, %v1236
        %v1276 = vpack.c.b16 %v1243, %v1240
        %v1277 = vpack.c.b16 %v1244, %v1241
        %v1278 = vpack.c.b16 %v1245, %v1242
        %v1279 = vpack.c.b16 %v1249, %v1246
        %v1280 = vpack.c.b16 %v1250, %v1247
        %v1281 = vpack.c.b16 %v1251, %v1248
        %v1282 = vpack.c.b16 %v1255, %v1252
        %v1283 = vpack.c.b16 %v1256, %v1253
        %v1284 = vpack.c.b16 %v1257, %v1254
        %v1285 = vpack.c.b16 %v1261, %v1258
        %v1286 = vpack.c.b16 %v1262, %v1259
        %v1287 = vpack.c.b16 %v1263, %v1260
        %1312 = vmatprep.subr.bf16.mxu0 %v1265
        %1313 = vmatpush1.bf16.msra.mxu0 %v1264
        %1314 = vmatprep.subr.bf16.mxu0 %v1268
        %1315 = vmatpush1.bf16.msra.mxu0 %v1267
        %1316 = vmatprep.subr.bf16.mxu0 %v1271
        %1317 = vmatpush1.bf16.msra.mxu0 %v1270
        %1318 = vmatprep.subr.bf16.mxu0 %v1274
        %1319 = vmatpush1.bf16.msra.mxu0 %v1273
        %1320 = vmatprep.subr.bf16.mxu0 %v1277
        %1321 = vmatpush1.bf16.msra.mxu0 %v1276
        %1322 = vmatprep.subr.bf16.mxu0 %v1280
        %1323 = vmatpush1.bf16.msra.mxu0 %v1279
        %1324 = vmatprep.subr.bf16.mxu0 %v1283
        %1325 = vmatpush1.bf16.msra.mxu0 %v1282
        %1326 = vmatprep.subr.bf16.mxu0 %v1286
        %1327 = vmatpush1.bf16.msra.mxu0 %v1285
        %1328 = vmatprep.subr.bf16.mxu0 0
        %1329 = vmatpush1.bf16.msra.mxu0 0
        %1330 = vmatprep.subr.bf16.mxu0 0
        %1331 = vmatpush1.bf16.msra.mxu0 0
        %1332 = vmatprep.subr.bf16.mxu0 0
        %1333 = vmatpush1.bf16.msra.mxu0 0
        %1334 = vmatprep.subr.bf16.mxu0 0
        %1335 = vmatpush1.bf16.msra.mxu0 0
        %1336 = vmatprep.subr.bf16.mxu0 0
        %1337 = vmatpush1.bf16.msra.mxu0 0
        %1338 = vmatprep.subr.bf16.mxu0 0
        %1339 = vmatpush1.bf16.msra.mxu0 0
        %1340 = vmatprep.subr.bf16.mxu0 0
        %1341 = vmatpush1.bf16.msra.mxu0 0
        %1342 = vmatprep.subr.bf16.mxu0 0
        %1343 = vmatpush1.bf16.msra.mxu0 0
        %1344 = vmatprep.mubr.bf16.mxu0 0
        %1345 = vmatmul.mubr.bf16.gmra.mrb[0].mxu0 %v1134
        %v1346 = vpop.f32.mrb[0].mxu0
        %v1347 = vadd.f32 %v1172, %v1346
        %v1348 = vpop.f32.mrb[0].mxu0
        %v1349 = vadd.f32 %v1176, %v1348
        %v1350 = vpop.f32.mrb[0].mxu0
        %v1351 = vadd.f32 %v1172, %v1350
        %v1352 = vpop.f32.mrb[0].mxu0
        %v1353 = vadd.f32 %v1176, %v1352
        %1354 = vdwg.mxu0
        %1355 = vmatprep.subr.bf16.mxu0 0
        %1356 = vmatpush1.bf16.msra.mxu0 %v1266
        %1357 = vmatprep.subr.bf16.mxu0 0
        %1358 = vmatpush1.bf16.msra.mxu0 %v1269
        %1359 = vmatprep.subr.bf16.mxu0 0
        %1360 = vmatpush1.bf16.msra.mxu0 %v1272
        %1361 = vmatprep.subr.bf16.mxu0 0
        %1362 = vmatpush1.bf16.msra.mxu0 %v1275
        %1363 = vmatprep.subr.bf16.mxu0 0
        %1364 = vmatpush1.bf16.msra.mxu0 %v1278
        %1365 = vmatprep.subr.bf16.mxu0 0
        %1366 = vmatpush1.bf16.msra.mxu0 %v1281
        %1367 = vmatprep.subr.bf16.mxu0 0
        %1368 = vmatpush1.bf16.msra.mxu0 %v1284
        %1369 = vmatprep.subr.bf16.mxu0 0
        %1370 = vmatpush1.bf16.msra.mxu0 %v1287
        %1371 = vmatprep.subr.bf16.mxu0 0
        %1372 = vmatpush1.bf16.msra.mxu0 0
        %1373 = vmatprep.subr.bf16.mxu0 0
        %1374 = vmatpush1.bf16.msra.mxu0 0
        %1375 = vmatprep.subr.bf16.mxu0 0
        %1376 = vmatpush1.bf16.msra.mxu0 0
        %1377 = vmatprep.subr.bf16.mxu0 0
        %1378 = vmatpush1.bf16.msra.mxu0 0
        %1379 = vmatprep.subr.bf16.mxu0 0
        %1380 = vmatpush1.bf16.msra.mxu0 0
        %1381 = vmatprep.subr.bf16.mxu0 0
        %1382 = vmatpush1.bf16.msra.mxu0 0
        %1383 = vmatprep.subr.bf16.mxu0 0
        %1384 = vmatpush1.bf16.msra.mxu0 0
        %1385 = vmatprep.subr.bf16.mxu0 0
        %1386 = vmatpush1.bf16.msra.mxu0 0
        %1387 = vmatprep.mubr.bf16.mxu0 0
        %1388 = vmatmul.mubr.bf16.gmra.mrb[0].mxu0 %v1134
        %v1389 = vpop.f32.mrb[0].mxu0
        %v1390 = vadd.f32 %v1180, %v1389
        %v1391 = vpop.f32.mrb[0].mxu0
        %v1392 = vpop.f32.mrb[0].mxu0
        %v1393 = vadd.f32 %v1180, %v1392
        %v1394 = vpop.f32.mrb[0].mxu0
        %1395 = vdwg.mxu0
        %v1396 = vpack.c.bf16 %v1351, %v1347
        %v1397 = vld [vmem:[%s876] sm:$0xf]
        %v1398 = vld [vmem:[%s876 + $0x4] sm:$0xf]
        %v1399 = vld [vmem:[%s876 + $0x8] sm:$0xf]
        %v1400 = vld [vmem:[%s876 + $0xc] sm:$0xf]
        %v1401 = vld [vmem:[%s876 + $0x10] sm:$0xf]
        %v1402 = vld [vmem:[%s876 + $0x14] sm:$0xf]
        %v1403 = vld [vmem:[%s876 + $0x18] sm:$0xf]
        %v1404 = vld [vmem:[%s876 + $0x1c] sm:$0xf]
        %v1405 = vld [vmem:[%s876 + $0x20] sm:$0xf]
        %v1406 = vld [vmem:[%s876 + $0x24] sm:$0xf]
        %v1407 = vld [vmem:[%s876 + $0x28] sm:$0xf]
        %v1408 = vld [vmem:[%s876 + $0x2c] sm:$0xf]
        %v1409 = vld [vmem:[%s876 + $0x30] sm:$0xf]
        %v1410 = vld [vmem:[%s876 + $0x34] sm:$0xf]
        %v1411 = vld [vmem:[%s876 + $0x38] sm:$0xf]
        %v1412 = vld [vmem:[%s876 + $0x3c] sm:$0xf]
        %v1429 = vunpack.c.l.b16 %v1397
        %v1430 = vunpack.c.l.b16 %v1398
        %v1431 = vunpack.c.l.b16 %v1399
        %v1432 = vunpack.c.l.b16 %v1400
        %v1433 = vunpack.c.l.b16 %v1401
        %v1434 = vunpack.c.l.b16 %v1402
        %v1435 = vunpack.c.l.b16 %v1403
        %v1436 = vunpack.c.l.b16 %v1404
        %v1437 = vunpack.c.l.b16 %v1405
        %v1438 = vunpack.c.l.b16 %v1406
        %v1439 = vunpack.c.l.b16 %v1407
        %v1440 = vunpack.c.l.b16 %v1408
        %v1441 = vunpack.c.l.b16 %v1409
        %v1442 = vunpack.c.l.b16 %v1410
        %v1443 = vunpack.c.l.b16 %v1411
        %v1444 = vunpack.c.l.b16 %v1412
        %v1445 = vpack.c.b16 %v1430, %v1429
        %v1446 = vpack.c.b16 %v1432, %v1431
        %v1447 = vpack.c.b16 %v1434, %v1433
        %v1448 = vpack.c.b16 %v1436, %v1435
        %v1449 = vpack.c.b16 %v1438, %v1437
        %v1450 = vpack.c.b16 %v1440, %v1439
        %v1451 = vpack.c.b16 %v1442, %v1441
        %v1452 = vpack.c.b16 %v1444, %v1443
        %1461 = vmatprep.subr.bf16.mxu0 0
        %1462 = vmatpush1.bf16.msra.mxu0 %v1445
        %1463 = vmatprep.subr.bf16.mxu0 0
        %1464 = vmatpush1.bf16.msra.mxu0 %v1446
        %1465 = vmatprep.subr.bf16.mxu0 0
        %1466 = vmatpush1.bf16.msra.mxu0 %v1447
        %1467 = vmatprep.subr.bf16.mxu0 0
        %1468 = vmatpush1.bf16.msra.mxu0 %v1448
        %1469 = vmatprep.subr.bf16.mxu0 0
        %1470 = vmatpush1.bf16.msra.mxu0 %v1449
        %1471 = vmatprep.subr.bf16.mxu0 0
        %1472 = vmatpush1.bf16.msra.mxu0 %v1450
        %1473 = vmatprep.subr.bf16.mxu0 0
        %1474 = vmatpush1.bf16.msra.mxu0 %v1451
        %1475 = vmatprep.subr.bf16.mxu0 0
        %1476 = vmatpush1.bf16.msra.mxu0 %v1452
        %1477 = vmatprep.subr.bf16.mxu0 0
        %1478 = vmatpush1.bf16.msra.mxu0 0
        %1479 = vmatprep.subr.bf16.mxu0 0
        %1480 = vmatpush1.bf16.msra.mxu0 0
        %1481 = vmatprep.subr.bf16.mxu0 0
        %1482 = vmatpush1.bf16.msra.mxu0 0
        %1483 = vmatprep.subr.bf16.mxu0 0
        %1484 = vmatpush1.bf16.msra.mxu0 0
        %1485 = vmatprep.subr.bf16.mxu0 0
        %1486 = vmatpush1.bf16.msra.mxu0 0
        %1487 = vmatprep.subr.bf16.mxu0 0
        %1488 = vmatpush1.bf16.msra.mxu0 0
        %1489 = vmatprep.subr.bf16.mxu0 0
        %1490 = vmatpush1.bf16.msra.mxu0 0
        %1491 = vmatprep.subr.bf16.mxu0 0
        %1492 = vmatpush1.bf16.msra.mxu0 0
        %1493 = vmatprep.mubr.bf16.mxu0 0
        %1494 = vmatmul.mubr.bf16.gmra.mrb[0].mxu0 %v1396
        %v1495 = vpop.f32.mrb[0].mxu0
        %v1496 = vadd.f32 0.0, %v1495
        %v1497 = vpop.f32.mrb[0].mxu0
        %v1498 = vpop.f32.mrb[0].mxu0
        %v1499 = vadd.f32 0.0, %v1498
        %v1500 = vpop.f32.mrb[0].mxu0
        %1501 = vdwg.mxu0
        %1502 = vst [vmem:[#allocation2 + $0x20] sm:$0xff] %v1349
        %1503 = vst [vmem:[#allocation2 + $0x28] sm:$0xff] %v1353
        %1504 = vst [vmem:[#allocation3 + $0x20] sm:$0xff] %v1390
        %1505 = vst [vmem:[#allocation3 + $0x28] sm:$0xff] %v1393
        %p1506 = scmp.eq.s32.totalorder %s63, 1
        %s1507 = scalar_select %p1506, 2, 1
        %p1508 = scmp.eq.s32.totalorder %s63, 2
        %s1509 = scalar_select %p1508, 4, %s1507
        %p1510 = scmp.eq.s32.totalorder %s63, 3
        %s1511 = scalar_select %p1510, 8, %s1509
        %p1512 = scmp.eq.s32.totalorder %s63, 4
        %s1513 = scalar_select %p1512, 16, %s1511
        %p1514 = scmp.eq.s32.totalorder %s63, 5
        %s1515 = scalar_select %p1514, 16, %s1513
        %p1516 = scmp.eq.s32.totalorder %s63, 6
        %s1517 = scalar_select %p1516, 16, %s1515
        %p1518 = scmp.eq.s32.totalorder %s63, 7
        %s1519 = scalar_select %p1518, 16, %s1517
        %p1520 = scmp.eq.s32.totalorder %s63, 8
        %s1521 = scalar_select %p1520, 16, %s1519
        %v1522 = vld [vmem:[%s833] sm:$0xff]
        %v1523 = vld [vmem:[%s833 + $0x8] sm:$0xff]
        %s1524 = smul.u32 %s1521, 4294967294
        %s1525 = sadd.s32 %s1524, 32
        %s1526 = scalar_lea.vmem [#allocation2], %s1525
        %v1527 = vld [vmem:[%s1526] sm:$0xff]
        %v1528 = vld [vmem:[%s1526 + $0x8] sm:$0xff]
        %s1529 = scalar_lea.vmem [#allocation3], %s1525
        %v1530 = vld [vmem:[%s1529] sm:$0xff]
        %v1531 = vld [vmem:[%s1529 + $0x8] sm:$0xff]
        %v1532 = vmul.f32 %v1347, %v1527
        %v1533 = vmul.f32 %v1351, %v1528
        %vm1534 = vcmask 523264
        %v1535 = vsel %vm1534, %v1532, 0.0
        %1536 = vadd.xlane.f32.xlu0 %v1535
        %v1537 = vpop.xlane.xlu0 %1536
        %v1538 = vsel %vm1534, %v1533, 0.0
        %1539 = vadd.xlane.f32.xlu0 %v1538
        %v1540 = vpop.xlane.xlu0 %1539
        %1543 = vrot.lane.b32.xlu0 %v1532, 64
        %v1544 = vpop.permute.xlu0 %1543
        %1545 = vrot.lane.b32.xlu0 %v1533, 64
        %v1546 = vpop.permute.xlu0 %1545
        %v1549 = vsel %vm1534, %v1544, 0.0
        %1550 = vadd.xlane.f32.xlu0 %v1549
        %v1551 = vpop.xlane.xlu0 %1550
        %v1552 = vsel %vm1534, %v1546, 0.0
        %1553 = vadd.xlane.f32.xlu0 %v1552
        %v1554 = vpop.xlane.xlu0 %1553
        %s1555 = ssub.s32 32, %s1521
        %s1556 = scalar_lea.vmem [#allocation2], %s1555
        %v1557 = vld [vmem:[%s1556] sm:$0xff]
        %v1558 = vld [vmem:[%s1556 + $0x8] sm:$0xff]
        %s1559 = scalar_lea.vmem [#allocation3], %s1555
        %v1560 = vld [vmem:[%s1559] sm:$0xff]
        %v1561 = vld [vmem:[%s1559 + $0x8] sm:$0xff]
        %v1562 = vmul.f32 %v1347, %v1557
        %v1563 = vmul.f32 %v1351, %v1558
        %v1564 = vsel %vm1534, %v1562, 0.0
        %1565 = vadd.xlane.f32.xlu0 %v1564
        %v1566 = vpop.xlane.xlu0 %1565
        %v1567 = vsel %vm1534, %v1563, 0.0
        %1568 = vadd.xlane.f32.xlu0 %v1567
        %v1569 = vpop.xlane.xlu0 %1568
        %1572 = vrot.lane.b32.xlu0 %v1562, 64
        %v1573 = vpop.permute.xlu0 %1572
        %1574 = vrot.lane.b32.xlu0 %v1563, 64
        %v1575 = vpop.permute.xlu0 %1574
        %v1578 = vsel %vm1534, %v1573, 0.0
        %1579 = vadd.xlane.f32.xlu0 %v1578
        %v1580 = vpop.xlane.xlu0 %1579
        %v1581 = vsel %vm1534, %v1575, 0.0
        %1582 = vadd.xlane.f32.xlu0 %v1581
        %v1583 = vpop.xlane.xlu0 %1582
        %v1584 = vld [vmem:[#allocation2 + $0x20] sm:$0xff]
        %v1585 = vld [vmem:[#allocation2 + $0x28] sm:$0xff]
        %v1586 = vld [vmem:[#allocation3 + $0x20] sm:$0xff]
        %v1587 = vld [vmem:[#allocation3 + $0x28] sm:$0xff]
        %v1588 = vmul.f32 %v1347, %v1584
        %v1589 = vmul.f32 %v1351, %v1585
        %v1590 = vsel %vm1534, %v1588, 0.0
        %1591 = vadd.xlane.f32.xlu0 %v1590
        %v1592 = vpop.xlane.xlu0 %1591
        %v1593 = vsel %vm1534, %v1589, 0.0
        %1594 = vadd.xlane.f32.xlu0 %v1593
        %v1595 = vpop.xlane.xlu0 %1594
        %1598 = vrot.lane.b32.xlu0 %v1588, 64
        %v1599 = vpop.permute.xlu0 %1598
        %1600 = vrot.lane.b32.xlu0 %v1589, 64
        %v1601 = vpop.permute.xlu0 %1600
        %v1604 = vsel %vm1534, %v1599, 0.0
        %1605 = vadd.xlane.f32.xlu0 %v1604
        %v1606 = vpop.xlane.xlu0 %1605
        %v1607 = vsel %vm1534, %v1601, 0.0
        %1608 = vadd.xlane.f32.xlu0 %v1607
        %v1609 = vpop.xlane.xlu0 %1608
        %s1610 = sadd.s32 %s1521, 32
        %s1611 = scalar_lea.vmem [#allocation2], %s1610
        %v1612 = vld [vmem:[%s1611] sm:$0xff]
        %v1613 = vld [vmem:[%s1611 + $0x8] sm:$0xff]
        %s1614 = scalar_lea.vmem [#allocation3], %s1610
        %v1615 = vld [vmem:[%s1614] sm:$0xff]
        %v1616 = vld [vmem:[%s1614 + $0x8] sm:$0xff]
        %v1617 = vmul.f32 %v1347, %v1612
        %v1618 = vmul.f32 %v1351, %v1613
        %v1619 = vsel %vm1534, %v1617, 0.0
        %1620 = vadd.xlane.f32.xlu0 %v1619
        %v1621 = vpop.xlane.xlu0 %1620
        %v1622 = vsel %vm1534, %v1618, 0.0
        %1623 = vadd.xlane.f32.xlu0 %v1622
        %v1624 = vpop.xlane.xlu0 %1623
        %1627 = vrot.lane.b32.xlu0 %v1617, 64
        %v1628 = vpop.permute.xlu0 %1627
        %1629 = vrot.lane.b32.xlu0 %v1618, 64
        %v1630 = vpop.permute.xlu0 %1629
        %v1633 = vsel %vm1534, %v1628, 0.0
        %1634 = vadd.xlane.f32.xlu0 %v1633
        %v1635 = vpop.xlane.xlu0 %1634
        %v1636 = vsel %vm1534, %v1630, 0.0
        %1637 = vadd.xlane.f32.xlu0 %v1636
        %v1638 = vpop.xlane.xlu0 %1637
        %s1639 = smul.u32 %s1521, 2
        %s1640 = sadd.s32 %s1639, 32
        %s1641 = scalar_lea.vmem [#allocation2], %s1640
        %v1642 = vld [vmem:[%s1641] sm:$0xff]
        %v1643 = vld [vmem:[%s1641 + $0x8] sm:$0xff]
        %s1644 = scalar_lea.vmem [#allocation3], %s1640
        %v1645 = vld [vmem:[%s1644] sm:$0xff]
        %v1646 = vld [vmem:[%s1644 + $0x8] sm:$0xff]
        %v1647 = vmul.f32 %v1347, %v1642
        %v1648 = vmul.f32 %v1351, %v1643
        %v1649 = vsel %vm1534, %v1647, 0.0
        %1650 = vadd.xlane.f32.xlu0 %v1649
        %v1651 = vpop.xlane.xlu0 %1650
        %v1652 = vsel %vm1534, %v1648, 0.0
        %1653 = vadd.xlane.f32.xlu0 %v1652
        %v1654 = vpop.xlane.xlu0 %1653
        %1657 = vrot.lane.b32.xlu0 %v1647, 64
        %v1658 = vpop.permute.xlu0 %1657
        %1659 = vrot.lane.b32.xlu0 %v1648, 64
        %v1660 = vpop.permute.xlu0 %1659
        %v1663 = vsel %vm1534, %v1658, 0.0
        %1664 = vadd.xlane.f32.xlu0 %v1663
        %v1665 = vpop.xlane.xlu0 %1664
        %v1666 = vsel %vm1534, %v1660, 0.0
        %1667 = vadd.xlane.f32.xlu0 %v1666
        %v1668 = vpop.xlane.xlu0 %1667
        %vm1669 = vcmask 7168
        %v1670 = vsel %vm1669, %v1537, %v1566
        %v1671 = vsel %vm1669, %v1540, %v1569
        %vm1672 = vcmask 15360
        %v1673 = vsel %vm1672, %v1670, %v1592
        %v1674 = vsel %vm1672, %v1671, %v1595
        %vm1675 = vcmask 23552
        %v1676 = vsel %vm1675, %v1673, %v1621
        %v1677 = vsel %vm1675, %v1674, %v1624
        %vm1678 = vcmask 31744
        %v1679 = vsel %vm1678, %v1676, %v1651
        %v1680 = vsel %vm1678, %v1677, %v1654
        %v1681 = vadd.f32 %v1679, %v1496
        %v1682 = vadd.f32 %v1680, %v1499
        %v1683 = vmul.f32 %v1681, 0.125
        %v1684 = vmul.f32 %v1682, 0.125
        %v1685 = vadd.f32 %v1683, %v1522
        %v1686 = vadd.f32 %v1684, %v1523
        %vm1687 = vcmask 39936
        %v1688 = vsel %vm1687, %v1685, -inf
        %1689 = vmax.xlane.f32.xlu0 %v1688
        %v1690 = vpop.xlane.xlu0 %1689
        %v1691 = vsel %vm1687, %v1686, -inf
        %1692 = vmax.xlane.f32.xlu0 %v1691
        %v1693 = vpop.xlane.xlu0 %1692
        %v1694 = vsub.f32 %v1685, %v1690
        %v1695 = vsub.f32 %v1686, %v1693
        %v1696 = vmul.f32 %v1694, 1.442695
        %v1697 = vpow.pop %v1696
        %v1698 = vmul.f32 %v1695, 1.442695
        %v1699 = vpow.pop %v1698
        %v1700 = vsel %vm1687, %v1697, 0.0
        %1701 = vadd.xlane.f32.xlu0 %v1700
        %v1702 = vpop.xlane.xlu0 %1701
        %v1703 = vsel %vm1687, %v1699, 0.0
        %1704 = vadd.xlane.f32.xlu0 %v1703
        %v1705 = vpop.xlane.xlu0 %1704
        %v1706 = vrcp.pop %v1702
        %v1707 = vmul.f32 %v1697, %v1706
        %v1708 = vrcp.pop %v1705
        %v1709 = vmul.f32 %v1699, %v1708
        %v1710 = vsel %vm1669, %v1551, %v1580
        %v1711 = vsel %vm1669, %v1554, %v1583
        %v1712 = vsel %vm1672, %v1710, %v1606
        %v1713 = vsel %vm1672, %v1711, %v1609
        %v1714 = vsel %vm1675, %v1712, %v1635
        %v1715 = vsel %vm1675, %v1713, %v1638
        %v1716 = vsel %vm1678, %v1714, %v1665
        %v1717 = vsel %vm1678, %v1715, %v1668
        %1720 = vrot.lane.b32.xlu0 %v1496, 123
        %v1721 = vpop.permute.xlu0 %1720
        %1722 = vrot.lane.b32.xlu0 %v1499, 123
        %v1723 = vpop.permute.xlu0 %1722
        %v1726 = vadd.f32 %v1716, %v1721
        %v1727 = vadd.f32 %v1717, %v1723
        %v1728 = vmul.f32 %v1726, 0.125
        %v1729 = vmul.f32 %v1727, 0.125
        %1732 = vrot.lane.b32.xlu0 %v1522, 123
        %v1733 = vpop.permute.xlu0 %1732
        %1734 = vrot.lane.b32.xlu0 %v1523, 123
        %v1735 = vpop.permute.xlu0 %1734
        %v1738 = vadd.f32 %v1728, %v1733
        %v1739 = vadd.f32 %v1729, %v1735
        %v1740 = vsel %vm1687, %v1738, -inf
        %1741 = vmax.xlane.f32.xlu0 %v1740
        %v1742 = vpop.xlane.xlu0 %1741
        %v1743 = vsel %vm1687, %v1739, -inf
        %1744 = vmax.xlane.f32.xlu0 %v1743
        %v1745 = vpop.xlane.xlu0 %1744
        %v1746 = vsub.f32 %v1738, %v1742
        %v1747 = vsub.f32 %v1739, %v1745
        %v1748 = vmul.f32 %v1746, 1.442695
        %v1749 = vpow.pop %v1748
        %v1750 = vmul.f32 %v1747, 1.442695
        %v1751 = vpow.pop %v1750
        %v1752 = vsel %vm1687, %v1749, 0.0
        %1753 = vadd.xlane.f32.xlu0 %v1752
        %v1754 = vpop.xlane.xlu0 %1753
        %v1755 = vsel %vm1687, %v1751, 0.0
        %1756 = vadd.xlane.f32.xlu0 %v1755
        %v1757 = vpop.xlane.xlu0 %1756
        %v1758 = vrcp.pop %v1754
        %v1759 = vmul.f32 %v1749, %v1758
        %v1760 = vrcp.pop %v1757
        %v1761 = vmul.f32 %v1751, %v1760
        %1763 = vset.pattern.permute.xlu0 0
        %1764 = vperm.xlu0 %1763, %v1707
        %v1765 = vpop.permute.xlu0 %1764
        %1768 = vset.pattern.permute.xlu0 0
        %1769 = vperm.xlu0 %1768, %v1709
        %v1770 = vpop.permute.xlu0 %1769
        %1773 = vset.pattern.permute.xlu0 0
        %1774 = vperm.xlu0 %1773, %v1759
        %v1775 = vpop.permute.xlu0 %1774
        %1778 = vset.pattern.permute.xlu0 0
        %1779 = vperm.xlu0 %1778, %v1761
        %v1780 = vpop.permute.xlu0 %1779
        %v1782 = vsel %vm1534, %v1765, %v1775
        %v1783 = vsel %vm1534, %v1770, %v1780
        %v1784 = vmul.f32 %v1782, %v1530
        %v1785 = vmul.f32 %v1783, %v1531
        %v1786 = vadd.f32 %v1784, 0.0
        %v1787 = vadd.f32 %v1785, 0.0
        %1788 = vset.pattern.permute.xlu0 1
        %1789 = vperm.xlu0 %1788, %v1707
        %v1790 = vpop.permute.xlu0 %1789
        %1792 = vset.pattern.permute.xlu0 1
        %1793 = vperm.xlu0 %1792, %v1709
        %v1794 = vpop.permute.xlu0 %1793
        %1796 = vset.pattern.permute.xlu0 1
        %1797 = vperm.xlu0 %1796, %v1759
        %v1798 = vpop.permute.xlu0 %1797
        %1800 = vset.pattern.permute.xlu0 1
        %1801 = vperm.xlu0 %1800, %v1761
        %v1802 = vpop.permute.xlu0 %1801
        %v1804 = vsel %vm1534, %v1790, %v1798
        %v1805 = vsel %vm1534, %v1794, %v1802
        %v1806 = vmul.f32 %v1804, %v1560
        %v1807 = vmul.f32 %v1805, %v1561
        %v1808 = vadd.f32 %v1786, %v1806
        %v1809 = vadd.f32 %v1787, %v1807
        %1810 = vset.pattern.permute.xlu0 2
        %1811 = vperm.xlu0 %1810, %v1707
        %v1812 = vpop.permute.xlu0 %1811
        %1814 = vset.pattern.permute.xlu0 2
        %1815 = vperm.xlu0 %1814, %v1709
        %v1816 = vpop.permute.xlu0 %1815
        %1818 = vset.pattern.permute.xlu0 2
        %1819 = vperm.xlu0 %1818, %v1759
        %v1820 = vpop.permute.xlu0 %1819
        %1822 = vset.pattern.permute.xlu0 2
        %1823 = vperm.xlu0 %1822, %v1761
        %v1824 = vpop.permute.xlu0 %1823
        %v1826 = vsel %vm1534, %v1812, %v1820
        %v1827 = vsel %vm1534, %v1816, %v1824
        %v1828 = vmul.f32 %v1826, %v1586
        %v1829 = vmul.f32 %v1827, %v1587
        %v1830 = vadd.f32 %v1808, %v1828
        %v1831 = vadd.f32 %v1809, %v1829
        %1832 = vset.pattern.permute.xlu0 3
        %1833 = vperm.xlu0 %1832, %v1707
        %v1834 = vpop.permute.xlu0 %1833
        %1836 = vset.pattern.permute.xlu0 3
        %1837 = vperm.xlu0 %1836, %v1709
        %v1838 = vpop.permute.xlu0 %1837
        %1840 = vset.pattern.permute.xlu0 3
        %1841 = vperm.xlu0 %1840, %v1759
        %v1842 = vpop.permute.xlu0 %1841
        %1844 = vset.pattern.permute.xlu0 3
        %1845 = vperm.xlu0 %1844, %v1761
        %v1846 = vpop.permute.xlu0 %1845
        %v1848 = vsel %vm1534, %v1834, %v1842
        %v1849 = vsel %vm1534, %v1838, %v1846
        %v1850 = vmul.f32 %v1848, %v1615
        %v1851 = vmul.f32 %v1849, %v1616
        %v1852 = vadd.f32 %v1830, %v1850
        %v1853 = vadd.f32 %v1831, %v1851
        %1854 = vset.pattern.permute.xlu0 4
        %1855 = vperm.xlu0 %1854, %v1707
        %v1856 = vpop.permute.xlu0 %1855
        %1858 = vset.pattern.permute.xlu0 4
        %1859 = vperm.xlu0 %1858, %v1709
        %v1860 = vpop.permute.xlu0 %1859
        %1862 = vset.pattern.permute.xlu0 4
        %1863 = vperm.xlu0 %1862, %v1759
        %v1864 = vpop.permute.xlu0 %1863
        %1866 = vset.pattern.permute.xlu0 4
        %1867 = vperm.xlu0 %1866, %v1761
        %v1868 = vpop.permute.xlu0 %1867
        %v1870 = vsel %vm1534, %v1856, %v1864
        %v1871 = vsel %vm1534, %v1860, %v1868
        %v1872 = vmul.f32 %v1870, %v1645
        %v1873 = vmul.f32 %v1871, %v1646
        %v1874 = vadd.f32 %v1852, %v1872
        %v1875 = vadd.f32 %v1853, %v1873
        %v1876 = vpack.c.bf16 %v1875, %v1874
        %v1877 = vld [vmem:[%s885] sm:$0xf]
        %v1878 = vld [vmem:[%s885 + $0x4] sm:$0xf]
        %v1879 = vld [vmem:[%s885 + $0x8] sm:$0xf]
        %v1880 = vld [vmem:[%s885 + $0xc] sm:$0xf]
        %v1881 = vld [vmem:[%s885 + $0x10] sm:$0xf]
        %v1882 = vld [vmem:[%s885 + $0x14] sm:$0xf]
        %v1883 = vld [vmem:[%s885 + $0x18] sm:$0xf]
        %v1884 = vld [vmem:[%s885 + $0x1c] sm:$0xf]
        %v1885 = vld [vmem:[%s885 + $0x20] sm:$0xf]
        %v1886 = vld [vmem:[%s885 + $0x24] sm:$0xf]
        %v1887 = vld [vmem:[%s885 + $0x28] sm:$0xf]
        %v1888 = vld [vmem:[%s885 + $0x2c] sm:$0xf]
        %v1889 = vld [vmem:[%s885 + $0x30] sm:$0xf]
        %v1890 = vld [vmem:[%s885 + $0x34] sm:$0xf]
        %v1891 = vld [vmem:[%s885 + $0x38] sm:$0xf]
        %v1892 = vld [vmem:[%s885 + $0x3c] sm:$0xf]
        %v1893 = vld [vmem:[%s893] sm:$0x1]
        %v1895 = vlaneseq
        %v1896 = vshrl.u32 %v1895, 7
        %v1897 = vsub.s32 0, %v1896
        %v1898 = vrot.slane %v1893, %v1897
        %v1916 = vunpack.c.l.b16 %v1877
        %v1917 = vunpack.c.l.b16 %v1878
        %v1918 = vunpack.c.l.b16 %v1879
        %v1919 = vunpack.c.l.b16 %v1880
        %v1920 = vunpack.c.l.b16 %v1881
        %v1921 = vunpack.c.l.b16 %v1882
        %v1922 = vunpack.c.l.b16 %v1883
        %v1923 = vunpack.c.l.b16 %v1884
        %v1924 = vunpack.c.l.b16 %v1885
        %v1925 = vunpack.c.l.b16 %v1886
        %v1926 = vunpack.c.l.b16 %v1887
        %v1927 = vunpack.c.l.b16 %v1888
        %v1928 = vunpack.c.l.b16 %v1889
        %v1929 = vunpack.c.l.b16 %v1890
        %v1930 = vunpack.c.l.b16 %v1891
        %v1931 = vunpack.c.l.b16 %v1892
        %v1932 = vpack.c.b16 %v1917, %v1916
        %v1933 = vpack.c.b16 %v1919, %v1918
        %v1934 = vpack.c.b16 %v1921, %v1920
        %v1935 = vpack.c.b16 %v1923, %v1922
        %v1936 = vpack.c.b16 %v1925, %v1924
        %v1937 = vpack.c.b16 %v1927, %v1926
        %v1938 = vpack.c.b16 %v1929, %v1928
        %v1939 = vpack.c.b16 %v1931, %v1930
        %1948 = vmatprep.subr.bf16.mxu0 0
        %1949 = vmatpush1.bf16.msra.mxu0 %v1932
        %1950 = vmatprep.subr.bf16.mxu0 0
        %1951 = vmatpush1.bf16.msra.mxu0 %v1933
        %1952 = vmatprep.subr.bf16.mxu0 0
        %1953 = vmatpush1.bf16.msra.mxu0 %v1934
        %1954 = vmatprep.subr.bf16.mxu0 0
        %1955 = vmatpush1.bf16.msra.mxu0 %v1935
        %1956 = vmatprep.subr.bf16.mxu0 0
        %1957 = vmatpush1.bf16.msra.mxu0 %v1936
        %1958 = vmatprep.subr.bf16.mxu0 0
        %1959 = vmatpush1.bf16.msra.mxu0 %v1937
        %1960 = vmatprep.subr.bf16.mxu0 0
        %1961 = vmatpush1.bf16.msra.mxu0 %v1938
        %1962 = vmatprep.subr.bf16.mxu0 0
        %1963 = vmatpush1.bf16.msra.mxu0 %v1939
        %1964 = vmatprep.subr.bf16.mxu0 0
        %1965 = vmatpush1.bf16.msra.mxu0 0
        %1966 = vmatprep.subr.bf16.mxu0 0
        %1967 = vmatpush1.bf16.msra.mxu0 0
        %1968 = vmatprep.subr.bf16.mxu0 0
        %1969 = vmatpush1.bf16.msra.mxu0 0
        %1970 = vmatprep.subr.bf16.mxu0 0
        %1971 = vmatpush1.bf16.msra.mxu0 0
        %1972 = vmatprep.subr.bf16.mxu0 0
        %1973 = vmatpush1.bf16.msra.mxu0 0
        %1974 = vmatprep.subr.bf16.mxu0 0
        %1975 = vmatpush1.bf16.msra.mxu0 0
        %1976 = vmatprep.subr.bf16.mxu0 0
        %1977 = vmatpush1.bf16.msra.mxu0 0
        %1978 = vmatprep.subr.bf16.mxu0 0
        %1979 = vmatpush1.bf16.msra.mxu0 0
        %1980 = vmatprep.mubr.bf16.mxu0 0
        %1981 = vmatmul.mubr.bf16.gmra.mrb[0].mxu0 %v1876
        %v1982 = vpop.f32.mrb[0].mxu0
        %v1983 = vadd.f32 %v1898, %v1982
        %v1984 = vpop.f32.mrb[0].mxu0
        %v1985 = vpop.f32.mrb[0].mxu0
        %v1986 = vadd.f32 %v1898, %v1985
        %v1987 = vpop.f32.mrb[0].mxu0
        %1988 = vdwg.mxu0
        // Predicated region
        $region145: #{model_forward.3} parent=79 // pred_check
          %p1989 = pneg %p1063
        $region146: #{model_forward.3} parent=79 // pred_check_branch
          %1991 = sbr.rel (%p1989) target = $region148
        $region147: #{model_forward.3} parent=79 // pred_region
          %1992 = vst [vmem:[%s1061] sm:$0xff] %v1983
          %1993 = vst [vmem:[%s1061 + $0x8] sm:$0xff] %v1986
        $region148: #{model_forward.3} parent=79 // pred_fallthru
          _
        %p1994 = scmp.gt.s32.totalorder %s63, 0
        // Predicated region
        $region149: #{model_forward.3} parent=79 // pred_check
          %p1995 = pneg %p1994
        $region150: #{model_forward.3} parent=79 // pred_check_branch
          %1997 = sbr.rel (%p1995) target = $region152
        $region151: #{model_forward.3} parent=79 // pred_region
          %v1998 = vld [vmem:[%s1061] sm:$0xff]
          %v1999 = vld [vmem:[%s1061 + $0x8] sm:$0xff]
          %v2000 = vadd.f32 %v1998, %v1983
          %v2001 = vadd.f32 %v1999, %v1986
          %2002 = vst [vmem:[%s1061] sm:$0xff] %v2000
          %2003 = vst [vmem:[%s1061 + $0x8] sm:$0xff] %v2001
        $region152: #{model_forward.3} parent=79 // pred_fallthru
          _
        %v2004 = vadd.f32 %v1091, %v1983
        %v2005 = vadd.f32 %v1092, %v1986
        %2006 = vadd.xlane.f32.xlu0 %v2004
        %v2007 = vpop.xlane.xlu0 %2006
        %2008 = vadd.xlane.f32.xlu0 %v2005
        %v2009 = vpop.xlane.xlu0 %2008
        %v2010 = vmul.f32 %v2007, %v1097
        %v2011 = vmul.f32 %v2009, %v1097
        %v2012 = vsub.f32 %v2004, %v2010
        %v2013 = vsub.f32 %v2005, %v2011
        %v2014 = vmul.f32 %v2012, %v2012
        %v2015 = vmul.f32 %v2013, %v2013
        %2016 = vadd.xlane.f32.xlu0 %v2014
        %v2017 = vpop.xlane.xlu0 %2016
        %2018 = vadd.xlane.f32.xlu0 %v2015
        %v2019 = vpop.xlane.xlu0 %2018
        %v2020 = vmul.f32 %v2017, %v1097
        %v2021 = vmul.f32 %v2019, %v1097
        %v2022 = vadd.f32 %v2020, 1e-05
        %v2023 = vadd.f32 %v2021, 1e-05
        %v2024 = vrsqrt.pop %v2022
        %v2025 = vrsqrt.pop %v2023
        %v2026 = vmul.f32 %v2012, %v2024
        %v2027 = vmul.f32 %v2013, %v2025
        %v2028 = vld [vmem:[%s901] sm:$0x1]
        %v2030 = vlaneseq
        %v2031 = vshrl.u32 %v2030, 7
        %v2032 = vsub.s32 0, %v2031
        %v2033 = vrot.slane %v2028, %v2032
        %v2035 = vmul.f32 %v2026, %v2033
        %v2036 = vmul.f32 %v2027, %v2033
        %v2037 = vld [vmem:[%s909] sm:$0x1]
        %v2039 = vlaneseq
        %v2040 = vshrl.u32 %v2039, 7
        %v2041 = vsub.s32 0, %v2040
        %v2042 = vrot.slane %v2037, %v2041
        %v2044 = vadd.f32 %v2035, %v2042
        %v2045 = vadd.f32 %v2036, %v2042
        %v2046 = vpack.c.bf16 %v2045, %v2044
        %v2047 = vld [vmem:[%s918] sm:$0xff]
        %v2048 = vld [vmem:[%s918 + $0x8] sm:$0xff]
        %v2049 = vld [vmem:[%s918 + $0x10] sm:$0xff]
        %v2050 = vld [vmem:[%s918 + $0x18] sm:$0xff]
        %v2051 = vld [vmem:[%s918 + $0x20] sm:$0xff]
        %v2052 = vld [vmem:[%s918 + $0x28] sm:$0xff]
        %v2053 = vld [vmem:[%s918 + $0x30] sm:$0xff]
        %v2054 = vld [vmem:[%s918 + $0x38] sm:$0xff]
        %v2055 = vld [vmem:[%s918 + $0x40] sm:$0xff]
        %v2056 = vld [vmem:[%s918 + $0x48] sm:$0xff]
        %v2057 = vld [vmem:[%s918 + $0x50] sm:$0xff]
        %v2058 = vld [vmem:[%s918 + $0x58] sm:$0xff]
        %v2059 = vld [vmem:[%s918 + $0x60] sm:$0xff]
        %v2060 = vld [vmem:[%s918 + $0x68] sm:$0xff]
        %v2061 = vld [vmem:[%s918 + $0x70] sm:$0xff]
        %v2062 = vld [vmem:[%s918 + $0x78] sm:$0xff]
        %v2063 = vld [vmem:[%s918 + $0x80] sm:$0xff]
        %v2064 = vld [vmem:[%s918 + $0x88] sm:$0xff]
        %v2065 = vld [vmem:[%s918 + $0x90] sm:$0xff]
        %v2066 = vld [vmem:[%s918 + $0x98] sm:$0xff]
        %v2067 = vld [vmem:[%s918 + $0xa0] sm:$0xff]
        %v2068 = vld [vmem:[%s918 + $0xa8] sm:$0xff]
        %v2069 = vld [vmem:[%s918 + $0xb0] sm:$0xff]
        %v2070 = vld [vmem:[%s918 + $0xb8] sm:$0xff]
        %v2071 = vld [vmem:[%s918 + $0xc0] sm:$0xff]
        %v2072 = vld [vmem:[%s918 + $0xc8] sm:$0xff]
        %v2073 = vld [vmem:[%s918 + $0xd0] sm:$0xff]
        %v2074 = vld [vmem:[%s918 + $0xd8] sm:$0xff]
        %v2075 = vld [vmem:[%s918 + $0xe0] sm:$0xff]
        %v2076 = vld [vmem:[%s918 + $0xe8] sm:$0xff]
        %v2077 = vld [vmem:[%s918 + $0xf0] sm:$0xff]
        %v2078 = vld [vmem:[%s918 + $0xf8] sm:$0xff]
        %v2079 = vld [vmem:[%s927] sm:$0xf]
        %v2081 = vlaneseq
        %v2082 = vshrl.u32 %v2081, 7
        %v2083 = vsub.s32 0, %v2082
        %v2084 = vrot.slane %v2079, %v2083
        %v2085 = vlaneseq
        %v2086 = vshrl.u32 %v2085, 7
        %v2087 = vsub.s32 1, %v2086
        %v2088 = vrot.slane %v2079, %v2087
        %v2089 = vlaneseq
        %v2090 = vshrl.u32 %v2089, 7
        %v2091 = vsub.s32 2, %v2090
        %v2092 = vrot.slane %v2079, %v2091
        %v2093 = vlaneseq
        %v2094 = vshrl.u32 %v2093, 7
        %v2095 = vsub.s32 3, %v2094
        %v2096 = vrot.slane %v2079, %v2095
        %v2133 = vunpack.c.l.b16 %v2047
        %v2134 = vunpack.c.h.b16 %v2047
        %v2135 = vunpack.c.l.b16 %v2048
        %v2136 = vunpack.c.h.b16 %v2048
        %v2137 = vunpack.c.l.b16 %v2049
        %v2138 = vunpack.c.h.b16 %v2049
        %v2139 = vunpack.c.l.b16 %v2050
        %v2140 = vunpack.c.h.b16 %v2050
        %v2141 = vunpack.c.l.b16 %v2051
        %v2142 = vunpack.c.h.b16 %v2051
        %v2143 = vunpack.c.l.b16 %v2052
        %v2144 = vunpack.c.h.b16 %v2052
        %v2145 = vunpack.c.l.b16 %v2053
        %v2146 = vunpack.c.h.b16 %v2053
        %v2147 = vunpack.c.l.b16 %v2054
        %v2148 = vunpack.c.h.b16 %v2054
        %v2149 = vunpack.c.l.b16 %v2055
        %v2150 = vunpack.c.h.b16 %v2055
        %v2151 = vunpack.c.l.b16 %v2056
        %v2152 = vunpack.c.h.b16 %v2056
        %v2153 = vunpack.c.l.b16 %v2057
        %v2154 = vunpack.c.h.b16 %v2057
        %v2155 = vunpack.c.l.b16 %v2058
        %v2156 = vunpack.c.h.b16 %v2058
        %v2157 = vunpack.c.l.b16 %v2059
        %v2158 = vunpack.c.h.b16 %v2059
        %v2159 = vunpack.c.l.b16 %v2060
        %v2160 = vunpack.c.h.b16 %v2060
        %v2161 = vunpack.c.l.b16 %v2061
        %v2162 = vunpack.c.h.b16 %v2061
        %v2163 = vunpack.c.l.b16 %v2062
        %v2164 = vunpack.c.h.b16 %v2062
        %v2165 = vunpack.c.l.b16 %v2063
        %v2166 = vunpack.c.h.b16 %v2063
        %v2167 = vunpack.c.l.b16 %v2064
        %v2168 = vunpack.c.h.b16 %v2064
        %v2169 = vunpack.c.l.b16 %v2065
        %v2170 = vunpack.c.h.b16 %v2065
        %v2171 = vunpack.c.l.b16 %v2066
        %v2172 = vunpack.c.h.b16 %v2066
        %v2173 = vunpack.c.l.b16 %v2067
        %v2174 = vunpack.c.h.b16 %v2067
        %v2175 = vunpack.c.l.b16 %v2068
        %v2176 = vunpack.c.h.b16 %v2068
        %v2177 = vunpack.c.l.b16 %v2069
        %v2178 = vunpack.c.h.b16 %v2069
        %v2179 = vunpack.c.l.b16 %v2070
        %v2180 = vunpack.c.h.b16 %v2070
        %v2181 = vunpack.c.l.b16 %v2071
        %v2182 = vunpack.c.h.b16 %v2071
        %v2183 = vunpack.c.l.b16 %v2072
        %v2184 = vunpack.c.h.b16 %v2072
        %v2185 = vunpack.c.l.b16 %v2073
        %v2186 = vunpack.c.h.b16 %v2073
        %v2187 = vunpack.c.l.b16 %v2074
        %v2188 = vunpack.c.h.b16 %v2074
        %v2189 = vunpack.c.l.b16 %v2075
        %v2190 = vunpack.c.h.b16 %v2075
        %v2191 = vunpack.c.l.b16 %v2076
        %v2192 = vunpack.c.h.b16 %v2076
        %v2193 = vunpack.c.l.b16 %v2077
        %v2194 = vunpack.c.h.b16 %v2077
        %v2195 = vunpack.c.l.b16 %v2078
        %v2196 = vunpack.c.h.b16 %v2078
        %v2197 = vpack.c.b16 %v2137, %v2133
        %v2198 = vpack.c.b16 %v2138, %v2134
        %v2199 = vpack.c.b16 %v2139, %v2135
        %v2200 = vpack.c.b16 %v2140, %v2136
        %v2201 = vpack.c.b16 %v2145, %v2141
        %v2202 = vpack.c.b16 %v2146, %v2142
        %v2203 = vpack.c.b16 %v2147, %v2143
        %v2204 = vpack.c.b16 %v2148, %v2144
        %v2205 = vpack.c.b16 %v2153, %v2149
        %v2206 = vpack.c.b16 %v2154, %v2150
        %v2207 = vpack.c.b16 %v2155, %v2151
        %v2208 = vpack.c.b16 %v2156, %v2152
        %v2209 = vpack.c.b16 %v2161, %v2157
        %v2210 = vpack.c.b16 %v2162, %v2158
        %v2211 = vpack.c.b16 %v2163, %v2159
        %v2212 = vpack.c.b16 %v2164, %v2160
        %v2213 = vpack.c.b16 %v2169, %v2165
        %v2214 = vpack.c.b16 %v2170, %v2166
        %v2215 = vpack.c.b16 %v2171, %v2167
        %v2216 = vpack.c.b16 %v2172, %v2168
        %v2217 = vpack.c.b16 %v2177, %v2173
        %v2218 = vpack.c.b16 %v2178, %v2174
        %v2219 = vpack.c.b16 %v2179, %v2175
        %v2220 = vpack.c.b16 %v2180, %v2176
        %v2221 = vpack.c.b16 %v2185, %v2181
        %v2222 = vpack.c.b16 %v2186, %v2182
        %v2223 = vpack.c.b16 %v2187, %v2183
        %v2224 = vpack.c.b16 %v2188, %v2184
        %v2225 = vpack.c.b16 %v2193, %v2189
        %v2226 = vpack.c.b16 %v2194, %v2190
        %v2227 = vpack.c.b16 %v2195, %v2191
        %v2228 = vpack.c.b16 %v2196, %v2192
        %2261 = vmatprep.subr.bf16.mxu0 %v2198
        %2262 = vmatpush1.bf16.msra.mxu0 %v2197
        %2263 = vmatprep.subr.bf16.mxu0 %v2202
        %2264 = vmatpush1.bf16.msra.mxu0 %v2201
        %2265 = vmatprep.subr.bf16.mxu0 %v2206
        %2266 = vmatpush1.bf16.msra.mxu0 %v2205
        %2267 = vmatprep.subr.bf16.mxu0 %v2210
        %2268 = vmatpush1.bf16.msra.mxu0 %v2209
        %2269 = vmatprep.subr.bf16.mxu0 %v2214
        %2270 = vmatpush1.bf16.msra.mxu0 %v2213
        %2271 = vmatprep.subr.bf16.mxu0 %v2218
        %2272 = vmatpush1.bf16.msra.mxu0 %v2217
        %2273 = vmatprep.subr.bf16.mxu0 %v2222
        %2274 = vmatpush1.bf16.msra.mxu0 %v2221
        %2275 = vmatprep.subr.bf16.mxu0 %v2226
        %2276 = vmatpush1.bf16.msra.mxu0 %v2225
        %2277 = vmatprep.subr.bf16.mxu0 0
        %2278 = vmatpush1.bf16.msra.mxu0 0
        %2279 = vmatprep.subr.bf16.mxu0 0
        %2280 = vmatpush1.bf16.msra.mxu0 0
        %2281 = vmatprep.subr.bf16.mxu0 0
        %2282 = vmatpush1.bf16.msra.mxu0 0
        %2283 = vmatprep.subr.bf16.mxu0 0
        %2284 = vmatpush1.bf16.msra.mxu0 0
        %2285 = vmatprep.subr.bf16.mxu0 0
        %2286 = vmatpush1.bf16.msra.mxu0 0
        %2287 = vmatprep.subr.bf16.mxu0 0
        %2288 = vmatpush1.bf16.msra.mxu0 0
        %2289 = vmatprep.subr.bf16.mxu0 0
        %2290 = vmatpush1.bf16.msra.mxu0 0
        %2291 = vmatprep.subr.bf16.mxu0 0
        %2292 = vmatpush1.bf16.msra.mxu0 0
        %2293 = vmatprep.mubr.bf16.mxu0 0
        %2294 = vmatmul.mubr.bf16.gmra.mrb[0].mxu0 %v2046
        %v2295 = vpop.f32.mrb[0].mxu0
        %v2296 = vadd.f32 %v2084, %v2295
        %v2297 = vpop.f32.mrb[0].mxu0
        %v2298 = vadd.f32 %v2088, %v2297
        %v2299 = vpop.f32.mrb[0].mxu0
        %v2300 = vadd.f32 %v2084, %v2299
        %v2301 = vpop.f32.mrb[0].mxu0
        %v2302 = vadd.f32 %v2088, %v2301
        %2303 = vdwg.mxu0
        %2304 = vmatprep.subr.bf16.mxu0 %v2200
        %2305 = vmatpush1.bf16.msra.mxu0 %v2199
        %2306 = vmatprep.subr.bf16.mxu0 %v2204
        %2307 = vmatpush1.bf16.msra.mxu0 %v2203
        %2308 = vmatprep.subr.bf16.mxu0 %v2208
        %2309 = vmatpush1.bf16.msra.mxu0 %v2207
        %2310 = vmatprep.subr.bf16.mxu0 %v2212
        %2311 = vmatpush1.bf16.msra.mxu0 %v2211
        %2312 = vmatprep.subr.bf16.mxu0 %v2216
        %2313 = vmatpush1.bf16.msra.mxu0 %v2215
        %2314 = vmatprep.subr.bf16.mxu0 %v2220
        %2315 = vmatpush1.bf16.msra.mxu0 %v2219
        %2316 = vmatprep.subr.bf16.mxu0 %v2224
        %2317 = vmatpush1.bf16.msra.mxu0 %v2223
        %2318 = vmatprep.subr.bf16.mxu0 %v2228
        %2319 = vmatpush1.bf16.msra.mxu0 %v2227
        %2320 = vmatprep.subr.bf16.mxu0 0
        %2321 = vmatpush1.bf16.msra.mxu0 0
        %2322 = vmatprep.subr.bf16.mxu0 0
        %2323 = vmatpush1.bf16.msra.mxu0 0
        %2324 = vmatprep.subr.bf16.mxu0 0
        %2325 = vmatpush1.bf16.msra.mxu0 0
        %2326 = vmatprep.subr.bf16.mxu0 0
        %2327 = vmatpush1.bf16.msra.mxu0 0
        %2328 = vmatprep.subr.bf16.mxu0 0
        %2329 = vmatpush1.bf16.msra.mxu0 0
        %2330 = vmatprep.subr.bf16.mxu0 0
        %2331 = vmatpush1.bf16.msra.mxu0 0
        %2332 = vmatprep.subr.bf16.mxu0 0
        %2333 = vmatpush1.bf16.msra.mxu0 0
        %2334 = vmatprep.subr.bf16.mxu0 0
        %2335 = vmatpush1.bf16.msra.mxu0 0
        %2336 = vmatprep.mubr.bf16.mxu0 0
        %2337 = vmatmul.mubr.bf16.gmra.mrb[0].mxu0 %v2046
        %v2338 = vpop.f32.mrb[0].mxu0
        %v2339 = vadd.f32 %v2092, %v2338
        %v2340 = vpop.f32.mrb[0].mxu0
        %v2341 = vadd.f32 %v2096, %v2340
        %v2342 = vpop.f32.mrb[0].mxu0
        %v2343 = vadd.f32 %v2092, %v2342
        %v2344 = vpop.f32.mrb[0].mxu0
        %v2345 = vadd.f32 %v2096, %v2344
        %2346 = vdwg.mxu0
        %v2347 = vmax.f32 %v2296, 0.0
        %v2348 = vmax.f32 %v2298, 0.0
        %v2349 = vmax.f32 %v2339, 0.0
        %v2350 = vmax.f32 %v2341, 0.0
        %v2351 = vmax.f32 %v2300, 0.0
        %v2352 = vmax.f32 %v2302, 0.0
        %v2353 = vmax.f32 %v2343, 0.0
        %v2354 = vmax.f32 %v2345, 0.0
        %v2355 = vpack.c.bf16 %v2351, %v2347
        %v2356 = vpack.c.bf16 %v2352, %v2348
        %v2357 = vpack.c.bf16 %v2353, %v2349
        %v2358 = vpack.c.bf16 %v2354, %v2350
        %v2359 = vld [vmem:[%s936] sm:$0xf]
        %v2360 = vld [vmem:[%s936 + $0x4] sm:$0xf]
        %v2361 = vld [vmem:[%s936 + $0x8] sm:$0xf]
        %v2362 = vld [vmem:[%s936 + $0xc] sm:$0xf]
        %v2363 = vld [vmem:[%s936 + $0x10] sm:$0xf]
        %v2364 = vld [vmem:[%s936 + $0x14] sm:$0xf]
        %v2365 = vld [vmem:[%s936 + $0x18] sm:$0xf]
        %v2366 = vld [vmem:[%s936 + $0x1c] sm:$0xf]
        %v2367 = vld [vmem:[%s936 + $0x20] sm:$0xf]
        %v2368 = vld [vmem:[%s936 + $0x24] sm:$0xf]
        %v2369 = vld [vmem:[%s936 + $0x28] sm:$0xf]
        %v2370 = vld [vmem:[%s936 + $0x2c] sm:$0xf]
        %v2371 = vld [vmem:[%s936 + $0x30] sm:$0xf]
        %v2372 = vld [vmem:[%s936 + $0x34] sm:$0xf]
        %v2373 = vld [vmem:[%s936 + $0x38] sm:$0xf]
        %v2374 = vld [vmem:[%s936 + $0x3c] sm:$0xf]
        %v2375 = vld [vmem:[%s936 + $0x40] sm:$0xf]
        %v2376 = vld [vmem:[%s936 + $0x44] sm:$0xf]
        %v2377 = vld [vmem:[%s936 + $0x48] sm:$0xf]
        %v2378 = vld [vmem:[%s936 + $0x4c] sm:$0xf]
        %v2379 = vld [vmem:[%s936 + $0x50] sm:$0xf]
        %v2380 = vld [vmem:[%s936 + $0x54] sm:$0xf]
        %v2381 = vld [vmem:[%s936 + $0x58] sm:$0xf]
        %v2382 = vld [vmem:[%s936 + $0x5c] sm:$0xf]
        %v2383 = vld [vmem:[%s936 + $0x60] sm:$0xf]
        %v2384 = vld [vmem:[%s936 + $0x64] sm:$0xf]
        %v2385 = vld [vmem:[%s936 + $0x68] sm:$0xf]
        %v2386 = vld [vmem:[%s936 + $0x6c] sm:$0xf]
        %v2387 = vld [vmem:[%s936 + $0x70] sm:$0xf]
        %v2388 = vld [vmem:[%s936 + $0x74] sm:$0xf]
        %v2389 = vld [vmem:[%s936 + $0x78] sm:$0xf]
        %v2390 = vld [vmem:[%s936 + $0x7c] sm:$0xf]
        %v2391 = vld [vmem:[%s936 + $0x80] sm:$0xf]
        %v2392 = vld [vmem:[%s936 + $0x84] sm:$0xf]
        %v2393 = vld [vmem:[%s936 + $0x88] sm:$0xf]
        %v2394 = vld [vmem:[%s936 + $0x8c] sm:$0xf]
        %v2395 = vld [vmem:[%s936 + $0x90] sm:$0xf]
        %v2396 = vld [vmem:[%s936 + $0x94] sm:$0xf]
        %v2397 = vld [vmem:[%s936 + $0x98] sm:$0xf]
        %v2398 = vld [vmem:[%s936 + $0x9c] sm:$0xf]
        %v2399 = vld [vmem:[%s936 + $0xa0] sm:$0xf]
        %v2400 = vld [vmem:[%s936 + $0xa4] sm:$0xf]
        %v2401 = vld [vmem:[%s936 + $0xa8] sm:$0xf]
        %v2402 = vld [vmem:[%s936 + $0xac] sm:$0xf]
        %v2403 = vld [vmem:[%s936 + $0xb0] sm:$0xf]
        %v2404 = vld [vmem:[%s936 + $0xb4] sm:$0xf]
        %v2405 = vld [vmem:[%s936 + $0xb8] sm:$0xf]
        %v2406 = vld [vmem:[%s936 + $0xbc] sm:$0xf]
        %v2407 = vld [vmem:[%s936 + $0xc0] sm:$0xf]
        %v2408 = vld [vmem:[%s936 + $0xc4] sm:$0xf]
        %v2409 = vld [vmem:[%s936 + $0xc8] sm:$0xf]
        %v2410 = vld [vmem:[%s936 + $0xcc] sm:$0xf]
        %v2411 = vld [vmem:[%s936 + $0xd0] sm:$0xf]
        %v2412 = vld [vmem:[%s936 + $0xd4] sm:$0xf]
        %v2413 = vld [vmem:[%s936 + $0xd8] sm:$0xf]
        %v2414 = vld [vmem:[%s936 + $0xdc] sm:$0xf]
        %v2415 = vld [vmem:[%s936 + $0xe0] sm:$0xf]
        %v2416 = vld [vmem:[%s936 + $0xe4] sm:$0xf]
        %v2417 = vld [vmem:[%s936 + $0xe8] sm:$0xf]
        %v2418 = vld [vmem:[%s936 + $0xec] sm:$0xf]
        %v2419 = vld [vmem:[%s936 + $0xf0] sm:$0xf]
        %v2420 = vld [vmem:[%s936 + $0xf4] sm:$0xf]
        %v2421 = vld [vmem:[%s936 + $0xf8] sm:$0xf]
        %v2422 = vld [vmem:[%s936 + $0xfc] sm:$0xf]
        %v2423 = vld [vmem:[%s944] sm:$0x1]
        %v2425 = vlaneseq
        %v2426 = vshrl.u32 %v2425, 7
        %v2427 = vsub.s32 0, %v2426
        %v2428 = vrot.slane %v2423, %v2427
        %v2494 = vunpack.c.l.b16 %v2359
        %v2495 = vunpack.c.l.b16 %v2360
        %v2496 = vunpack.c.l.b16 %v2361
        %v2497 = vunpack.c.l.b16 %v2362
        %v2498 = vunpack.c.l.b16 %v2363
        %v2499 = vunpack.c.l.b16 %v2364
        %v2500 = vunpack.c.l.b16 %v2365
        %v2501 = vunpack.c.l.b16 %v2366
        %v2502 = vunpack.c.l.b16 %v2367
        %v2503 = vunpack.c.l.b16 %v2368
        %v2504 = vunpack.c.l.b16 %v2369
        %v2505 = vunpack.c.l.b16 %v2370
        %v2506 = vunpack.c.l.b16 %v2371
        %v2507 = vunpack.c.l.b16 %v2372
        %v2508 = vunpack.c.l.b16 %v2373
        %v2509 = vunpack.c.l.b16 %v2374
        %v2510 = vunpack.c.l.b16 %v2375
        %v2511 = vunpack.c.l.b16 %v2376
        %v2512 = vunpack.c.l.b16 %v2377
        %v2513 = vunpack.c.l.b16 %v2378
        %v2514 = vunpack.c.l.b16 %v2379
        %v2515 = vunpack.c.l.b16 %v2380
        %v2516 = vunpack.c.l.b16 %v2381
        %v2517 = vunpack.c.l.b16 %v2382
        %v2518 = vunpack.c.l.b16 %v2383
        %v2519 = vunpack.c.l.b16 %v2384
        %v2520 = vunpack.c.l.b16 %v2385
        %v2521 = vunpack.c.l.b16 %v2386
        %v2522 = vunpack.c.l.b16 %v2387
        %v2523 = vunpack.c.l.b16 %v2388
        %v2524 = vunpack.c.l.b16 %v2389
        %v2525 = vunpack.c.l.b16 %v2390
        %v2526 = vunpack.c.l.b16 %v2391
        %v2527 = vunpack.c.l.b16 %v2392
        %v2528 = vunpack.c.l.b16 %v2393
        %v2529 = vunpack.c.l.b16 %v2394
        %v2530 = vunpack.c.l.b16 %v2395
        %v2531 = vunpack.c.l.b16 %v2396
        %v2532 = vunpack.c.l.b16 %v2397
        %v2533 = vunpack.c.l.b16 %v2398
        %v2534 = vunpack.c.l.b16 %v2399
        %v2535 = vunpack.c.l.b16 %v2400
        %v2536 = vunpack.c.l.b16 %v2401
        %v2537 = vunpack.c.l.b16 %v2402
        %v2538 = vunpack.c.l.b16 %v2403
        %v2539 = vunpack.c.l.b16 %v2404
        %v2540 = vunpack.c.l.b16 %v2405
        %v2541 = vunpack.c.l.b16 %v2406
        %v2542 = vunpack.c.l.b16 %v2407
        %v2543 = vunpack.c.l.b16 %v2408
        %v2544 = vunpack.c.l.b16 %v2409
        %v2545 = vunpack.c.l.b16 %v2410
        %v2546 = vunpack.c.l.b16 %v2411
        %v2547 = vunpack.c.l.b16 %v2412
        %v2548 = vunpack.c.l.b16 %v2413
        %v2549 = vunpack.c.l.b16 %v2414
        %v2550 = vunpack.c.l.b16 %v2415
        %v2551 = vunpack.c.l.b16 %v2416
        %v2552 = vunpack.c.l.b16 %v2417
        %v2553 = vunpack.c.l.b16 %v2418
        %v2554 = vunpack.c.l.b16 %v2419
        %v2555 = vunpack.c.l.b16 %v2420
        %v2556 = vunpack.c.l.b16 %v2421
        %v2557 = vunpack.c.l.b16 %v2422
        %v2558 = vpack.c.b16 %v2495, %v2494
        %v2559 = vpack.c.b16 %v2497, %v2496
        %v2560 = vpack.c.b16 %v2499, %v2498
        %v2561 = vpack.c.b16 %v2501, %v2500
        %v2562 = vpack.c.b16 %v2503, %v2502
        %v2563 = vpack.c.b16 %v2505, %v2504
        %v2564 = vpack.c.b16 %v2507, %v2506
        %v2565 = vpack.c.b16 %v2509, %v2508
        %v2566 = vpack.c.b16 %v2511, %v2510
        %v2567 = vpack.c.b16 %v2513, %v2512
        %v2568 = vpack.c.b16 %v2515, %v2514
        %v2569 = vpack.c.b16 %v2517, %v2516
        %v2570 = vpack.c.b16 %v2519, %v2518
        %v2571 = vpack.c.b16 %v2521, %v2520
        %v2572 = vpack.c.b16 %v2523, %v2522
        %v2573 = vpack.c.b16 %v2525, %v2524
        %v2574 = vpack.c.b16 %v2527, %v2526
        %v2575 = vpack.c.b16 %v2529, %v2528
        %v2576 = vpack.c.b16 %v2531, %v2530
        %v2577 = vpack.c.b16 %v2533, %v2532
        %v2578 = vpack.c.b16 %v2535, %v2534
        %v2579 = vpack.c.b16 %v2537, %v2536
        %v2580 = vpack.c.b16 %v2539, %v2538
        %v2581 = vpack.c.b16 %v2541, %v2540
        %v2582 = vpack.c.b16 %v2543, %v2542
        %v2583 = vpack.c.b16 %v2545, %v2544
        %v2584 = vpack.c.b16 %v2547, %v2546
        %v2585 = vpack.c.b16 %v2549, %v2548
        %v2586 = vpack.c.b16 %v2551, %v2550
        %v2587 = vpack.c.b16 %v2553, %v2552
        %v2588 = vpack.c.b16 %v2555, %v2554
        %v2589 = vpack.c.b16 %v2557, %v2556
        %2622 = vmatprep.subr.bf16.mxu0 0
        %2623 = vmatpush1.bf16.msra.mxu0 %v2558
        %2624 = vmatprep.subr.bf16.mxu0 0
        %2625 = vmatpush1.bf16.msra.mxu0 %v2559
        %2626 = vmatprep.subr.bf16.mxu0 0
        %2627 = vmatpush1.bf16.msra.mxu0 %v2560
        %2628 = vmatprep.subr.bf16.mxu0 0
        %2629 = vmatpush1.bf16.msra.mxu0 %v2561
        %2630 = vmatprep.subr.bf16.mxu0 0
        %2631 = vmatpush1.bf16.msra.mxu0 %v2562
        %2632 = vmatprep.subr.bf16.mxu0 0
        %2633 = vmatpush1.bf16.msra.mxu0 %v2563
        %2634 = vmatprep.subr.bf16.mxu0 0
        %2635 = vmatpush1.bf16.msra.mxu0 %v2564
        %2636 = vmatprep.subr.bf16.mxu0 0
        %2637 = vmatpush1.bf16.msra.mxu0 %v2565
        %2638 = vmatprep.subr.bf16.mxu0 0
        %2639 = vmatpush1.bf16.msra.mxu0 %v2566
        %2640 = vmatprep.subr.bf16.mxu0 0
        %2641 = vmatpush1.bf16.msra.mxu0 %v2567
        %2642 = vmatprep.subr.bf16.mxu0 0
        %2643 = vmatpush1.bf16.msra.mxu0 %v2568
        %2644 = vmatprep.subr.bf16.mxu0 0
        %2645 = vmatpush1.bf16.msra.mxu0 %v2569
        %2646 = vmatprep.subr.bf16.mxu0 0
        %2647 = vmatpush1.bf16.msra.mxu0 %v2570
        %2648 = vmatprep.subr.bf16.mxu0 0
        %2649 = vmatpush1.bf16.msra.mxu0 %v2571
        %2650 = vmatprep.subr.bf16.mxu0 0
        %2651 = vmatpush1.bf16.msra.mxu0 %v2572
        %2652 = vmatprep.subr.bf16.mxu0 0
        %2653 = vmatpush1.bf16.msra.mxu0 %v2573
        %2654 = vmatprep.mubr.bf16.mxu0 %v2356
        %2655 = vmatmul.mubr.bf16.gmra.mrb[0].mxu0 %v2355
        %v2656 = vpop.f32.mrb[0].mxu0
        %v2657 = vadd.f32 %v2428, %v2656
        %v2658 = vpop.f32.mrb[0].mxu0
        %v2659 = vpop.f32.mrb[0].mxu0
        %v2660 = vadd.f32 %v2428, %v2659
        %v2661 = vpop.f32.mrb[0].mxu0
        %2662 = vdwg.mxu0
        %2663 = vmatprep.subr.bf16.mxu0 0
        %2664 = vmatpush1.bf16.msra.mxu0 %v2574
        %2665 = vmatprep.subr.bf16.mxu0 0
        %2666 = vmatpush1.bf16.msra.mxu0 %v2575
        %2667 = vmatprep.subr.bf16.mxu0 0
        %2668 = vmatpush1.bf16.msra.mxu0 %v2576
        %2669 = vmatprep.subr.bf16.mxu0 0
        %2670 = vmatpush1.bf16.msra.mxu0 %v2577
        %2671 = vmatprep.subr.bf16.mxu0 0
        %2672 = vmatpush1.bf16.msra.mxu0 %v2578
        %2673 = vmatprep.subr.bf16.mxu0 0
        %2674 = vmatpush1.bf16.msra.mxu0 %v2579
        %2675 = vmatprep.subr.bf16.mxu0 0
        %2676 = vmatpush1.bf16.msra.mxu0 %v2580
        %2677 = vmatprep.subr.bf16.mxu0 0
        %2678 = vmatpush1.bf16.msra.mxu0 %v2581
        %2679 = vmatprep.subr.bf16.mxu0 0
        %2680 = vmatpush1.bf16.msra.mxu0 %v2582
        %2681 = vmatprep.subr.bf16.mxu0 0
        %2682 = vmatpush1.bf16.msra.mxu0 %v2583
        %2683 = vmatprep.subr.bf16.mxu0 0
        %2684 = vmatpush1.bf16.msra.mxu0 %v2584
        %2685 = vmatprep.subr.bf16.mxu0 0
        %2686 = vmatpush1.bf16.msra.mxu0 %v2585
        %2687 = vmatprep.subr.bf16.mxu0 0
        %2688 = vmatpush1.bf16.msra.mxu0 %v2586
        %2689 = vmatprep.subr.bf16.mxu0 0
        %2690 = vmatpush1.bf16.msra.mxu0 %v2587
        %2691 = vmatprep.subr.bf16.mxu0 0
        %2692 = vmatpush1.bf16.msra.mxu0 %v2588
        %2693 = vmatprep.subr.bf16.mxu0 0
        %2694 = vmatpush1.bf16.msra.mxu0 %v2589
        %2695 = vmatprep.mubr.bf16.mxu0 %v2358
        %2696 = vmatmul.mubr.bf16.gmra.mrb[0].mxu0 %v2357
        %v2697 = vpop.f32.mrb[0].mxu0
        %v2698 = vadd.f32 %v2657, %v2697
        %v2699 = vpop.f32.mrb[0].mxu0
        %v2700 = vpop.f32.mrb[0].mxu0
        %v2701 = vadd.f32 %v2660, %v2700
        %v2702 = vpop.f32.mrb[0].mxu0
        %2703 = vdwg.mxu0
        %v2704 = vadd.f32 %v2004, %v2698
        %v2705 = vadd.f32 %v2005, %v2701
        %2706 = vst [vmem:[%s1054] sm:$0xff] %v2704
        %2707 = vst [vmem:[%s1054 + $0x8] sm:$0xff] %v2705
        %s2708 = sand.u32 %s468, 1
        %s2709 = scalar_lea.sflag [#allocation6], %s2708
        %s2710 = sand.u32 %s468, 1
        %s2711 = smul.addr %s2710, 16
        %s2712 = scalar_lea.vmem [#allocation28], %s2711
        %s2713 = sand.u32 %s494, 1
        %s2714 = scalar_lea.sflag [#allocation30], %s2713
        %s2715 = sand.u32 %s494, 1
        %s2716 = smul.addr %s2715, 16
        %s2717 = scalar_lea.vmem [#allocation29], %s2716
        // Predicated region
        $region153: #{model_forward.3} parent=79 // pred_check
          %p2718 = pneg %p478
        $region154: #{model_forward.3} parent=79 // pred_check_branch
          %2720 = sbr.rel (%p2718) target = $region156
        $region155: #{model_forward.3} parent=79 // pred_region
          %s2722 = ssub.s32 256, 256
          %2723 = vsyncadd %s2709, %s2722
          %s2724 = smul.addr %s62, 2
          %s2725 = smul.addr %s2724, 128
          %s2726 = scalar_lea.hbm %s15, %s2725
          %s2727 = sshll.u32 %s2712, 4
          %s2728 = int_to_ptr.vmem [resolvable:$true] %s2727
          %2733 = dma.vmem_to_hbm [thread:$0]  %s2728, 256, %s2726, %s2709, 128, 128, 8
        $region156: #{model_forward.3} parent=79 // pred_fallthru
          _
        // Predicated region
        $region157: #{model_forward.3} parent=79 // pred_check
          %p2734 = pneg %p504
        $region158: #{model_forward.3} parent=79 // pred_check_branch
          %2736 = sbr.rel (%p2734) target = $region160
        $region159: #{model_forward.3} parent=79 // pred_region
          %s2738 = ssub.s32 256, 256
          %2739 = vsyncadd %s2714, %s2738
          %s2740 = smul.addr %s62, 2
          %s2741 = smul.addr %s2740, 128
          %s2742 = scalar_lea.hbm %s16, %s2741
          %s2743 = sshll.u32 %s2717, 4
          %s2744 = int_to_ptr.vmem [resolvable:$true] %s2743
          %2749 = dma.vmem_to_hbm [thread:$0]  %s2744, 256, %s2742, %s2714, 128, 128, 8
        $region160: #{model_forward.3} parent=79 // pred_fallthru
          _
      $region80: #{model_forward.3} parent=5 // pred_fallthru
        _
      %p2750 = scmp.le.s32.totalorder 2, %s53
      // Predicated region
      $region161: #{model_forward.3} parent=5 // pred_check
        %p2751 = pneg %p2750
      $region162: #{model_forward.3} parent=5 // pred_check_branch
        %2753 = sbr.rel (%p2751) target = $region164
      $region163: #{model_forward.3} parent=5 // pred_region
        %s2754 = ssub.s32 %s53, 2
        // Predicated region
        $region165: #{model_forward.3} parent=163 // pred_check
          %p2755 = pneg %p484
        $region166: #{model_forward.3} parent=163 // pred_check_branch
          %2757 = sbr.rel (%p2755) target = $region168
        $region167: #{model_forward.3} parent=163 // pred_region
          %s2758 = sand.u32 %s469, 1
          %s2759 = scalar_lea.sflag [#allocation6], %s2758
          %s2760 = sand.u32 %s469, 1
          %s2761 = smul.addr %s2760, 16
          %s2762 = scalar_lea.vmem [#allocation28], %s2761
          %2763 = dma.done %s2759, 256
        $region168: #{model_forward.3} parent=163 // pred_fallthru
          _
        // Predicated region
        $region169: #{model_forward.3} parent=163 // pred_check
          %p2764 = pneg %p510
        $region170: #{model_forward.3} parent=163 // pred_check_branch
          %2766 = sbr.rel (%p2764) target = $region172
        $region171: #{model_forward.3} parent=163 // pred_region
          %s2767 = sand.u32 %s495, 1
          %s2768 = scalar_lea.sflag [#allocation30], %s2767
          %s2769 = sand.u32 %s495, 1
          %s2770 = smul.addr %s2769, 16
          %s2771 = scalar_lea.vmem [#allocation29], %s2770
          %2772 = dma.done %s2768, 256
        $region172: #{model_forward.3} parent=163 // pred_fallthru
          _
      $region164: #{model_forward.3} parent=5 // pred_fallthru
        _
    $region6: #{model_forward.3} parent=1 // loop_footer
      %s57 = sadd.s32 1, %s53
    $region7: #{model_forward.3} parent=1 // loop_footer_branch
      %52 = sbr.rel target = $region3
    $region8: #{model_forward.3} parent=1 // loop_exit
      _
    %2773 = vsyncpa [#allocation5], 1
    %s2774 = scalar_lea.sflag [#allocation5], 1
    %2775 = vsyncpa %s2774, 1
    %2776 = vsyncpa [#allocation8], 1
    %s2777 = scalar_lea.sflag [#allocation8], 1
    %2778 = vsyncpa %s2777, 1
    %2779 = vsyncpa [#allocation11], 1
    %s2780 = scalar_lea.sflag [#allocation11], 1
    %2781 = vsyncpa %s2780, 1
    %2782 = vsyncpa [#allocation14], 1
    %s2783 = scalar_lea.sflag [#allocation14], 1
    %2784 = vsyncpa %s2783, 1
    %2785 = vsyncpa [#allocation17], 1
    %s2786 = scalar_lea.sflag [#allocation17], 1
    %2787 = vsyncpa %s2786, 1
    %2788 = vsyncpa [#allocation20], 1
    %s2789 = scalar_lea.sflag [#allocation20], 1
    %2790 = vsyncpa %s2789, 1
    %2791 = vsyncpa [#allocation23], 1
    %s2792 = scalar_lea.sflag [#allocation23], 1
    %2793 = vsyncpa %s2792, 1
    %2794 = vsyncpa [#allocation26], 1
    %s2795 = scalar_lea.sflag [#allocation26], 1
    %2796 = vsyncpa %s2795, 1
    %2797 = vsyncpa [#allocation6], 1
    %s2798 = scalar_lea.sflag [#allocation6], 1
    %2799 = vsyncpa %s2798, 1
    %2800 = vsyncpa [#allocation30], 1
    %s2801 = scalar_lea.sflag [#allocation30], 1
    %2802 = vsyncpa %s2801, 1

</llo_original>
